<compile_context>
chip_gen: v6e
topology: v6e:2x2x1
jax: 0.10.0
libtpu: 0.0.40
codegen_flags: <defaults>
</compile_context>

<pallas_src>
import math

import jax
import jax.numpy as jnp
from jax.experimental import pallas as pl
from jax.experimental.pallas import tpu as pltpu

_LN_EPS = 1e-5
_NEG = -1e30                 # finite stand-in for -inf in the attention mask
_MXU_DTYPE = jnp.bfloat16    # matmul operand dtype (accumulation stays f32)


# ---------------------------------------------------------------------------
# Mask (used by the pure-JAX reference only; the kernel regenerates it on-chip)
# ---------------------------------------------------------------------------
def _gen_mask(hh: int, ww: int, maxdisp: int = 2) -> jax.Array:
    qi = jnp.arange(hh)[:, None, None, None]
    qj = jnp.arange(ww)[None, :, None, None]
    ki = jnp.arange(hh)[None, None, :, None]
    kj = jnp.arange(ww)[None, None, None, :]
    allowed = jnp.abs(ki - qi) * maxdisp >= jnp.abs(kj - qj)
    mask = jnp.where(allowed, 0.0, _NEG).astype(jnp.float32)
    return mask.reshape(hh * ww, hh * ww)


# ---------------------------------------------------------------------------
# Tiling heuristics
# ---------------------------------------------------------------------------
def _pick_batch_tile(n: int, l: int, e: int, c: int, budget_bytes: int = 6 << 20) -> int:
    """Largest divisor tn of n whose per-step f32 live set fits the budget,
    preferring a grid of >= 2 steps (pipelining / even megacore split on v7x)."""
    def live_bytes(tn):
        rows = tn * l
        acts = rows * (12 * e + 2 * c)          # tok/norm/q/k/v/ctx/ffn hidden/out ...
        scores = (tn + 1) * l * l               # per-head scores + in-kernel mask bias
        return 4 * (acts + scores)

    divisors = [d for d in range(1, n + 1) if n % d == 0]
    fitting = [d for d in divisors if live_bytes(d) <= budget_bytes] or [1]
    multi_step = [d for d in fitting if n // d >= 2]
    return max(multi_step) if multi_step else max(fitting)


def _vmem_limit_bytes(tn: int, l: int, e: int, c: int) -> int:
    rows = tn * l
    live = 4 * (rows * (12 * e + 2 * c) + (tn + 1) * l * l)   # f32 live set
    weights = 2 * (c * e + 4 * e * e + 4 * e * e + e * c)      # resident bf16 weights
    io = 2 * 2 * rows * c * 4                                  # double-buffered I/O blocks
    est = 2 * live + weights + io + (4 << 20)                  # headroom
    return int(min(max(est, 32 << 20), 48 << 20))


# ---------------------------------------------------------------------------
# Fused kernel: embed + LN1 + masked MHA + LN2 + FFN + linear_out
# ---------------------------------------------------------------------------
def _make_fused_kernel(num_heads: int, head_dim: int, tn: int, L: int, E: int,
                       C: int, maxdisp: int):
    def kernel(x_ref, qr_ref, qc_ref, kr_ref, kc_ref,
               w_in_ref, g1_ref, b1_ref,
               wq_ref, wk_ref, wv_ref, wo_ref,
               g2_ref, b2_ref, wf1_ref, wf2_ref, wout_ref,
               o_ref, ctx_ref):
        rows = tn * L

        # ---- epipolar mask bias, regenerated on-chip from tiny index vectors ----
        allowed = (jnp.abs(kr_ref[...] - qr_ref[...]) * float(maxdisp)
                   >= jnp.abs(kc_ref[...] - qc_ref[...]))                # (L, L) bool
        bias = jnp.where(allowed, 0.0, _NEG)                             # (L, L) f32

        # ---- linear_in + LayerNorm (f32 accumulation / math) ----
        tok = jnp.dot(x_ref[...], w_in_ref[...],
                      preferred_element_type=jnp.float32)                # (rows, E)
        mu = jnp.mean(tok, axis=-1, keepdims=True)
        cent = tok - mu
        var = jnp.mean(cent * cent, axis=-1, keepdims=True)
        norm = cent * jax.lax.rsqrt(var + _LN_EPS) * g1_ref[...] + b1_ref[...]

        # ---- Q/K/V projections hoisted out of the head loop (full E width) ----
        nb = norm.astype(_MXU_DTYPE)
        tb = tok.astype(_MXU_DTYPE)
        q3 = jnp.dot(nb, wq_ref[...],
                     preferred_element_type=jnp.float32).reshape(tn, L, E)
        k3 = jnp.dot(nb, wk_ref[...],
                     preferred_element_type=jnp.float32).reshape(tn, L, E)
        v3 = jnp.dot(tb, wv_ref[...],
                     preferred_element_type=jnp.float32).reshape(tn, L, E)

        # ---- masked attention per head; contexts written to a VMEM scratch ----
        # TODO(synk): for large L (>~1-2k) switch to flash-style KV tiling with an
        # online softmax instead of materializing (tn, L, L) scores per head.
        for hidx in range(num_heads):
            lo = hidx * head_dim
            hi = lo + head_dim
            qh = q3[:, :, lo:hi].astype(_MXU_DTYPE)     # 1/sqrt(Dh) folded into Wq
            kh = k3[:, :, lo:hi].astype(_MXU_DTYPE)
            vh = v3[:, :, lo:hi].astype(_MXU_DTYPE)
            s = jnp.einsum("bqd,bkd->bqk", qh, kh,
                           preferred_element_type=jnp.float32) + bias    # (tn, L, L)
            s_max = jnp.max(s, axis=-1, keepdims=True)
            unnorm = jnp.exp(s - s_max)
            denom = jnp.sum(unnorm, axis=-1, keepdims=True)
            p = unnorm * pl.reciprocal(denom, approx=True)
            ctx_ref[:, :, lo:hi] = jnp.einsum(
                "bqk,bkd->bqd", p.astype(_MXU_DTYPE), vh,
                preferred_element_type=jnp.float32)

        # ---- output projection (single full-depth matmul) + residual ----
        ctx = ctx_ref[...].reshape(rows, E).astype(_MXU_DTYPE)
        tok = jnp.dot(ctx, wo_ref[...], preferred_element_type=jnp.float32) + tok

        # ---- FFN: LayerNorm -> E->2E -> ReLU -> 2E->E, + residual ----
        mu2 = jnp.mean(tok, axis=-1, keepdims=True)
        cent2 = tok - mu2
        var2 = jnp.mean(cent2 * cent2, axis=-1, keepdims=True)
        ln2 = cent2 * jax.lax.rsqrt(var2 + _LN_EPS) * g2_ref[...] + b2_ref[...]
        h1 = jnp.maximum(
            jnp.dot(ln2.astype(_MXU_DTYPE), wf1_ref[...],
                    preferred_element_type=jnp.float32), 0.0)            # (rows, 2E)
        y = jnp.dot(h1.astype(_MXU_DTYPE), wf2_ref[...],
                    preferred_element_type=jnp.float32) + tok            # (rows, E)

        # ---- linear_out ----
        # TODO(synk): C < 128 makes this a masked (partial-lane) store; a packed
        # lane-dense output layout would further cut the store tail.
        out = jnp.dot(y.astype(_MXU_DTYPE), wout_ref[...],
                      preferred_element_type=jnp.float32)                # (rows, C)
        o_ref[...] = out.astype(o_ref.dtype)

    return kernel


# ---------------------------------------------------------------------------
# Wrapper: full EpiXTrans forward
# ---------------------------------------------------------------------------
def epix_trans_forward(buffer, params, num_heads, maxdisp: int = 2):
    b, c, u, v, h, w = buffer.shape
    out_dtype = buffer.dtype
    E = params["w_in"].shape[0]
    assert E % num_heads == 0
    Dh = E // num_heads
    L = v * w
    N = b * u * h
    M = N * L
    # Row blocks of tn*L and in-kernel (tn*L,E)<->(tn,L,E) reshapes need L % 8 == 0.
    assert L % 8 == 0, "TODO(synk): pad the epipolar length to a multiple of 8"

    tn = _pick_batch_tile(N, L, E, c)
    R = tn * L

    # Single input permute: (b,c,u,v,h,w) -> (b,u,h,v,w,c) -> (M, C), rows are
    # n-major / l-minor.  bf16 halves the kernel-side activation DMA.
    x_rows = (jnp.transpose(buffer, (0, 2, 4, 3, 5, 1))
              .reshape(M, c).astype(_MXU_DTYPE))

    # Tiny per-position (view-row, view-col) indices; the (L,L) additive mask is
    # regenerated inside the kernel from these.
    idx = jnp.arange(L)
    pos_i = (idx // w).astype(jnp.float32)
    pos_j = (idx % w).astype(jnp.float32)
    q_r, q_c = pos_i.reshape(L, 1), pos_j.reshape(L, 1)
    k_r, k_c = pos_i.reshape(1, L), pos_j.reshape(1, L)

    # Pre-transposed bf16 weights (done once); 1/sqrt(Dh) folded into Wq.
    f32 = jnp.float32
    w_in_t = params["w_in"].T.astype(_MXU_DTYPE)                         # (C, E)
    wq, wk, wv = jnp.split(params["in_proj_w"].astype(f32), 3, axis=0)
    wq_t = (wq.T / math.sqrt(Dh)).astype(_MXU_DTYPE)                     # (E, E)
    wk_t = wk.T.astype(_MXU_DTYPE)                                       # (E, E)
    wv_t = wv.T.astype(_MXU_DTYPE)                                       # (E, E)
    wo_t = params["w_o"].T.astype(_MXU_DTYPE)                            # (E, E)
    wf1_t = params["w_ff1"].T.astype(_MXU_DTYPE)                         # (E, 2E)
    wf2_t = params["w_ff2"].T.astype(_MXU_DTYPE)                         # (2E, E)
    wout_t = params["w_out"].T.astype(_MXU_DTYPE)                        # (E, C)
    g1 = params["ln1_g"].reshape(1, E).astype(f32)
    b1 = params["ln1_b"].reshape(1, E).astype(f32)
    g2 = params["ln2_g"].reshape(1, E).astype(f32)
    b2 = params["ln2_b"].reshape(1, E).astype(f32)

    def resident(shape):
        nd = len(shape)
        return pl.BlockSpec(shape, lambda i, _nd=nd: (0,) * _nd)

    kernel = _make_fused_kernel(num_heads, Dh, tn, L, E, c, maxdisp)

    out_rows = pl.pallas_call(
        kernel,
        out_shape=jax.ShapeDtypeStruct((M, c), out_dtype),
        grid_spec=pltpu.PrefetchScalarGridSpec(
            num_scalar_prefetch=0,
            grid=(N // tn,),
            in_specs=[
                pl.BlockSpec((R, c), lambda i: (i, 0)),     # token rows (tn tokens)
                resident((L, 1)), resident((L, 1)),         # query (row, col) index
                resident((1, L)), resident((1, L)),         # key   (row, col) index
                resident((c, E)), resident((1, E)), resident((1, E)),
                resident((E, E)), resident((E, E)), resident((E, E)), resident((E, E)),
                resident((1, E)), resident((1, E)),
                resident((E, 2 * E)), resident((2 * E, E)), resident((E, c)),
            ],
            out_specs=pl.BlockSpec((R, c), lambda i: (i, 0)),
            scratch_shapes=[pltpu.VMEM((tn, L, E), jnp.float32)],   # per-head contexts
        ),
        compiler_params=pltpu.CompilerParams(
            dimension_semantics=("parallel",),
            vmem_limit_bytes=_vmem_limit_bytes(tn, L, E, c),
        ),
    )(x_rows, q_r, q_c, k_r, k_c,
      w_in_t, g1, b1, wq_t, wk_t, wv_t, wo_t, g2, b2, wf1_t, wf2_t, wout_t)

    # Single output permute back: (M, C) -> (b,u,h,v,w,c) -> (b,c,u,v,h,w).
    out = out_rows.reshape(b, u, h, v, w, c)
    return jnp.transpose(out, (0, 5, 1, 3, 2, 4))


# ---------------------------------------------------------------------------
# Pure-JAX reference (mirrors the PyTorch forward, eval mode, f32 HIGHEST)
# ---------------------------------------------------------------------------
def epix_trans_reference(buffer, params, num_heads, maxdisp: int = 2):
    b, c, u, v, h, w = buffer.shape
    E = params["w_in"].shape[0]
    Dh = E // num_heads
    L, N = v * w, b * u * h
    hp = jax.lax.Precision.HIGHEST

    mask = _gen_mask(v, w, maxdisp)

    x = jnp.transpose(buffer, (3, 5, 0, 2, 4, 1)).reshape(L, N, c).astype(jnp.float32)
    tok = jnp.einsum("lnc,ec->lne", x, params["w_in"], precision=hp)

    def ln(t, g, bb):
        mu = jnp.mean(t, axis=-1, keepdims=True)
        d = t - mu
        var = jnp.mean(d * d, axis=-1, keepdims=True)
        return d * jax.lax.rsqrt(var + _LN_EPS) * g + bb

    tokn = ln(tok, params["ln1_g"], params["ln1_b"])

    wq, wk, wv = jnp.split(params["in_proj_w"], 3, axis=0)
    q = jnp.einsum("lne,fe->lnf", tokn, wq, precision=hp).reshape(L, N, num_heads, Dh)
    k = jnp.einsum("lne,fe->lnf", tokn, wk, precision=hp).reshape(L, N, num_heads, Dh)
    vv = jnp.einsum("lne,fe->lnf", tok, wv, precision=hp).reshape(L, N, num_heads, Dh)

    s = jnp.einsum("qnhd,knhd->nhqk", q, k, precision=hp) / math.sqrt(Dh) + mask
    p = jax.nn.softmax(s, axis=-1)
    ctx = jnp.einsum("nhqk,knhd->qnhd", p, vv, precision=hp).reshape(L, N, E)
    attn = jnp.einsum("lne,fe->lnf", ctx, params["w_o"], precision=hp)
    tok = attn + tok

    ln2 = ln(tok, params["ln2_g"], params["ln2_b"])
    h1 = jax.nn.relu(jnp.einsum("lne,fe->lnf", ln2, params["w_ff1"], precision=hp))
    ff = jnp.einsum("lnf,ef->lne", h1, params["w_ff2"], precision=hp)
    tok = ff + tok

    out = jnp.einsum("lne,ce->lnc", tok, params["w_out"], precision=hp)
    out = out.reshape(v, w, b, u, h, c)
    out = jnp.transpose(out, (2, 5, 3, 0, 4, 1))
    return out.astype(buffer.dtype)


# ---------------------------------------------------------------------------
if __name__ == "__main__":
    key = jax.random.PRNGKey(0)
    b, c, u, v, h, w = 2, 4, 2, 4, 2, 4     # buffer (b, c, u, v, h, w); L = v*w = 16
    E = 32
    num_heads = 4

    ks = jax.random.split(key, 11)
    buffer = jax.random.normal(ks[0], (b, c, u, v, h, w), jnp.float32)

    def init(k, shape, fan_in):
        return jax.random.normal(k, shape, jnp.float32) / jnp.sqrt(float(fan_in))

    params = {
        "w_in": init(ks[1], (E, c), c),                 # linear_in.weight
        "ln1_g": 1.0 + 0.1 * jax.random.normal(ks[2], (E,), jnp.float32),
        "ln1_b": 0.1 * jax.random.normal(ks[3], (E,), jnp.float32),
        "in_proj_w": init(ks[4], (3 * E, E), E),        # attention.in_proj_weight
        "w_o": init(ks[5], (E, E), E),                  # attention.out_proj.weight
        "ln2_g": 1.0 + 0.1 * jax.random.normal(ks[6], (E,), jnp.float32),
        "ln2_b": 0.1 * jax.random.normal(ks[7], (E,), jnp.float32),
        "w_ff1": init(ks[8], (2 * E, E), E),            # feed_forward Linear(E, 2E)
        "w_ff2": init(ks[9], (E, 2 * E), 2 * E),        # feed_forward Linear(2E, E)
        "w_out": init(ks[10], (c, E), E),               # linear_out.weight
    }

    out = epix_trans_forward(buffer, params, num_heads)
    jax.block_until_ready(out)

    ref = epix_trans_reference(buffer, params, num_heads)
    assert out.shape == buffer.shape, (out.shape, buffer.shape)

    diff = jnp.abs(out.astype(jnp.float32) - ref.astype(jnp.float32))
    max_err = float(jnp.max(diff))
    mean_err = float(jnp.mean(diff))
    scale = float(jnp.max(jnp.abs(ref)))
    # bf16 MXU operands (f32 accumulation) through ~8 chained matmuls -> allow a
    # small range-relative error; math (LN, softmax, residuals) stays f32.
    assert max_err <= 2.5e-2 * scale + 1e-2, f"max abs err = {max_err} (scale {scale})"
    assert mean_err <= 1e-2 * scale, f"mean abs err = {mean_err} (scale {scale})"

    print("KERNEL_OK")
</pallas_src>

<mosaic_0001>
module attributes {stable_mosaic.version = 11 : i64} {
  func.func @kernel(%arg0: i32, %arg1: memref<64x4xbf16, #tpu.memory_space<vmem>>, %arg2: memref<16x1xf32, #tpu.memory_space<vmem>>, %arg3: memref<16x1xf32, #tpu.memory_space<vmem>>, %arg4: memref<1x16xf32, #tpu.memory_space<vmem>>, %arg5: memref<1x16xf32, #tpu.memory_space<vmem>>, %arg6: memref<4x32xbf16, #tpu.memory_space<vmem>>, %arg7: memref<1x32xf32, #tpu.memory_space<vmem>>, %arg8: memref<1x32xf32, #tpu.memory_space<vmem>>, %arg9: memref<32x32xbf16, #tpu.memory_space<vmem>>, %arg10: memref<32x32xbf16, #tpu.memory_space<vmem>>, %arg11: memref<32x32xbf16, #tpu.memory_space<vmem>>, %arg12: memref<32x32xbf16, #tpu.memory_space<vmem>>, %arg13: memref<1x32xf32, #tpu.memory_space<vmem>>, %arg14: memref<1x32xf32, #tpu.memory_space<vmem>>, %arg15: memref<32x64xbf16, #tpu.memory_space<vmem>>, %arg16: memref<64x32xbf16, #tpu.memory_space<vmem>>, %arg17: memref<32x4xbf16, #tpu.memory_space<vmem>>, %arg18: memref<64x4xf32, #tpu.memory_space<vmem>>, %arg19: memref<4x16x32xf32, #tpu.memory_space<vmem>>) attributes {dimension_semantics = [#tpu.dimension_semantics<parallel>], iteration_bounds = array<i64: 2>, scalar_prefetch = 0 : i64, scratch_operands = 1 : i64, tpu.core_type = #tpu.core_type<tc>, window_params = [{transform_indices = @transform_0, window_bounds = array<i64: 64, 4>}, {pipeline_mode = #tpu.pipeline_mode<synchronous>, transform_indices = @transform_1, window_bounds = array<i64: 16, 1>}, {pipeline_mode = #tpu.pipeline_mode<synchronous>, transform_indices = @transform_2, window_bounds = array<i64: 16, 1>}, {pipeline_mode = #tpu.pipeline_mode<synchronous>, transform_indices = @transform_3, window_bounds = array<i64: 1, 16>}, {pipeline_mode = #tpu.pipeline_mode<synchronous>, transform_indices = @transform_4, window_bounds = array<i64: 1, 16>}, {pipeline_mode = #tpu.pipeline_mode<synchronous>, transform_indices = @transform_5, window_bounds = array<i64: 4, 32>}, {pipeline_mode = #tpu.pipeline_mode<synchronous>, transform_indices = @transform_6, window_bounds = array<i64: 1, 32>}, {pipeline_mode = #tpu.pipeline_mode<synchronous>, transform_indices = @transform_7, window_bounds = array<i64: 1, 32>}, {pipeline_mode = #tpu.pipeline_mode<synchronous>, transform_indices = @transform_8, window_bounds = array<i64: 32, 32>}, {pipeline_mode = #tpu.pipeline_mode<synchronous>, transform_indices = @transform_9, window_bounds = array<i64: 32, 32>}, {pipeline_mode = #tpu.pipeline_mode<synchronous>, transform_indices = @transform_10, window_bounds = array<i64: 32, 32>}, {pipeline_mode = #tpu.pipeline_mode<synchronous>, transform_indices = @transform_11, window_bounds = array<i64: 32, 32>}, {pipeline_mode = #tpu.pipeline_mode<synchronous>, transform_indices = @transform_12, window_bounds = array<i64: 1, 32>}, {pipeline_mode = #tpu.pipeline_mode<synchronous>, transform_indices = @transform_13, window_bounds = array<i64: 1, 32>}, {pipeline_mode = #tpu.pipeline_mode<synchronous>, transform_indices = @transform_14, window_bounds = array<i64: 32, 64>}, {pipeline_mode = #tpu.pipeline_mode<synchronous>, transform_indices = @transform_15, window_bounds = array<i64: 64, 32>}, {pipeline_mode = #tpu.pipeline_mode<synchronous>, transform_indices = @transform_16, window_bounds = array<i64: 32, 4>}, {transform_indices = @transform_17, window_bounds = array<i64: 64, 4>}]} {
    %c0 = arith.constant 0 : index
    %c0_0 = arith.constant 0 : index
    %0 = vector.load %arg4[%c0, %c0_0] : memref<1x16xf32, #tpu.memory_space<vmem>>, vector<1x16xf32>
    %c0_1 = arith.constant 0 : index
    %c0_2 = arith.constant 0 : index
    %1 = vector.load %arg2[%c0_1, %c0_2] : memref<16x1xf32, #tpu.memory_space<vmem>>, vector<16x1xf32>
    %2 = vector.broadcast %0 : vector<1x16xf32> to vector<16x16xf32>
    %3 = vector.broadcast %1 : vector<16x1xf32> to vector<16x16xf32>
    %4 = arith.subf %2, %3 : vector<16x16xf32>
    %5 = math.absf %4 : vector<16x16xf32>
    %cst = arith.constant 2.000000e+00 : f32
    %6 = vector.broadcast %cst : f32 to vector<16x16xf32>
    %7 = arith.mulf %5, %6 : vector<16x16xf32>
    %c0_3 = arith.constant 0 : index
    %c0_4 = arith.constant 0 : index
    %8 = vector.load %arg5[%c0_3, %c0_4] : memref<1x16xf32, #tpu.memory_space<vmem>>, vector<1x16xf32>
    %c0_5 = arith.constant 0 : index
    %c0_6 = arith.constant 0 : index
    %9 = vector.load %arg3[%c0_5, %c0_6] : memref<16x1xf32, #tpu.memory_space<vmem>>, vector<16x1xf32>
    %10 = vector.broadcast %8 : vector<1x16xf32> to vector<16x16xf32>
    %11 = vector.broadcast %9 : vector<16x1xf32> to vector<16x16xf32>
    %12 = arith.subf %10, %11 : vector<16x16xf32>
    %13 = math.absf %12 : vector<16x16xf32>
    %14 = arith.cmpf oge, %7, %13 : vector<16x16xf32>
    %cst_7 = arith.constant 0.000000e+00 : f32
    %cst_8 = arith.constant -1.000000e+30 : f32
    %15 = vector.broadcast %cst_7 : f32 to vector<16x16xf32>
    %16 = vector.broadcast %cst_8 : f32 to vector<16x16xf32>
    %17 = arith.select %14, %15, %16 : vector<16x16xi1>, vector<16x16xf32>
    %c0_9 = arith.constant 0 : index
    %c0_10 = arith.constant 0 : index
    %18 = vector.load %arg1[%c0_9, %c0_10] : memref<64x4xbf16, #tpu.memory_space<vmem>>, vector<64x4xbf16>
    %c0_11 = arith.constant 0 : index
    %c0_12 = arith.constant 0 : index
    %19 = vector.load %arg6[%c0_11, %c0_12] : memref<4x32xbf16, #tpu.memory_space<vmem>>, vector<4x32xbf16>
    %cst_13 = arith.constant dense<0.000000e+00> : vector<64x32xf32>
    %20 = tpu.matmul %18, %19, %cst_13 {dimension_numbers = #tpu.dot_dimension_numbers<[1], [0], [0], [1], [0, 0, 1, 1], [], []>} : vector<64x4xbf16>, vector<4x32xbf16>, vector<64x32xf32> -> vector<64x32xf32>
    %cst_14 = arith.constant dense<0.000000e+00> : vector<64xf32>
    %21 = vector.multi_reduction <add>, %20, %cst_14 [1] : vector<64x32xf32> to vector<64xf32>
    %22 = vector.shape_cast %21 : vector<64xf32> to vector<64x1xf32>
    %cst_15 = arith.constant 3.200000e+01 : f32
    %23 = vector.broadcast %cst_15 : f32 to vector<64x1xf32>
    %24 = arith.divf %22, %23 : vector<64x1xf32>
    %25 = vector.broadcast %24 : vector<64x1xf32> to vector<64x32xf32>
    %26 = arith.subf %20, %25 : vector<64x32xf32>
    %27 = arith.mulf %26, %26 : vector<64x32xf32>
    %cst_16 = arith.constant dense<0.000000e+00> : vector<64xf32>
    %28 = vector.multi_reduction <add>, %27, %cst_16 [1] : vector<64x32xf32> to vector<64xf32>
    %29 = vector.shape_cast %28 : vector<64xf32> to vector<64x1xf32>
    %cst_17 = arith.constant 3.200000e+01 : f32
    %30 = vector.broadcast %cst_17 : f32 to vector<64x1xf32>
    %31 = arith.divf %29, %30 : vector<64x1xf32>
    %cst_18 = arith.constant 9.99999974E-6 : f32
    %32 = vector.broadcast %cst_18 : f32 to vector<64x1xf32>
    %33 = arith.addf %31, %32 : vector<64x1xf32>
    %34 = math.rsqrt %33 : vector<64x1xf32>
    %35 = vector.broadcast %34 : vector<64x1xf32> to vector<64x32xf32>
    %36 = arith.mulf %26, %35 : vector<64x32xf32>
    %c0_19 = arith.constant 0 : index
    %c0_20 = arith.constant 0 : index
    %37 = vector.load %arg7[%c0_19, %c0_20] : memref<1x32xf32, #tpu.memory_space<vmem>>, vector<1x32xf32>
    %38 = vector.broadcast %37 : vector<1x32xf32> to vector<64x32xf32>
    %39 = arith.mulf %36, %38 : vector<64x32xf32>
    %c0_21 = arith.constant 0 : index
    %c0_22 = arith.constant 0 : index
    %40 = vector.load %arg8[%c0_21, %c0_22] : memref<1x32xf32, #tpu.memory_space<vmem>>, vector<1x32xf32>
    %41 = vector.broadcast %40 : vector<1x32xf32> to vector<64x32xf32>
    %42 = arith.addf %39, %41 : vector<64x32xf32>
    %43 = arith.truncf %42 : vector<64x32xf32> to vector<64x32xbf16>
    %44 = arith.truncf %20 : vector<64x32xf32> to vector<64x32xbf16>
    %c0_23 = arith.constant 0 : index
    %c0_24 = arith.constant 0 : index
    %45 = vector.load %arg9[%c0_23, %c0_24] : memref<32x32xbf16, #tpu.memory_space<vmem>>, vector<32x32xbf16>
    %cst_25 = arith.constant dense<0.000000e+00> : vector<64x32xf32>
    %46 = tpu.matmul %43, %45, %cst_25 {dimension_numbers = #tpu.dot_dimension_numbers<[1], [0], [0], [1], [0, 0, 1, 1], [], []>} : vector<64x32xbf16>, vector<32x32xbf16>, vector<64x32xf32> -> vector<64x32xf32>
    %47 = vector.shape_cast %46 : vector<64x32xf32> to vector<4x16x32xf32>
    %c0_26 = arith.constant 0 : index
    %c0_27 = arith.constant 0 : index
    %48 = vector.load %arg10[%c0_26, %c0_27] : memref<32x32xbf16, #tpu.memory_space<vmem>>, vector<32x32xbf16>
    %cst_28 = arith.constant dense<0.000000e+00> : vector<64x32xf32>
    %49 = tpu.matmul %43, %48, %cst_28 {dimension_numbers = #tpu.dot_dimension_numbers<[1], [0], [0], [1], [0, 0, 1, 1], [], []>} : vector<64x32xbf16>, vector<32x32xbf16>, vector<64x32xf32> -> vector<64x32xf32>
    %50 = vector.shape_cast %49 : vector<64x32xf32> to vector<4x16x32xf32>
    %c0_29 = arith.constant 0 : index
    %c0_30 = arith.constant 0 : index
    %51 = vector.load %arg11[%c0_29, %c0_30] : memref<32x32xbf16, #tpu.memory_space<vmem>>, vector<32x32xbf16>
    %cst_31 = arith.constant dense<0.000000e+00> : vector<64x32xf32>
    %52 = tpu.matmul %44, %51, %cst_31 {dimension_numbers = #tpu.dot_dimension_numbers<[1], [0], [0], [1], [0, 0, 1, 1], [], []>} : vector<64x32xbf16>, vector<32x32xbf16>, vector<64x32xf32> -> vector<64x32xf32>
    %53 = vector.shape_cast %52 : vector<64x32xf32> to vector<4x16x32xf32>
    %54 = vector.extract_strided_slice %47 {offsets = [0, 0, 0], sizes = [4, 16, 8], strides = [1, 1, 1]} : vector<4x16x32xf32> to vector<4x16x8xf32>
    %55 = arith.truncf %54 : vector<4x16x8xf32> to vector<4x16x8xbf16>
    %56 = vector.extract_strided_slice %50 {offsets = [0, 0, 0], sizes = [4, 16, 8], strides = [1, 1, 1]} : vector<4x16x32xf32> to vector<4x16x8xf32>
    %57 = arith.truncf %56 : vector<4x16x8xf32> to vector<4x16x8xbf16>
    %58 = vector.extract_strided_slice %53 {offsets = [0, 0, 0], sizes = [4, 16, 8], strides = [1, 1, 1]} : vector<4x16x32xf32> to vector<4x16x8xf32>
    %59 = arith.truncf %58 : vector<4x16x8xf32> to vector<4x16x8xbf16>
    "tpu.trace_start"() <{level = 10 : i32, message = "bqd,bkd->bqk"}> : () -> ()
    %cst_32 = arith.constant dense<0.000000e+00> : vector<4x16x16xf32>
    %60 = tpu.matmul %55, %57, %cst_32 {dimension_numbers = #tpu.dot_dimension_numbers<[2], [2], [1], [1], [0, 0, 0, 1, 1, 1], [0], [0]>} : vector<4x16x8xbf16>, vector<4x16x8xbf16>, vector<4x16x16xf32> -> vector<4x16x16xf32>
    "tpu.trace_stop"() : () -> ()
    %61 = vector.shape_cast %17 : vector<16x16xf32> to vector<1x16x16xf32>
    %62 = vector.broadcast %61 : vector<1x16x16xf32> to vector<4x16x16xf32>
    %63 = arith.addf %60, %62 : vector<4x16x16xf32>
    %cst_33 = arith.constant dense<0xFF800000> : vector<4x16xf32>
    %64 = vector.multi_reduction <maximumf>, %63, %cst_33 [2] : vector<4x16x16xf32> to vector<4x16xf32>
    %65 = vector.shape_cast %64 : vector<4x16xf32> to vector<4x16x1xf32>
    %66 = vector.broadcast %65 : vector<4x16x1xf32> to vector<4x16x16xf32>
    %67 = arith.subf %63, %66 : vector<4x16x16xf32>
    %68 = math.exp %67 : vector<4x16x16xf32>
    %cst_34 = arith.constant dense<0.000000e+00> : vector<4x16xf32>
    %69 = vector.multi_reduction <add>, %68, %cst_34 [2] : vector<4x16x16xf32> to vector<4x16xf32>
    %70 = vector.shape_cast %69 : vector<4x16xf32> to vector<4x16x1xf32>
    %71 = tpu.reciprocal %70 {approx = true} : vector<4x16x1xf32> -> vector<4x16x1xf32>
    %72 = vector.broadcast %71 : vector<4x16x1xf32> to vector<4x16x16xf32>
    %73 = arith.mulf %68, %72 : vector<4x16x16xf32>
    %74 = arith.truncf %73 : vector<4x16x16xf32> to vector<4x16x16xbf16>
    "tpu.trace_start"() <{level = 10 : i32, message = "bqk,bkd->bqd"}> : () -> ()
    %cst_35 = arith.constant dense<0.000000e+00> : vector<4x16x8xf32>
    %75 = tpu.matmul %74, %59, %cst_35 {dimension_numbers = #tpu.dot_dimension_numbers<[2], [1], [1], [2], [0, 0, 0, 1, 1, 2], [0], [0]>} : vector<4x16x16xbf16>, vector<4x16x8xbf16>, vector<4x16x8xf32> -> vector<4x16x8xf32>
    "tpu.trace_stop"() : () -> ()
    %c0_36 = arith.constant 0 : index
    %c0_37 = arith.constant 0 : index
    %c0_38 = arith.constant 0 : index
    %76 = vector.load %arg19[%c0_36, %c0_37, %c0_38] : memref<4x16x32xf32, #tpu.memory_space<vmem>>, vector<4x16x8xf32>
    tpu.vector_store %arg19[%c0_36, %c0_37, %c0_38], %75 {strides = array<i32>} : memref<4x16x32xf32, #tpu.memory_space<vmem>>, vector<4x16x8xf32>,
    %77 = vector.extract_strided_slice %47 {offsets = [0, 0, 8], sizes = [4, 16, 8], strides = [1, 1, 1]} : vector<4x16x32xf32> to vector<4x16x8xf32>
    %78 = arith.truncf %77 : vector<4x16x8xf32> to vector<4x16x8xbf16>
    %79 = vector.extract_strided_slice %50 {offsets = [0, 0, 8], sizes = [4, 16, 8], strides = [1, 1, 1]} : vector<4x16x32xf32> to vector<4x16x8xf32>
    %80 = arith.truncf %79 : vector<4x16x8xf32> to vector<4x16x8xbf16>
    %81 = vector.extract_strided_slice %53 {offsets = [0, 0, 8], sizes = [4, 16, 8], strides = [1, 1, 1]} : vector<4x16x32xf32> to vector<4x16x8xf32>
    %82 = arith.truncf %81 : vector<4x16x8xf32> to vector<4x16x8xbf16>
    "tpu.trace_start"() <{level = 10 : i32, message = "bqd,bkd->bqk"}> : () -> ()
    %cst_39 = arith.constant dense<0.000000e+00> : vector<4x16x16xf32>
    %83 = tpu.matmul %78, %80, %cst_39 {dimension_numbers = #tpu.dot_dimension_numbers<[2], [2], [1], [1], [0, 0, 0, 1, 1, 1], [0], [0]>} : vector<4x16x8xbf16>, vector<4x16x8xbf16>, vector<4x16x16xf32> -> vector<4x16x16xf32>
    "tpu.trace_stop"() : () -> ()
    %84 = vector.shape_cast %17 : vector<16x16xf32> to vector<1x16x16xf32>
    %85 = vector.broadcast %84 : vector<1x16x16xf32> to vector<4x16x16xf32>
    %86 = arith.addf %83, %85 : vector<4x16x16xf32>
    %cst_40 = arith.constant dense<0xFF800000> : vector<4x16xf32>
    %87 = vector.multi_reduction <maximumf>, %86, %cst_40 [2] : vector<4x16x16xf32> to vector<4x16xf32>
    %88 = vector.shape_cast %87 : vector<4x16xf32> to vector<4x16x1xf32>
    %89 = vector.broadcast %88 : vector<4x16x1xf32> to vector<4x16x16xf32>
    %90 = arith.subf %86, %89 : vector<4x16x16xf32>
    %91 = math.exp %90 : vector<4x16x16xf32>
    %cst_41 = arith.constant dense<0.000000e+00> : vector<4x16xf32>
    %92 = vector.multi_reduction <add>, %91, %cst_41 [2] : vector<4x16x16xf32> to vector<4x16xf32>
    %93 = vector.shape_cast %92 : vector<4x16xf32> to vector<4x16x1xf32>
    %94 = tpu.reciprocal %93 {approx = true} : vector<4x16x1xf32> -> vector<4x16x1xf32>
    %95 = vector.broadcast %94 : vector<4x16x1xf32> to vector<4x16x16xf32>
    %96 = arith.mulf %91, %95 : vector<4x16x16xf32>
    %97 = arith.truncf %96 : vector<4x16x16xf32> to vector<4x16x16xbf16>
    "tpu.trace_start"() <{level = 10 : i32, message = "bqk,bkd->bqd"}> : () -> ()
    %cst_42 = arith.constant dense<0.000000e+00> : vector<4x16x8xf32>
    %98 = tpu.matmul %97, %82, %cst_42 {dimension_numbers = #tpu.dot_dimension_numbers<[2], [1], [1], [2], [0, 0, 0, 1, 1, 2], [0], [0]>} : vector<4x16x16xbf16>, vector<4x16x8xbf16>, vector<4x16x8xf32> -> vector<4x16x8xf32>
    "tpu.trace_stop"() : () -> ()
    %c0_43 = arith.constant 0 : index
    %c0_44 = arith.constant 0 : index
    %c8 = arith.constant 8 : index
    %99 = vector.load %arg19[%c0_43, %c0_44, %c8] : memref<4x16x32xf32, #tpu.memory_space<vmem>>, vector<4x16x8xf32>
    tpu.vector_store %arg19[%c0_43, %c0_44, %c8], %98 {strides = array<i32>} : memref<4x16x32xf32, #tpu.memory_space<vmem>>, vector<4x16x8xf32>,
    %100 = vector.extract_strided_slice %47 {offsets = [0, 0, 16], sizes = [4, 16, 8], strides = [1, 1, 1]} : vector<4x16x32xf32> to vector<4x16x8xf32>
    %101 = arith.truncf %100 : vector<4x16x8xf32> to vector<4x16x8xbf16>
    %102 = vector.extract_strided_slice %50 {offsets = [0, 0, 16], sizes = [4, 16, 8], strides = [1, 1, 1]} : vector<4x16x32xf32> to vector<4x16x8xf32>
    %103 = arith.truncf %102 : vector<4x16x8xf32> to vector<4x16x8xbf16>
    %104 = vector.extract_strided_slice %53 {offsets = [0, 0, 16], sizes = [4, 16, 8], strides = [1, 1, 1]} : vector<4x16x32xf32> to vector<4x16x8xf32>
    %105 = arith.truncf %104 : vector<4x16x8xf32> to vector<4x16x8xbf16>
    "tpu.trace_start"() <{level = 10 : i32, message = "bqd,bkd->bqk"}> : () -> ()
    %cst_45 = arith.constant dense<0.000000e+00> : vector<4x16x16xf32>
    %106 = tpu.matmul %101, %103, %cst_45 {dimension_numbers = #tpu.dot_dimension_numbers<[2], [2], [1], [1], [0, 0, 0, 1, 1, 1], [0], [0]>} : vector<4x16x8xbf16>, vector<4x16x8xbf16>, vector<4x16x16xf32> -> vector<4x16x16xf32>
    "tpu.trace_stop"() : () -> ()
    %107 = vector.shape_cast %17 : vector<16x16xf32> to vector<1x16x16xf32>
    %108 = vector.broadcast %107 : vector<1x16x16xf32> to vector<4x16x16xf32>
    %109 = arith.addf %106, %108 : vector<4x16x16xf32>
    %cst_46 = arith.constant dense<0xFF800000> : vector<4x16xf32>
    %110 = vector.multi_reduction <maximumf>, %109, %cst_46 [2] : vector<4x16x16xf32> to vector<4x16xf32>
    %111 = vector.shape_cast %110 : vector<4x16xf32> to vector<4x16x1xf32>
    %112 = vector.broadcast %111 : vector<4x16x1xf32> to vector<4x16x16xf32>
    %113 = arith.subf %109, %112 : vector<4x16x16xf32>
    %114 = math.exp %113 : vector<4x16x16xf32>
    %cst_47 = arith.constant dense<0.000000e+00> : vector<4x16xf32>
    %115 = vector.multi_reduction <add>, %114, %cst_47 [2] : vector<4x16x16xf32> to vector<4x16xf32>
    %116 = vector.shape_cast %115 : vector<4x16xf32> to vector<4x16x1xf32>
    %117 = tpu.reciprocal %116 {approx = true} : vector<4x16x1xf32> -> vector<4x16x1xf32>
    %118 = vector.broadcast %117 : vector<4x16x1xf32> to vector<4x16x16xf32>
    %119 = arith.mulf %114, %118 : vector<4x16x16xf32>
    %120 = arith.truncf %119 : vector<4x16x16xf32> to vector<4x16x16xbf16>
    "tpu.trace_start"() <{level = 10 : i32, message = "bqk,bkd->bqd"}> : () -> ()
    %cst_48 = arith.constant dense<0.000000e+00> : vector<4x16x8xf32>
    %121 = tpu.matmul %120, %105, %cst_48 {dimension_numbers = #tpu.dot_dimension_numbers<[2], [1], [1], [2], [0, 0, 0, 1, 1, 2], [0], [0]>} : vector<4x16x16xbf16>, vector<4x16x8xbf16>, vector<4x16x8xf32> -> vector<4x16x8xf32>
    "tpu.trace_stop"() : () -> ()
    %c0_49 = arith.constant 0 : index
    %c0_50 = arith.constant 0 : index
    %c16 = arith.constant 16 : index
    %122 = vector.load %arg19[%c0_49, %c0_50, %c16] : memref<4x16x32xf32, #tpu.memory_space<vmem>>, vector<4x16x8xf32>
    tpu.vector_store %arg19[%c0_49, %c0_50, %c16], %121 {strides = array<i32>} : memref<4x16x32xf32, #tpu.memory_space<vmem>>, vector<4x16x8xf32>,
    %123 = vector.extract_strided_slice %47 {offsets = [0, 0, 24], sizes = [4, 16, 8], strides = [1, 1, 1]} : vector<4x16x32xf32> to vector<4x16x8xf32>
    %124 = arith.truncf %123 : vector<4x16x8xf32> to vector<4x16x8xbf16>
    %125 = vector.extract_strided_slice %50 {offsets = [0, 0, 24], sizes = [4, 16, 8], strides = [1, 1, 1]} : vector<4x16x32xf32> to vector<4x16x8xf32>
    %126 = arith.truncf %125 : vector<4x16x8xf32> to vector<4x16x8xbf16>
    %127 = vector.extract_strided_slice %53 {offsets = [0, 0, 24], sizes = [4, 16, 8], strides = [1, 1, 1]} : vector<4x16x32xf32> to vector<4x16x8xf32>
    %128 = arith.truncf %127 : vector<4x16x8xf32> to vector<4x16x8xbf16>
    "tpu.trace_start"() <{level = 10 : i32, message = "bqd,bkd->bqk"}> : () -> ()
    %cst_51 = arith.constant dense<0.000000e+00> : vector<4x16x16xf32>
    %129 = tpu.matmul %124, %126, %cst_51 {dimension_numbers = #tpu.dot_dimension_numbers<[2], [2], [1], [1], [0, 0, 0, 1, 1, 1], [0], [0]>} : vector<4x16x8xbf16>, vector<4x16x8xbf16>, vector<4x16x16xf32> -> vector<4x16x16xf32>
    "tpu.trace_stop"() : () -> ()
    %130 = vector.shape_cast %17 : vector<16x16xf32> to vector<1x16x16xf32>
    %131 = vector.broadcast %130 : vector<1x16x16xf32> to vector<4x16x16xf32>
    %132 = arith.addf %129, %131 : vector<4x16x16xf32>
    %cst_52 = arith.constant dense<0xFF800000> : vector<4x16xf32>
    %133 = vector.multi_reduction <maximumf>, %132, %cst_52 [2] : vector<4x16x16xf32> to vector<4x16xf32>
    %134 = vector.shape_cast %133 : vector<4x16xf32> to vector<4x16x1xf32>
    %135 = vector.broadcast %134 : vector<4x16x1xf32> to vector<4x16x16xf32>
    %136 = arith.subf %132, %135 : vector<4x16x16xf32>
    %137 = math.exp %136 : vector<4x16x16xf32>
    %cst_53 = arith.constant dense<0.000000e+00> : vector<4x16xf32>
    %138 = vector.multi_reduction <add>, %137, %cst_53 [2] : vector<4x16x16xf32> to vector<4x16xf32>
    %139 = vector.shape_cast %138 : vector<4x16xf32> to vector<4x16x1xf32>
    %140 = tpu.reciprocal %139 {approx = true} : vector<4x16x1xf32> -> vector<4x16x1xf32>
    %141 = vector.broadcast %140 : vector<4x16x1xf32> to vector<4x16x16xf32>
    %142 = arith.mulf %137, %141 : vector<4x16x16xf32>
    %143 = arith.truncf %142 : vector<4x16x16xf32> to vector<4x16x16xbf16>
    "tpu.trace_start"() <{level = 10 : i32, message = "bqk,bkd->bqd"}> : () -> ()
    %cst_54 = arith.constant dense<0.000000e+00> : vector<4x16x8xf32>
    %144 = tpu.matmul %143, %128, %cst_54 {dimension_numbers = #tpu.dot_dimension_numbers<[2], [1], [1], [2], [0, 0, 0, 1, 1, 2], [0], [0]>} : vector<4x16x16xbf16>, vector<4x16x8xbf16>, vector<4x16x8xf32> -> vector<4x16x8xf32>
    "tpu.trace_stop"() : () -> ()
    %c0_55 = arith.constant 0 : index
    %c0_56 = arith.constant 0 : index
    %c24 = arith.constant 24 : index
    %145 = vector.load %arg19[%c0_55, %c0_56, %c24] : memref<4x16x32xf32, #tpu.memory_space<vmem>>, vector<4x16x8xf32>
    tpu.vector_store %arg19[%c0_55, %c0_56, %c24], %144 {strides = array<i32>} : memref<4x16x32xf32, #tpu.memory_space<vmem>>, vector<4x16x8xf32>,
    %c0_57 = arith.constant 0 : index
    %c0_58 = arith.constant 0 : index
    %c0_59 = arith.constant 0 : index
    %146 = vector.load %arg19[%c0_57, %c0_58, %c0_59] : memref<4x16x32xf32, #tpu.memory_space<vmem>>, vector<4x16x32xf32>
    %147 = vector.shape_cast %146 : vector<4x16x32xf32> to vector<64x32xf32>
    %148 = arith.truncf %147 : vector<64x32xf32> to vector<64x32xbf16>
    %c0_60 = arith.constant 0 : index
    %c0_61 = arith.constant 0 : index
    %149 = vector.load %arg12[%c0_60, %c0_61] : memref<32x32xbf16, #tpu.memory_space<vmem>>, vector<32x32xbf16>
    %cst_62 = arith.constant dense<0.000000e+00> : vector<64x32xf32>
    %150 = tpu.matmul %148, %149, %cst_62 {dimension_numbers = #tpu.dot_dimension_numbers<[1], [0], [0], [1], [0, 0, 1, 1], [], []>} : vector<64x32xbf16>, vector<32x32xbf16>, vector<64x32xf32> -> vector<64x32xf32>
    %151 = arith.addf %150, %20 : vector<64x32xf32>
    %cst_63 = arith.constant dense<0.000000e+00> : vector<64xf32>
    %152 = vector.multi_reduction <add>, %151, %cst_63 [1] : vector<64x32xf32> to vector<64xf32>
    %153 = vector.shape_cast %152 : vector<64xf32> to vector<64x1xf32>
    %cst_64 = arith.constant 3.200000e+01 : f32
    %154 = vector.broadcast %cst_64 : f32 to vector<64x1xf32>
    %155 = arith.divf %153, %154 : vector<64x1xf32>
    %156 = vector.broadcast %155 : vector<64x1xf32> to vector<64x32xf32>
    %157 = arith.subf %151, %156 : vector<64x32xf32>
    %158 = arith.mulf %157, %157 : vector<64x32xf32>
    %cst_65 = arith.constant dense<0.000000e+00> : vector<64xf32>
    %159 = vector.multi_reduction <add>, %158, %cst_65 [1] : vector<64x32xf32> to vector<64xf32>
    %160 = vector.shape_cast %159 : vector<64xf32> to vector<64x1xf32>
    %cst_66 = arith.constant 3.200000e+01 : f32
    %161 = vector.broadcast %cst_66 : f32 to vector<64x1xf32>
    %162 = arith.divf %160, %161 : vector<64x1xf32>
    %cst_67 = arith.constant 9.99999974E-6 : f32
    %163 = vector.broadcast %cst_67 : f32 to vector<64x1xf32>
    %164 = arith.addf %162, %163 : vector<64x1xf32>
    %165 = math.rsqrt %164 : vector<64x1xf32>
    %166 = vector.broadcast %165 : vector<64x1xf32> to vector<64x32xf32>
    %167 = arith.mulf %157, %166 : vector<64x32xf32>
    %c0_68 = arith.constant 0 : index
    %c0_69 = arith.constant 0 : index
    %168 = vector.load %arg13[%c0_68, %c0_69] : memref<1x32xf32, #tpu.memory_space<vmem>>, vector<1x32xf32>
    %169 = vector.broadcast %168 : vector<1x32xf32> to vector<64x32xf32>
    %170 = arith.mulf %167, %169 : vector<64x32xf32>
    %c0_70 = arith.constant 0 : index
    %c0_71 = arith.constant 0 : index
    %171 = vector.load %arg14[%c0_70, %c0_71] : memref<1x32xf32, #tpu.memory_space<vmem>>, vector<1x32xf32>
    %172 = vector.broadcast %171 : vector<1x32xf32> to vector<64x32xf32>
    %173 = arith.addf %170, %172 : vector<64x32xf32>
    %174 = arith.truncf %173 : vector<64x32xf32> to vector<64x32xbf16>
    %c0_72 = arith.constant 0 : index
    %c0_73 = arith.constant 0 : index
    %175 = vector.load %arg15[%c0_72, %c0_73] : memref<32x64xbf16, #tpu.memory_space<vmem>>, vector<32x64xbf16>
    %cst_74 = arith.constant dense<0.000000e+00> : vector<64x64xf32>
    %176 = tpu.matmul %174, %175, %cst_74 {dimension_numbers = #tpu.dot_dimension_numbers<[1], [0], [0], [1], [0, 0, 1, 1], [], []>} : vector<64x32xbf16>, vector<32x64xbf16>, vector<64x64xf32> -> vector<64x64xf32>
    %cst_75 = arith.constant 0.000000e+00 : f32
    %177 = vector.broadcast %cst_75 : f32 to vector<64x64xf32>
    %178 = arith.maximumf %176, %177 : vector<64x64xf32>
    %179 = arith.truncf %178 : vector<64x64xf32> to vector<64x64xbf16>
    %c0_76 = arith.constant 0 : index
    %c0_77 = arith.constant 0 : index
    %180 = vector.load %arg16[%c0_76, %c0_77] : memref<64x32xbf16, #tpu.memory_space<vmem>>, vector<64x32xbf16>
    %cst_78 = arith.constant dense<0.000000e+00> : vector<64x32xf32>
    %181 = tpu.matmul %179, %180, %cst_78 {dimension_numbers = #tpu.dot_dimension_numbers<[1], [0], [0], [1], [0, 0, 1, 1], [], []>} : vector<64x64xbf16>, vector<64x32xbf16>, vector<64x32xf32> -> vector<64x32xf32>
    %182 = arith.addf %181, %151 : vector<64x32xf32>
    %183 = arith.truncf %182 : vector<64x32xf32> to vector<64x32xbf16>
    %c0_79 = arith.constant 0 : index
    %c0_80 = arith.constant 0 : index
    %184 = vector.load %arg17[%c0_79, %c0_80] : memref<32x4xbf16, #tpu.memory_space<vmem>>, vector<32x4xbf16>
    %cst_81 = arith.constant dense<0.000000e+00> : vector<64x4xf32>
    %185 = tpu.matmul %183, %184, %cst_81 {dimension_numbers = #tpu.dot_dimension_numbers<[1], [0], [0], [1], [0, 0, 1, 1], [], []>} : vector<64x32xbf16>, vector<32x4xbf16>, vector<64x4xf32> -> vector<64x4xf32>
    %c0_82 = arith.constant 0 : index
    %c0_83 = arith.constant 0 : index
    %186 = vector.load %arg18[%c0_82, %c0_83] : memref<64x4xf32, #tpu.memory_space<vmem>>, vector<64x4xf32>
    tpu.vector_store %arg18[%c0_82, %c0_83], %185 {strides = array<i32>} : memref<64x4xf32, #tpu.memory_space<vmem>>, vector<64x4xf32>,
    return
  }
  func.func @transform_0(%arg0: i32) -> (i32, i32) {
    %c0_i32 = arith.constant 0 : i32
    %c0_i32_0 = arith.constant 0 : i32
    return %arg0, %c0_i32 : i32, i32
  }
  func.func @transform_1(%arg0: i32) -> (i32, i32) {
    %c0_i32 = arith.constant 0 : i32
    %c0_i32_0 = arith.constant 0 : i32
    %c0_i32_1 = arith.constant 0 : i32
    return %c0_i32, %c0_i32_0 : i32, i32
  }
  func.func @transform_2(%arg0: i32) -> (i32, i32) {
    %c0_i32 = arith.constant 0 : i32
    %c0_i32_0 = arith.constant 0 : i32
    %c0_i32_1 = arith.constant 0 : i32
    return %c0_i32, %c0_i32_0 : i32, i32
  }
  func.func @transform_3(%arg0: i32) -> (i32, i32) {
    %c0_i32 = arith.constant 0 : i32
    %c0_i32_0 = arith.constant 0 : i32
    %c0_i32_1 = arith.constant 0 : i32
    return %c0_i32, %c0_i32_0 : i32, i32
  }
  func.func @transform_4(%arg0: i32) -> (i32, i32) {
    %c0_i32 = arith.constant 0 : i32
    %c0_i32_0 = arith.constant 0 : i32
    %c0_i32_1 = arith.constant 0 : i32
    return %c0_i32, %c0_i32_0 : i32, i32
  }
  func.func @transform_5(%arg0: i32) -> (i32, i32) {
    %c0_i32 = arith.constant 0 : i32
    %c0_i32_0 = arith.constant 0 : i32
    %c0_i32_1 = arith.constant 0 : i32
    return %c0_i32, %c0_i32_0 : i32, i32
  }
  func.func @transform_6(%arg0: i32) -> (i32, i32) {
    %c0_i32 = arith.constant 0 : i32
    %c0_i32_0 = arith.constant 0 : i32
    %c0_i32_1 = arith.constant 0 : i32
    return %c0_i32, %c0_i32_0 : i32, i32
  }
  func.func @transform_7(%arg0: i32) -> (i32, i32) {
    %c0_i32 = arith.constant 0 : i32
    %c0_i32_0 = arith.constant 0 : i32
    %c0_i32_1 = arith.constant 0 : i32
    return %c0_i32, %c0_i32_0 : i32, i32
  }
  func.func @transform_8(%arg0: i32) -> (i32, i32) {
    %c0_i32 = arith.constant 0 : i32
    %c0_i32_0 = arith.constant 0 : i32
    %c0_i32_1 = arith.constant 0 : i32
    return %c0_i32, %c0_i32_0 : i32, i32
  }
  func.func @transform_9(%arg0: i32) -> (i32, i32) {
    %c0_i32 = arith.constant 0 : i32
    %c0_i32_0 = arith.constant 0 : i32
    %c0_i32_1 = arith.constant 0 : i32
    return %c0_i32, %c0_i32_0 : i32, i32
  }
  func.func @transform_10(%arg0: i32) -> (i32, i32) {
    %c0_i32 = arith.constant 0 : i32
    %c0_i32_0 = arith.constant 0 : i32
    %c0_i32_1 = arith.constant 0 : i32
    return %c0_i32, %c0_i32_0 : i32, i32
  }
  func.func @transform_11(%arg0: i32) -> (i32, i32) {
    %c0_i32 = arith.constant 0 : i32
    %c0_i32_0 = arith.constant 0 : i32
    %c0_i32_1 = arith.constant 0 : i32
    return %c0_i32, %c0_i32_0 : i32, i32
  }
  func.func @transform_12(%arg0: i32) -> (i32, i32) {
    %c0_i32 = arith.constant 0 : i32
    %c0_i32_0 = arith.constant 0 : i32
    %c0_i32_1 = arith.constant 0 : i32
    return %c0_i32, %c0_i32_0 : i32, i32
  }
  func.func @transform_13(%arg0: i32) -> (i32, i32) {
    %c0_i32 = arith.constant 0 : i32
    %c0_i32_0 = arith.constant 0 : i32
    %c0_i32_1 = arith.constant 0 : i32
    return %c0_i32, %c0_i32_0 : i32, i32
  }
  func.func @transform_14(%arg0: i32) -> (i32, i32) {
    %c0_i32 = arith.constant 0 : i32
    %c0_i32_0 = arith.constant 0 : i32
    %c0_i32_1 = arith.constant 0 : i32
    return %c0_i32, %c0_i32_0 : i32, i32
  }
  func.func @transform_15(%arg0: i32) -> (i32, i32) {
    %c0_i32 = arith.constant 0 : i32
    %c0_i32_0 = arith.constant 0 : i32
    %c0_i32_1 = arith.constant 0 : i32
    return %c0_i32, %c0_i32_0 : i32, i32
  }
  func.func @transform_16(%arg0: i32) -> (i32, i32) {
    %c0_i32 = arith.constant 0 : i32
    %c0_i32_0 = arith.constant 0 : i32
    %c0_i32_1 = arith.constant 0 : i32
    return %c0_i32, %c0_i32_0 : i32, i32
  }
  func.func @transform_17(%arg0: i32) -> (i32, i32) {
    %c0_i32 = arith.constant 0 : i32
    %c0_i32_0 = arith.constant 0 : i32
    return %arg0, %c0_i32 : i32, i32
  }
}

</mosaic_0001>

<llo_original>
// kernel: tpu_custom_call.1
$region0: #{tpu_custom_call.1}
  #allocation0 [shape = 'u32[]', space=smem, size = 0x4, offset = 0x4, fixed_abs, tag = 'smem constant byte address 0x4 - core index']
  #allocation1 [shape = 'u32[144,128]{1,0:T(1,128)}', space=vmem, size = 0x12000, scoped, tag = 'internal scratch']
  #allocation2 [shape = 'f32[4,16,32]{2,1,0:T(8,128)}', space=vmem, size = 0x8000, scoped, tag = 'scratch operand']
  %s0 = inlined_call_operand.vmem [shape: bf16[128,4], index: 0, kind: input, shape index: {}]
  %s1 = inlined_call_operand.vmem [shape: f32[16,1], index: 1, kind: input, shape index: {}]
  %s2 = inlined_call_operand.vmem [shape: f32[16,1], index: 2, kind: input, shape index: {}]
  %s3 = inlined_call_operand.vmem [shape: f32[1,16], index: 3, kind: input, shape index: {}]
  %s4 = inlined_call_operand.vmem [shape: f32[1,16], index: 4, kind: input, shape index: {}]
  %s5 = inlined_call_operand.vmem [shape: bf16[4,32], index: 5, kind: input, shape index: {}]
  %s6 = inlined_call_operand.vmem [shape: f32[1,32], index: 6, kind: input, shape index: {}]
  %s7 = inlined_call_operand.vmem [shape: f32[1,32], index: 7, kind: input, shape index: {}]
  %s8 = inlined_call_operand.vmem [shape: bf16[32,32], index: 8, kind: input, shape index: {}]
  %s9 = inlined_call_operand.vmem [shape: bf16[32,32], index: 9, kind: input, shape index: {}]
  %s10 = inlined_call_operand.vmem [shape: bf16[32,32], index: 10, kind: input, shape index: {}]
  %s11 = inlined_call_operand.vmem [shape: bf16[32,32], index: 11, kind: input, shape index: {}]
  %s12 = inlined_call_operand.vmem [shape: f32[1,32], index: 12, kind: input, shape index: {}]
  %s13 = inlined_call_operand.vmem [shape: f32[1,32], index: 13, kind: input, shape index: {}]
  %s14 = inlined_call_operand.vmem [shape: bf16[32,64], index: 14, kind: input, shape index: {}]
  %s15 = inlined_call_operand.vmem [shape: bf16[64,32], index: 15, kind: input, shape index: {}]
  %s16 = inlined_call_operand.vmem [shape: bf16[32,4], index: 16, kind: input, shape index: {}]
  %s17 = inlined_call_operand.vmem [shape: f32[128,4], index: 17, kind: output, shape index: {}]
  %s18 = sld [smem:[#allocation0]]
  $region101: #{tpu_custom_call.1} parent=0
    _
  %s20 = ssub.s32 1, %s18
  %s21 = scalar_select 0, %s20, %s18
  loop: start=0, step=1, limit=4
  $region2: #{tpu_custom_call.1} parent=0 // loop_pre_header
    _
  $region3: #{tpu_custom_call.1} parent=0 // loop_header
    %s23 = sphi 0, %s27
    %p24 = scmp.ge.s32.totalorder %s23, 4
    %s33 = sphi 0, %s35
    %s36 = sphi 0, %s33
    %s37 = sphi 0, %s36
    %s53 = sphi 0, %s37
    %s57 = sphi 0, %s57
    %s59 = sphi 0, %s57
    %s60 = sphi 0, %s59
    %s74 = sphi 0, %s60
    %s78 = sphi 0, %s78
    %s80 = sphi 0, %s78
    %s81 = sphi 0, %s80
    %s95 = sphi 0, %s81
    %s99 = sphi 0, %s99
    %s101 = sphi 0, %s99
    %s102 = sphi 0, %s101
    %s116 = sphi 0, %s102
    %s120 = sphi 0, %s120
    %s122 = sphi 0, %s120
    %s123 = sphi 0, %s122
    %s137 = sphi 0, %s123
    %s141 = sphi 0, %s141
    %s143 = sphi 0, %s141
    %s144 = sphi 0, %s143
    %s158 = sphi 0, %s144
    %s162 = sphi 0, %s162
    %s164 = sphi 0, %s162
    %s165 = sphi 0, %s164
    %s179 = sphi 0, %s165
    %s183 = sphi 0, %s183
    %s185 = sphi 0, %s183
    %s186 = sphi 0, %s185
    %s200 = sphi 0, %s186
    %s204 = sphi 0, %s204
    %s206 = sphi 0, %s204
    %s207 = sphi 0, %s206
    %s221 = sphi 0, %s207
    %s225 = sphi 0, %s225
    %s227 = sphi 0, %s225
    %s228 = sphi 0, %s227
    %s242 = sphi 0, %s228
    %s246 = sphi 0, %s246
    %s248 = sphi 0, %s246
    %s249 = sphi 0, %s248
    %s263 = sphi 0, %s249
    %s267 = sphi 0, %s267
    %s269 = sphi 0, %s267
    %s270 = sphi 0, %s269
    %s284 = sphi 0, %s270
    %s288 = sphi 0, %s288
    %s290 = sphi 0, %s288
    %s291 = sphi 0, %s290
    %s305 = sphi 0, %s291
    %s309 = sphi 0, %s309
    %s311 = sphi 0, %s309
    %s312 = sphi 0, %s311
    %s326 = sphi 0, %s312
    %s330 = sphi 0, %s330
    %s332 = sphi 0, %s330
    %s333 = sphi 0, %s332
    %s347 = sphi 0, %s333
    %s351 = sphi 0, %s351
    %s353 = sphi 0, %s351
    %s354 = sphi 0, %s353
    %s368 = sphi 0, %s354
    %s372 = sphi 0, %s372
    %s374 = sphi 0, %s372
    %s375 = sphi 0, %s374
    %s389 = sphi 0, %s375
    %s395 = sphi 0, %s397
    %s398 = sphi 0, %s395
    %s399 = sphi 0, %s398
    %s415 = sphi 0, %s399
  $region4: #{tpu_custom_call.1} parent=0 // loop_header_branch
    %26 = sbr.rel (%p24) target = $region8
  $region5: #{tpu_custom_call.1} parent=0 // loop_body
    %s28 = ssub.s32 %s23, 1
    %s29 = ssub.s32 %s23, 2
    %s30 = sadd.s32 %s23, 1
    %s31 = ssub.s32 %s23, %s30
    %p32 = scmp.eq.s32.totalorder %s31, 0
    %s34 = sadd.s32 %s33, 1
    %s35 = scalar_select %p32, %s33, %s34
    %p38 = pneg %p32
    %p39 = scmp.eq.s32.totalorder %s23, 1
    %p40 = por %p38, %p39
    %p41 = scmp.ne.s32.totalorder %s33, %s36
    %p42 = scmp.eq.s32.totalorder %s23, 0
    %p43 = por %p41, %p42
    %p44 = scmp.ne.s32.totalorder %s33, %s36
    %p45 = scmp.eq.s32.totalorder %s28, 1
    %p46 = por %p44, %p45
    %p47 = scmp.ne.s32.totalorder %s36, %s37
    %p48 = scmp.eq.s32.totalorder %s28, 0
    %p49 = por %p47, %p48
    %p50 = scmp.ne.s32.totalorder %s36, %s37
    %p51 = scmp.eq.s32.totalorder %s29, 1
    %p52 = por %p50, %p51
    %p54 = scmp.ne.s32.totalorder %s37, %s53
    %p55 = scmp.eq.s32.totalorder %s29, 0
    %p56 = por %p54, %p55
    %s58 = sadd.s32 %s57, 1
    %p61 = scmp.eq.s32.totalorder %s23, 1
    %p62 = scmp.ne.s32.totalorder %s57, %s59
    %p63 = scmp.eq.s32.totalorder %s23, 0
    %p64 = por %p62, %p63
    %p65 = scmp.ne.s32.totalorder %s57, %s59
    %p66 = scmp.eq.s32.totalorder %s28, 1
    %p67 = por %p65, %p66
    %p68 = scmp.ne.s32.totalorder %s59, %s60
    %p69 = scmp.eq.s32.totalorder %s28, 0
    %p70 = por %p68, %p69
    %p71 = scmp.ne.s32.totalorder %s59, %s60
    %p72 = scmp.eq.s32.totalorder %s29, 1
    %p73 = por %p71, %p72
    %p75 = scmp.ne.s32.totalorder %s60, %s74
    %p76 = scmp.eq.s32.totalorder %s29, 0
    %p77 = por %p75, %p76
    %s79 = sadd.s32 %s78, 1
    %p82 = scmp.eq.s32.totalorder %s23, 1
    %p83 = scmp.ne.s32.totalorder %s78, %s80
    %p84 = scmp.eq.s32.totalorder %s23, 0
    %p85 = por %p83, %p84
    %p86 = scmp.ne.s32.totalorder %s78, %s80
    %p87 = scmp.eq.s32.totalorder %s28, 1
    %p88 = por %p86, %p87
    %p89 = scmp.ne.s32.totalorder %s80, %s81
    %p90 = scmp.eq.s32.totalorder %s28, 0
    %p91 = por %p89, %p90
    %p92 = scmp.ne.s32.totalorder %s80, %s81
    %p93 = scmp.eq.s32.totalorder %s29, 1
    %p94 = por %p92, %p93
    %p96 = scmp.ne.s32.totalorder %s81, %s95
    %p97 = scmp.eq.s32.totalorder %s29, 0
    %p98 = por %p96, %p97
    %s100 = sadd.s32 %s99, 1
    %p103 = scmp.eq.s32.totalorder %s23, 1
    %p104 = scmp.ne.s32.totalorder %s99, %s101
    %p105 = scmp.eq.s32.totalorder %s23, 0
    %p106 = por %p104, %p105
    %p107 = scmp.ne.s32.totalorder %s99, %s101
    %p108 = scmp.eq.s32.totalorder %s28, 1
    %p109 = por %p107, %p108
    %p110 = scmp.ne.s32.totalorder %s101, %s102
    %p111 = scmp.eq.s32.totalorder %s28, 0
    %p112 = por %p110, %p111
    %p113 = scmp.ne.s32.totalorder %s101, %s102
    %p114 = scmp.eq.s32.totalorder %s29, 1
    %p115 = por %p113, %p114
    %p117 = scmp.ne.s32.totalorder %s102, %s116
    %p118 = scmp.eq.s32.totalorder %s29, 0
    %p119 = por %p117, %p118
    %s121 = sadd.s32 %s120, 1
    %p124 = scmp.eq.s32.totalorder %s23, 1
    %p125 = scmp.ne.s32.totalorder %s120, %s122
    %p126 = scmp.eq.s32.totalorder %s23, 0
    %p127 = por %p125, %p126
    %p128 = scmp.ne.s32.totalorder %s120, %s122
    %p129 = scmp.eq.s32.totalorder %s28, 1
    %p130 = por %p128, %p129
    %p131 = scmp.ne.s32.totalorder %s122, %s123
    %p132 = scmp.eq.s32.totalorder %s28, 0
    %p133 = por %p131, %p132
    %p134 = scmp.ne.s32.totalorder %s122, %s123
    %p135 = scmp.eq.s32.totalorder %s29, 1
    %p136 = por %p134, %p135
    %p138 = scmp.ne.s32.totalorder %s123, %s137
    %p139 = scmp.eq.s32.totalorder %s29, 0
    %p140 = por %p138, %p139
    %s142 = sadd.s32 %s141, 1
    %p145 = scmp.eq.s32.totalorder %s23, 1
    %p146 = scmp.ne.s32.totalorder %s141, %s143
    %p147 = scmp.eq.s32.totalorder %s23, 0
    %p148 = por %p146, %p147
    %p149 = scmp.ne.s32.totalorder %s141, %s143
    %p150 = scmp.eq.s32.totalorder %s28, 1
    %p151 = por %p149, %p150
    %p152 = scmp.ne.s32.totalorder %s143, %s144
    %p153 = scmp.eq.s32.totalorder %s28, 0
    %p154 = por %p152, %p153
    %p155 = scmp.ne.s32.totalorder %s143, %s144
    %p156 = scmp.eq.s32.totalorder %s29, 1
    %p157 = por %p155, %p156
    %p159 = scmp.ne.s32.totalorder %s144, %s158
    %p160 = scmp.eq.s32.totalorder %s29, 0
    %p161 = por %p159, %p160
    %s163 = sadd.s32 %s162, 1
    %p166 = scmp.eq.s32.totalorder %s23, 1
    %p167 = scmp.ne.s32.totalorder %s162, %s164
    %p168 = scmp.eq.s32.totalorder %s23, 0
    %p169 = por %p167, %p168
    %p170 = scmp.ne.s32.totalorder %s162, %s164
    %p171 = scmp.eq.s32.totalorder %s28, 1
    %p172 = por %p170, %p171
    %p173 = scmp.ne.s32.totalorder %s164, %s165
    %p174 = scmp.eq.s32.totalorder %s28, 0
    %p175 = por %p173, %p174
    %p176 = scmp.ne.s32.totalorder %s164, %s165
    %p177 = scmp.eq.s32.totalorder %s29, 1
    %p178 = por %p176, %p177
    %p180 = scmp.ne.s32.totalorder %s165, %s179
    %p181 = scmp.eq.s32.totalorder %s29, 0
    %p182 = por %p180, %p181
    %s184 = sadd.s32 %s183, 1
    %p187 = scmp.eq.s32.totalorder %s23, 1
    %p188 = scmp.ne.s32.totalorder %s183, %s185
    %p189 = scmp.eq.s32.totalorder %s23, 0
    %p190 = por %p188, %p189
    %p191 = scmp.ne.s32.totalorder %s183, %s185
    %p192 = scmp.eq.s32.totalorder %s28, 1
    %p193 = por %p191, %p192
    %p194 = scmp.ne.s32.totalorder %s185, %s186
    %p195 = scmp.eq.s32.totalorder %s28, 0
    %p196 = por %p194, %p195
    %p197 = scmp.ne.s32.totalorder %s185, %s186
    %p198 = scmp.eq.s32.totalorder %s29, 1
    %p199 = por %p197, %p198
    %p201 = scmp.ne.s32.totalorder %s186, %s200
    %p202 = scmp.eq.s32.totalorder %s29, 0
    %p203 = por %p201, %p202
    %s205 = sadd.s32 %s204, 1
    %p208 = scmp.eq.s32.totalorder %s23, 1
    %p209 = scmp.ne.s32.totalorder %s204, %s206
    %p210 = scmp.eq.s32.totalorder %s23, 0
    %p211 = por %p209, %p210
    %p212 = scmp.ne.s32.totalorder %s204, %s206
    %p213 = scmp.eq.s32.totalorder %s28, 1
    %p214 = por %p212, %p213
    %p215 = scmp.ne.s32.totalorder %s206, %s207
    %p216 = scmp.eq.s32.totalorder %s28, 0
    %p217 = por %p215, %p216
    %p218 = scmp.ne.s32.totalorder %s206, %s207
    %p219 = scmp.eq.s32.totalorder %s29, 1
    %p220 = por %p218, %p219
    %p222 = scmp.ne.s32.totalorder %s207, %s221
    %p223 = scmp.eq.s32.totalorder %s29, 0
    %p224 = por %p222, %p223
    %s226 = sadd.s32 %s225, 1
    %p229 = scmp.eq.s32.totalorder %s23, 1
    %p230 = scmp.ne.s32.totalorder %s225, %s227
    %p231 = scmp.eq.s32.totalorder %s23, 0
    %p232 = por %p230, %p231
    %p233 = scmp.ne.s32.totalorder %s225, %s227
    %p234 = scmp.eq.s32.totalorder %s28, 1
    %p235 = por %p233, %p234
    %p236 = scmp.ne.s32.totalorder %s227, %s228
    %p237 = scmp.eq.s32.totalorder %s28, 0
    %p238 = por %p236, %p237
    %p239 = scmp.ne.s32.totalorder %s227, %s228
    %p240 = scmp.eq.s32.totalorder %s29, 1
    %p241 = por %p239, %p240
    %p243 = scmp.ne.s32.totalorder %s228, %s242
    %p244 = scmp.eq.s32.totalorder %s29, 0
    %p245 = por %p243, %p244
    %s247 = sadd.s32 %s246, 1
    %p250 = scmp.eq.s32.totalorder %s23, 1
    %p251 = scmp.ne.s32.totalorder %s246, %s248
    %p252 = scmp.eq.s32.totalorder %s23, 0
    %p253 = por %p251, %p252
    %p254 = scmp.ne.s32.totalorder %s246, %s248
    %p255 = scmp.eq.s32.totalorder %s28, 1
    %p256 = por %p254, %p255
    %p257 = scmp.ne.s32.totalorder %s248, %s249
    %p258 = scmp.eq.s32.totalorder %s28, 0
    %p259 = por %p257, %p258
    %p260 = scmp.ne.s32.totalorder %s248, %s249
    %p261 = scmp.eq.s32.totalorder %s29, 1
    %p262 = por %p260, %p261
    %p264 = scmp.ne.s32.totalorder %s249, %s263
    %p265 = scmp.eq.s32.totalorder %s29, 0
    %p266 = por %p264, %p265
    %s268 = sadd.s32 %s267, 1
    %p271 = scmp.eq.s32.totalorder %s23, 1
    %p272 = scmp.ne.s32.totalorder %s267, %s269
    %p273 = scmp.eq.s32.totalorder %s23, 0
    %p274 = por %p272, %p273
    %p275 = scmp.ne.s32.totalorder %s267, %s269
    %p276 = scmp.eq.s32.totalorder %s28, 1
    %p277 = por %p275, %p276
    %p278 = scmp.ne.s32.totalorder %s269, %s270
    %p279 = scmp.eq.s32.totalorder %s28, 0
    %p280 = por %p278, %p279
    %p281 = scmp.ne.s32.totalorder %s269, %s270
    %p282 = scmp.eq.s32.totalorder %s29, 1
    %p283 = por %p281, %p282
    %p285 = scmp.ne.s32.totalorder %s270, %s284
    %p286 = scmp.eq.s32.totalorder %s29, 0
    %p287 = por %p285, %p286
    %s289 = sadd.s32 %s288, 1
    %p292 = scmp.eq.s32.totalorder %s23, 1
    %p293 = scmp.ne.s32.totalorder %s288, %s290
    %p294 = scmp.eq.s32.totalorder %s23, 0
    %p295 = por %p293, %p294
    %p296 = scmp.ne.s32.totalorder %s288, %s290
    %p297 = scmp.eq.s32.totalorder %s28, 1
    %p298 = por %p296, %p297
    %p299 = scmp.ne.s32.totalorder %s290, %s291
    %p300 = scmp.eq.s32.totalorder %s28, 0
    %p301 = por %p299, %p300
    %p302 = scmp.ne.s32.totalorder %s290, %s291
    %p303 = scmp.eq.s32.totalorder %s29, 1
    %p304 = por %p302, %p303
    %p306 = scmp.ne.s32.totalorder %s291, %s305
    %p307 = scmp.eq.s32.totalorder %s29, 0
    %p308 = por %p306, %p307
    %s310 = sadd.s32 %s309, 1
    %p313 = scmp.eq.s32.totalorder %s23, 1
    %p314 = scmp.ne.s32.totalorder %s309, %s311
    %p315 = scmp.eq.s32.totalorder %s23, 0
    %p316 = por %p314, %p315
    %p317 = scmp.ne.s32.totalorder %s309, %s311
    %p318 = scmp.eq.s32.totalorder %s28, 1
    %p319 = por %p317, %p318
    %p320 = scmp.ne.s32.totalorder %s311, %s312
    %p321 = scmp.eq.s32.totalorder %s28, 0
    %p322 = por %p320, %p321
    %p323 = scmp.ne.s32.totalorder %s311, %s312
    %p324 = scmp.eq.s32.totalorder %s29, 1
    %p325 = por %p323, %p324
    %p327 = scmp.ne.s32.totalorder %s312, %s326
    %p328 = scmp.eq.s32.totalorder %s29, 0
    %p329 = por %p327, %p328
    %s331 = sadd.s32 %s330, 1
    %p334 = scmp.eq.s32.totalorder %s23, 1
    %p335 = scmp.ne.s32.totalorder %s330, %s332
    %p336 = scmp.eq.s32.totalorder %s23, 0
    %p337 = por %p335, %p336
    %p338 = scmp.ne.s32.totalorder %s330, %s332
    %p339 = scmp.eq.s32.totalorder %s28, 1
    %p340 = por %p338, %p339
    %p341 = scmp.ne.s32.totalorder %s332, %s333
    %p342 = scmp.eq.s32.totalorder %s28, 0
    %p343 = por %p341, %p342
    %p344 = scmp.ne.s32.totalorder %s332, %s333
    %p345 = scmp.eq.s32.totalorder %s29, 1
    %p346 = por %p344, %p345
    %p348 = scmp.ne.s32.totalorder %s333, %s347
    %p349 = scmp.eq.s32.totalorder %s29, 0
    %p350 = por %p348, %p349
    %s352 = sadd.s32 %s351, 1
    %p355 = scmp.eq.s32.totalorder %s23, 1
    %p356 = scmp.ne.s32.totalorder %s351, %s353
    %p357 = scmp.eq.s32.totalorder %s23, 0
    %p358 = por %p356, %p357
    %p359 = scmp.ne.s32.totalorder %s351, %s353
    %p360 = scmp.eq.s32.totalorder %s28, 1
    %p361 = por %p359, %p360
    %p362 = scmp.ne.s32.totalorder %s353, %s354
    %p363 = scmp.eq.s32.totalorder %s28, 0
    %p364 = por %p362, %p363
    %p365 = scmp.ne.s32.totalorder %s353, %s354
    %p366 = scmp.eq.s32.totalorder %s29, 1
    %p367 = por %p365, %p366
    %p369 = scmp.ne.s32.totalorder %s354, %s368
    %p370 = scmp.eq.s32.totalorder %s29, 0
    %p371 = por %p369, %p370
    %s373 = sadd.s32 %s372, 1
    %p376 = scmp.eq.s32.totalorder %s23, 1
    %p377 = scmp.ne.s32.totalorder %s372, %s374
    %p378 = scmp.eq.s32.totalorder %s23, 0
    %p379 = por %p377, %p378
    %p380 = scmp.ne.s32.totalorder %s372, %s374
    %p381 = scmp.eq.s32.totalorder %s28, 1
    %p382 = por %p380, %p381
    %p383 = scmp.ne.s32.totalorder %s374, %s375
    %p384 = scmp.eq.s32.totalorder %s28, 0
    %p385 = por %p383, %p384
    %p386 = scmp.ne.s32.totalorder %s374, %s375
    %p387 = scmp.eq.s32.totalorder %s29, 1
    %p388 = por %p386, %p387
    %p390 = scmp.ne.s32.totalorder %s375, %s389
    %p391 = scmp.eq.s32.totalorder %s29, 0
    %p392 = por %p390, %p391
    %s393 = ssub.s32 %s23, %s30
    %p394 = scmp.eq.s32.totalorder %s393, 0
    %s396 = sadd.s32 %s395, 1
    %s397 = scalar_select %p394, %s395, %s396
    %p400 = pneg %p394
    %p401 = scmp.eq.s32.totalorder %s23, 1
    %p402 = por %p400, %p401
    %p403 = scmp.ne.s32.totalorder %s395, %s398
    %p404 = scmp.eq.s32.totalorder %s23, 0
    %p405 = por %p403, %p404
    %p406 = scmp.ne.s32.totalorder %s395, %s398
    %p407 = scmp.eq.s32.totalorder %s28, 1
    %p408 = por %p406, %p407
    %p409 = scmp.ne.s32.totalorder %s398, %s399
    %p410 = scmp.eq.s32.totalorder %s28, 0
    %p411 = por %p409, %p410
    %p412 = scmp.ne.s32.totalorder %s398, %s399
    %p413 = scmp.eq.s32.totalorder %s29, 1
    %p414 = por %p412, %p413
    %p416 = scmp.ne.s32.totalorder %s399, %s415
    %p417 = scmp.eq.s32.totalorder %s29, 0
    %p418 = por %p416, %p417
    %p419 = scmp.le.s32.totalorder 1, %s23
    %p420 = scmp.lt.s32.totalorder %s23, 3
    %p421 = pnand %p419, %p420
    %p422 = pneg %p421
    // Predicated region
    $region9: #{tpu_custom_call.1} parent=5 // pred_check
      _
    $region10: #{tpu_custom_call.1} parent=5 // pred_check_branch
      %424 = sbr.rel (%p421) target = $region12
    $region11: #{tpu_custom_call.1} parent=5 // pred_region
      %s425 = ssub.s32 %s23, 1
      // Predicated region
      $region13: #{tpu_custom_call.1} parent=11 // pred_check
        %p426 = pneg %p70
      $region14: #{tpu_custom_call.1} parent=11 // pred_check_branch
        %428 = sbr.rel (%p426) target = $region16
      $region15: #{tpu_custom_call.1} parent=11 // pred_region
        _
      $region16: #{tpu_custom_call.1} parent=11 // pred_fallthru
        _
      // Predicated region
      $region17: #{tpu_custom_call.1} parent=11 // pred_check
        %p429 = pneg %p91
      $region18: #{tpu_custom_call.1} parent=11 // pred_check_branch
        %431 = sbr.rel (%p429) target = $region20
      $region19: #{tpu_custom_call.1} parent=11 // pred_region
        _
      $region20: #{tpu_custom_call.1} parent=11 // pred_fallthru
        _
      // Predicated region
      $region21: #{tpu_custom_call.1} parent=11 // pred_check
        %p432 = pneg %p112
      $region22: #{tpu_custom_call.1} parent=11 // pred_check_branch
        %434 = sbr.rel (%p432) target = $region24
      $region23: #{tpu_custom_call.1} parent=11 // pred_region
        _
      $region24: #{tpu_custom_call.1} parent=11 // pred_fallthru
        _
      // Predicated region
      $region25: #{tpu_custom_call.1} parent=11 // pred_check
        %p435 = pneg %p133
      $region26: #{tpu_custom_call.1} parent=11 // pred_check_branch
        %437 = sbr.rel (%p435) target = $region28
      $region27: #{tpu_custom_call.1} parent=11 // pred_region
        _
      $region28: #{tpu_custom_call.1} parent=11 // pred_fallthru
        _
      // Predicated region
      $region29: #{tpu_custom_call.1} parent=11 // pred_check
        %p438 = pneg %p154
      $region30: #{tpu_custom_call.1} parent=11 // pred_check_branch
        %440 = sbr.rel (%p438) target = $region32
      $region31: #{tpu_custom_call.1} parent=11 // pred_region
        _
      $region32: #{tpu_custom_call.1} parent=11 // pred_fallthru
        _
      // Predicated region
      $region33: #{tpu_custom_call.1} parent=11 // pred_check
        %p441 = pneg %p175
      $region34: #{tpu_custom_call.1} parent=11 // pred_check_branch
        %443 = sbr.rel (%p441) target = $region36
      $region35: #{tpu_custom_call.1} parent=11 // pred_region
        _
      $region36: #{tpu_custom_call.1} parent=11 // pred_fallthru
        _
      // Predicated region
      $region37: #{tpu_custom_call.1} parent=11 // pred_check
        %p444 = pneg %p196
      $region38: #{tpu_custom_call.1} parent=11 // pred_check_branch
        %446 = sbr.rel (%p444) target = $region40
      $region39: #{tpu_custom_call.1} parent=11 // pred_region
        _
      $region40: #{tpu_custom_call.1} parent=11 // pred_fallthru
        _
      // Predicated region
      $region41: #{tpu_custom_call.1} parent=11 // pred_check
        %p447 = pneg %p217
      $region42: #{tpu_custom_call.1} parent=11 // pred_check_branch
        %449 = sbr.rel (%p447) target = $region44
      $region43: #{tpu_custom_call.1} parent=11 // pred_region
        _
      $region44: #{tpu_custom_call.1} parent=11 // pred_fallthru
        _
      // Predicated region
      $region45: #{tpu_custom_call.1} parent=11 // pred_check
        %p450 = pneg %p238
      $region46: #{tpu_custom_call.1} parent=11 // pred_check_branch
        %452 = sbr.rel (%p450) target = $region48
      $region47: #{tpu_custom_call.1} parent=11 // pred_region
        _
      $region48: #{tpu_custom_call.1} parent=11 // pred_fallthru
        _
      // Predicated region
      $region49: #{tpu_custom_call.1} parent=11 // pred_check
        %p453 = pneg %p259
      $region50: #{tpu_custom_call.1} parent=11 // pred_check_branch
        %455 = sbr.rel (%p453) target = $region52
      $region51: #{tpu_custom_call.1} parent=11 // pred_region
        _
      $region52: #{tpu_custom_call.1} parent=11 // pred_fallthru
        _
      // Predicated region
      $region53: #{tpu_custom_call.1} parent=11 // pred_check
        %p456 = pneg %p280
      $region54: #{tpu_custom_call.1} parent=11 // pred_check_branch
        %458 = sbr.rel (%p456) target = $region56
      $region55: #{tpu_custom_call.1} parent=11 // pred_region
        _
      $region56: #{tpu_custom_call.1} parent=11 // pred_fallthru
        _
      // Predicated region
      $region57: #{tpu_custom_call.1} parent=11 // pred_check
        %p459 = pneg %p301
      $region58: #{tpu_custom_call.1} parent=11 // pred_check_branch
        %461 = sbr.rel (%p459) target = $region60
      $region59: #{tpu_custom_call.1} parent=11 // pred_region
        _
      $region60: #{tpu_custom_call.1} parent=11 // pred_fallthru
        _
      // Predicated region
      $region61: #{tpu_custom_call.1} parent=11 // pred_check
        %p462 = pneg %p322
      $region62: #{tpu_custom_call.1} parent=11 // pred_check_branch
        %464 = sbr.rel (%p462) target = $region64
      $region63: #{tpu_custom_call.1} parent=11 // pred_region
        _
      $region64: #{tpu_custom_call.1} parent=11 // pred_fallthru
        _
      // Predicated region
      $region65: #{tpu_custom_call.1} parent=11 // pred_check
        %p465 = pneg %p343
      $region66: #{tpu_custom_call.1} parent=11 // pred_check_branch
        %467 = sbr.rel (%p465) target = $region68
      $region67: #{tpu_custom_call.1} parent=11 // pred_region
        _
      $region68: #{tpu_custom_call.1} parent=11 // pred_fallthru
        _
      // Predicated region
      $region69: #{tpu_custom_call.1} parent=11 // pred_check
        %p468 = pneg %p364
      $region70: #{tpu_custom_call.1} parent=11 // pred_check_branch
        %470 = sbr.rel (%p468) target = $region72
      $region71: #{tpu_custom_call.1} parent=11 // pred_region
        _
      $region72: #{tpu_custom_call.1} parent=11 // pred_fallthru
        _
      // Predicated region
      $region73: #{tpu_custom_call.1} parent=11 // pred_check
        %p471 = pneg %p385
      $region74: #{tpu_custom_call.1} parent=11 // pred_check_branch
        %473 = sbr.rel (%p471) target = $region76
      $region75: #{tpu_custom_call.1} parent=11 // pred_region
        _
      $region76: #{tpu_custom_call.1} parent=11 // pred_fallthru
        _
    $region12: #{tpu_custom_call.1} parent=5 // pred_fallthru
      _
    %p474 = scmp.lt.s32.totalorder %s23, 2
    // Predicated region
    $region77: #{tpu_custom_call.1} parent=5 // pred_check
      %p475 = pneg %p474
    $region78: #{tpu_custom_call.1} parent=5 // pred_check_branch
      %477 = sbr.rel (%p475) target = $region80
    $region79: #{tpu_custom_call.1} parent=5 // pred_region
      // Predicated region
      $region81: #{tpu_custom_call.1} parent=79 // pred_check
        %p478 = pneg %p43
      $region82: #{tpu_custom_call.1} parent=79 // pred_check_branch
        %480 = sbr.rel (%p478) target = $region84
      $region83: #{tpu_custom_call.1} parent=79 // pred_region
        %s481 = smul.u32 8, %s23
        %p482 = scmp.lt.s32.totalorder %s481, 15
        %s483 = scalar_select %p482, %s481, 15
        %s484 = smul.addr %s483, 4
        %s485 = scalar_lea.vmem %s0, %s484
        %s486 = smul.u32 8, %s23
      $region84: #{tpu_custom_call.1} parent=79 // pred_fallthru
        _
    $region80: #{tpu_custom_call.1} parent=5 // pred_fallthru
      _
    %p487 = scmp.le.s32.totalorder 1, %s23
    %p488 = scmp.lt.s32.totalorder %s23, 3
    %p489 = pnand %p487, %p488
    %p490 = pneg %p489
    // Predicated region
    $region85: #{tpu_custom_call.1} parent=5 // pred_check
      _
    $region86: #{tpu_custom_call.1} parent=5 // pred_check_branch
      %492 = sbr.rel (%p489) target = $region88
    $region87: #{tpu_custom_call.1} parent=5 // pred_region
      %s493 = ssub.s32 %s23, 1
      %s494 = smul.u32 8, %s28
      %p495 = scmp.lt.s32.totalorder %s494, 15
      %s496 = scalar_select %p495, %s494, 15
      %s497 = smul.addr %s496, 4
      %s498 = scalar_lea.vmem %s0, %s497
      %p499 = pneg %p49
      %p500 = pneg %p46
      %p501 = pneg %p70
      %p502 = pneg %p67
      %p503 = pneg %p91
      %p504 = pneg %p88
      %p505 = pneg %p112
      %p506 = pneg %p109
      %p507 = pneg %p133
      %p508 = pneg %p130
      %p509 = pneg %p154
      %p510 = pneg %p151
      %p511 = pneg %p175
      %p512 = pneg %p172
      %p513 = pneg %p196
      %p514 = pneg %p193
      %p515 = pneg %p217
      %p516 = pneg %p214
      %p517 = pneg %p238
      %p518 = pneg %p235
      %p519 = pneg %p259
      %p520 = pneg %p256
      %p521 = pneg %p280
      %p522 = pneg %p277
      %p523 = pneg %p301
      %p524 = pneg %p298
      %p525 = pneg %p322
      %p526 = pneg %p319
      %p527 = pneg %p343
      %p528 = pneg %p340
      %p529 = pneg %p364
      %p530 = pneg %p361
      %p531 = pneg %p385
      %p532 = pneg %p382
      %p533 = pneg %p411
      %p534 = pneg %p408
      %s535 = smul.u32 8, %s28
      %p536 = scmp.lt.s32.totalorder %s535, 15
      %s537 = scalar_select %p536, %s535, 15
      %s538 = smul.addr %s537, 8
      %s539 = scalar_lea.vmem %s17, %s538
      %s540 = smul.u32 8, %s28
      %p541 = scmp.lt.s32.totalorder %s540, 15
      %s542 = scalar_select %p541, %s540, 15
      %s543 = smul.addr %s542, 4
      %s544 = scalar_lea.vmem %s0, %s543
      %s545 = smul.u32 8, %s28
      %s546 = smul.u32 8, %s28
      %p547 = scmp.lt.s32.totalorder %s546, 15
      %s548 = scalar_select %p547, %s546, 15
      %s549 = smul.addr %s548, 8
      %s550 = scalar_lea.vmem %s17, %s549
      %s551 = smul.u32 8, %s28
      %v553 = vld [vmem:[%s3] sm:$0x1]
      %v554 = vld [vmem:[%s1] sm:$0xff]
      %v555 = vld [vmem:[%s1 + $0x8] sm:$0xff]
      %v557 = vlaneseq
      %v558 = vshrl.u32 %v557, 7
      %v559 = vsub.s32 0, %v558
      %v560 = vrot.slane %v553, %v559
      %563 = vset.pattern.permute.xlu0 0
      %564 = vperm.xlu0 %563, %v554
      %v565 = vpop.permute.xlu0 %564
      %568 = vset.pattern.permute.xlu0 0
      %569 = vperm.xlu0 %568, %v555
      %v570 = vpop.permute.xlu0 %569
      %v572 = vsub.f32 %v560, %v565
      %v573 = vsub.f32 %v560, %v570
      %v574 = vand.u32 2147483647, %v572
      %v575 = vand.u32 2147483647, %v573
      %v576 = vmul.f32 %v574, 2.0
      %v577 = vmul.f32 %v575, 2.0
      %v578 = vld [vmem:[%s4] sm:$0x1]
      %v579 = vld [vmem:[%s2] sm:$0xff]
      %v580 = vld [vmem:[%s2 + $0x8] sm:$0xff]
      %v582 = vlaneseq
      %v583 = vshrl.u32 %v582, 7
      %v584 = vsub.s32 0, %v583
      %v585 = vrot.slane %v578, %v584
      %588 = vset.pattern.permute.xlu0 0
      %589 = vperm.xlu0 %588, %v579
      %v590 = vpop.permute.xlu0 %589
      %593 = vset.pattern.permute.xlu0 0
      %594 = vperm.xlu0 %593, %v580
      %v595 = vpop.permute.xlu0 %594
      %v597 = vsub.f32 %v585, %v590
      %v598 = vsub.f32 %v585, %v595
      %v599 = vand.u32 2147483647, %v597
      %v600 = vand.u32 2147483647, %v598
      %vm601 = vcmp.ge.f32.partialorder %v576, %v599
      %vm602 = vcmp.ge.f32.partialorder %v577, %v600
      %v603 = vsel %vm601, 0.0, -1e+30
      %v604 = vsel %vm602, 0.0, -1e+30
      %v605 = vld [vmem:[%s544] sm:$0xf]
      %v606 = vld [vmem:[%s544 + $0x4] sm:$0xf]
      %v607 = vld [vmem:[%s544 + $0x8] sm:$0xf]
      %v608 = vld [vmem:[%s544 + $0xc] sm:$0xf]
      %v609 = vld [vmem:[%s544 + $0x10] sm:$0xf]
      %v610 = vld [vmem:[%s544 + $0x14] sm:$0xf]
      %v611 = vld [vmem:[%s544 + $0x18] sm:$0xf]
      %v612 = vld [vmem:[%s544 + $0x1c] sm:$0xf]
      %v613 = vld [vmem:[%s5] sm:$0x3]
      %v622 = vunpack.c.l.b16 %v605
      %v623 = vunpack.c.l.b16 %v606
      %v624 = vunpack.c.l.b16 %v607
      %v625 = vunpack.c.l.b16 %v608
      %v626 = vunpack.c.l.b16 %v609
      %v627 = vunpack.c.l.b16 %v610
      %v628 = vunpack.c.l.b16 %v611
      %v629 = vunpack.c.l.b16 %v612
      %v630 = vpack.c.b16 %v623, %v622
      %v631 = vpack.c.b16 %v625, %v624
      %v632 = vpack.c.b16 %v627, %v626
      %v633 = vpack.c.b16 %v629, %v628
      %vm634 = vcmask 31744
      %v636 = vsel %vm634, %v630, 0
      %v639 = vsel %vm634, %v631, 0
      %v642 = vsel %vm634, %v632, 0
      %v645 = vsel %vm634, %v633, 0
      %vm647 = vcmask 1041408
      %v649 = vsel %vm647, %v613, 0
      %651 = vmatprep.subr.bf16.mxu0 0
      %652 = vmatpush1.bf16.msra.mxu0 0
      %653 = vmatprep.subr.bf16.mxu0 0
      %654 = vmatpush1.bf16.msra.mxu0 0
      %655 = vmatprep.subr.bf16.mxu0 0
      %656 = vmatpush1.bf16.msra.mxu0 0
      %657 = vmatprep.subr.bf16.mxu0 0
      %658 = vmatpush1.bf16.msra.mxu0 0
      %659 = vmatprep.subr.bf16.mxu0 0
      %660 = vmatpush1.bf16.msra.mxu0 0
      %661 = vmatprep.subr.bf16.mxu0 0
      %662 = vmatpush1.bf16.msra.mxu0 0
      %663 = vmatprep.subr.bf16.mxu0 0
      %664 = vmatpush1.bf16.msra.mxu0 0
      %665 = vmatprep.subr.bf16.mxu0 0
      %666 = vmatpush1.bf16.msra.mxu0 %v649
      %667 = vmatprep.subr.bf16.mxu0 0
      %668 = vmatpush2.bf16.msra.mxu0 0
      %669 = vmatprep.subr.bf16.mxu0 0
      %670 = vmatpush2.bf16.msra.mxu0 0
      %671 = vmatprep.subr.bf16.mxu0 0
      %672 = vmatpush2.bf16.msra.mxu0 0
      %673 = vmatprep.subr.bf16.mxu0 0
      %674 = vmatpush2.bf16.msra.mxu0 0
      %675 = vmatprep.subr.bf16.mxu0 0
      %676 = vmatpush2.bf16.msra.mxu0 0
      %677 = vmatprep.subr.bf16.mxu0 0
      %678 = vmatpush2.bf16.msra.mxu0 0
      %679 = vmatprep.subr.bf16.mxu0 0
      %680 = vmatpush2.bf16.msra.mxu0 0
      %681 = vmatprep.subr.bf16.mxu0 0
      %682 = vmatpush2.bf16.msra.mxu0 0
      %683 = vmatprep.mubr.bf16.mxu0 0
      %684 = vmatmul.mubr.bf16.gmra.mxu0 %v636
      %v685 = vpop.f32.mrf.mxu0
      %v686 = vadd.f32 0.0, %v685
      %v687 = vpop.f32.mrf.mxu0
      %v688 = vpop.f32.mrf.mxu0
      %v689 = vadd.f32 0.0, %v688
      %v690 = vpop.f32.mrf.mxu0
      %691 = vmatprep.mubr.bf16.mxu0 0
      %692 = vmatmul.mubr.bf16.gmra.mxu0 %v639
      %v693 = vpop.f32.mrf.mxu0
      %v694 = vadd.f32 0.0, %v693
      %v695 = vpop.f32.mrf.mxu0
      %v696 = vpop.f32.mrf.mxu0
      %v697 = vadd.f32 0.0, %v696
      %v698 = vpop.f32.mrf.mxu0
      %699 = vmatprep.mubr.bf16.mxu0 0
      %700 = vmatmul.mubr.bf16.gmra.mxu0 %v642
      %v701 = vpop.f32.mrf.mxu0
      %v702 = vadd.f32 0.0, %v701
      %v703 = vpop.f32.mrf.mxu0
      %v704 = vpop.f32.mrf.mxu0
      %v705 = vadd.f32 0.0, %v704
      %v706 = vpop.f32.mrf.mxu0
      %707 = vmatprep.mubr.bf16.mxu0 0
      %708 = vmatmul.mubr.bf16.gmra.mxu0 %v645
      %v709 = vpop.f32.mrf.mxu0
      %v710 = vadd.f32 0.0, %v709
      %v711 = vpop.f32.mrf.mxu0
      %v712 = vpop.f32.mrf.mxu0
      %v713 = vadd.f32 0.0, %v712
      %v714 = vpop.f32.mrf.mxu0
      %715 = vdwg.mxu0
      %vm716 = vcmask 261120
      %v717 = vsel %vm716, %v686, 0.0
      %718 = vadd.xlane.f32.xlu0 %v717
      %v719 = vpop.xlane.xlu0 %718
      %v720 = vsel %vm716, %v689, 0.0
      %721 = vadd.xlane.f32.xlu0 %v720
      %v722 = vpop.xlane.xlu0 %721
      %v723 = vsel %vm716, %v694, 0.0
      %724 = vadd.xlane.f32.xlu0 %v723
      %v725 = vpop.xlane.xlu0 %724
      %v726 = vsel %vm716, %v697, 0.0
      %727 = vadd.xlane.f32.xlu0 %v726
      %v728 = vpop.xlane.xlu0 %727
      %v729 = vsel %vm716, %v702, 0.0
      %730 = vadd.xlane.f32.xlu0 %v729
      %v731 = vpop.xlane.xlu0 %730
      %v732 = vsel %vm716, %v705, 0.0
      %733 = vadd.xlane.f32.xlu0 %v732
      %v734 = vpop.xlane.xlu0 %733
      %v735 = vsel %vm716, %v710, 0.0
      %736 = vadd.xlane.f32.xlu0 %v735
      %v737 = vpop.xlane.xlu0 %736
      %v738 = vsel %vm716, %v713, 0.0
      %739 = vadd.xlane.f32.xlu0 %v738
      %v740 = vpop.xlane.xlu0 %739
      %v741 = vrcp.pop 32.0
      %v742 = vmul.f32 %v719, %v741
      %v743 = vmul.f32 %v722, %v741
      %v744 = vmul.f32 %v725, %v741
      %v745 = vmul.f32 %v728, %v741
      %v746 = vmul.f32 %v731, %v741
      %v747 = vmul.f32 %v734, %v741
      %v748 = vmul.f32 %v737, %v741
      %v749 = vmul.f32 %v740, %v741
      %v750 = vsub.f32 %v686, %v742
      %v751 = vsub.f32 %v689, %v743
      %v752 = vsub.f32 %v694, %v744
      %v753 = vsub.f32 %v697, %v745
      %v754 = vsub.f32 %v702, %v746
      %v755 = vsub.f32 %v705, %v747
      %v756 = vsub.f32 %v710, %v748
      %v757 = vsub.f32 %v713, %v749
      %v758 = vmul.f32 %v750, %v750
      %v759 = vmul.f32 %v751, %v751
      %v760 = vmul.f32 %v752, %v752
      %v761 = vmul.f32 %v753, %v753
      %v762 = vmul.f32 %v754, %v754
      %v763 = vmul.f32 %v755, %v755
      %v764 = vmul.f32 %v756, %v756
      %v765 = vmul.f32 %v757, %v757
      %v766 = vsel %vm716, %v758, 0.0
      %767 = vadd.xlane.f32.xlu0 %v766
      %v768 = vpop.xlane.xlu0 %767
      %v769 = vsel %vm716, %v759, 0.0
      %770 = vadd.xlane.f32.xlu0 %v769
      %v771 = vpop.xlane.xlu0 %770
      %v772 = vsel %vm716, %v760, 0.0
      %773 = vadd.xlane.f32.xlu0 %v772
      %v774 = vpop.xlane.xlu0 %773
      %v775 = vsel %vm716, %v761, 0.0
      %776 = vadd.xlane.f32.xlu0 %v775
      %v777 = vpop.xlane.xlu0 %776
      %v778 = vsel %vm716, %v762, 0.0
      %779 = vadd.xlane.f32.xlu0 %v778
      %v780 = vpop.xlane.xlu0 %779
      %v781 = vsel %vm716, %v763, 0.0
      %782 = vadd.xlane.f32.xlu0 %v781
      %v783 = vpop.xlane.xlu0 %782
      %v784 = vsel %vm716, %v764, 0.0
      %785 = vadd.xlane.f32.xlu0 %v784
      %v786 = vpop.xlane.xlu0 %785
      %v787 = vsel %vm716, %v765, 0.0
      %788 = vadd.xlane.f32.xlu0 %v787
      %v789 = vpop.xlane.xlu0 %788
      %v790 = vmul.f32 %v768, %v741
      %v791 = vmul.f32 %v771, %v741
      %v792 = vmul.f32 %v774, %v741
      %v793 = vmul.f32 %v777, %v741
      %v794 = vmul.f32 %v780, %v741
      %v795 = vmul.f32 %v783, %v741
      %v796 = vmul.f32 %v786, %v741
      %v797 = vmul.f32 %v789, %v741
      %v798 = vadd.f32 %v790, 1e-05
      %v799 = vadd.f32 %v791, 1e-05
      %v800 = vadd.f32 %v792, 1e-05
      %v801 = vadd.f32 %v793, 1e-05
      %v802 = vadd.f32 %v794, 1e-05
      %v803 = vadd.f32 %v795, 1e-05
      %v804 = vadd.f32 %v796, 1e-05
      %v805 = vadd.f32 %v797, 1e-05
      %v806 = vrsqrt.pop %v798
      %v807 = vrsqrt.pop %v799
      %v808 = vrsqrt.pop %v800
      %v809 = vrsqrt.pop %v801
      %v810 = vrsqrt.pop %v802
      %v811 = vrsqrt.pop %v803
      %v812 = vrsqrt.pop %v804
      %v813 = vrsqrt.pop %v805
      %v814 = vmul.f32 %v750, %v806
      %v815 = vmul.f32 %v751, %v807
      %v816 = vmul.f32 %v752, %v808
      %v817 = vmul.f32 %v753, %v809
      %v818 = vmul.f32 %v754, %v810
      %v819 = vmul.f32 %v755, %v811
      %v820 = vmul.f32 %v756, %v812
      %v821 = vmul.f32 %v757, %v813
      %v822 = vld [vmem:[%s6] sm:$0x1]
      %v824 = vlaneseq
      %v825 = vshrl.u32 %v824, 7
      %v826 = vsub.s32 0, %v825
      %v827 = vrot.slane %v822, %v826
      %v829 = vmul.f32 %v814, %v827
      %v830 = vmul.f32 %v815, %v827
      %v831 = vmul.f32 %v816, %v827
      %v832 = vmul.f32 %v817, %v827
      %v833 = vmul.f32 %v818, %v827
      %v834 = vmul.f32 %v819, %v827
      %v835 = vmul.f32 %v820, %v827
      %v836 = vmul.f32 %v821, %v827
      %v837 = vld [vmem:[%s7] sm:$0x1]
      %v839 = vlaneseq
      %v840 = vshrl.u32 %v839, 7
      %v841 = vsub.s32 0, %v840
      %v842 = vrot.slane %v837, %v841
      %v844 = vadd.f32 %v829, %v842
      %v845 = vadd.f32 %v830, %v842
      %v846 = vadd.f32 %v831, %v842
      %v847 = vadd.f32 %v832, %v842
      %v848 = vadd.f32 %v833, %v842
      %v849 = vadd.f32 %v834, %v842
      %v850 = vadd.f32 %v835, %v842
      %v851 = vadd.f32 %v836, %v842
      %v852 = vpack.c.bf16 %v845, %v844
      %v853 = vpack.c.bf16 %v847, %v846
      %v854 = vpack.c.bf16 %v849, %v848
      %v855 = vpack.c.bf16 %v851, %v850
      %v856 = vpack.c.bf16 %v689, %v686
      %v857 = vpack.c.bf16 %v697, %v694
      %v858 = vpack.c.bf16 %v705, %v702
      %v859 = vpack.c.bf16 %v713, %v710
      %v860 = vld [vmem:[%s8] sm:$0xf]
      %v861 = vld [vmem:[%s8 + $0x4] sm:$0xf]
      %v862 = vld [vmem:[%s8 + $0x8] sm:$0xf]
      %v863 = vld [vmem:[%s8 + $0xc] sm:$0xf]
      %v868 = vunpack.c.l.b16 %v860
      %v869 = vunpack.c.l.b16 %v861
      %v870 = vunpack.c.l.b16 %v862
      %v871 = vunpack.c.l.b16 %v863
      %v872 = vpack.c.b16 %v869, %v868
      %v873 = vpack.c.b16 %v871, %v870
      %v877 = vsel %vm716, %v852, 0
      %v880 = vsel %vm716, %v853, 0
      %v883 = vsel %vm716, %v854, 0
      %v886 = vsel %vm716, %v855, 0
      %888 = vmatprep.subr.bf16.mxu0 0
      %889 = vmatpush1.bf16.msra.mxu0 0
      %890 = vmatprep.subr.bf16.mxu0 0
      %891 = vmatpush1.bf16.msra.mxu0 0
      %892 = vmatprep.subr.bf16.mxu0 0
      %893 = vmatpush1.bf16.msra.mxu0 0
      %894 = vmatprep.subr.bf16.mxu0 0
      %895 = vmatpush1.bf16.msra.mxu0 0
      %896 = vmatprep.subr.bf16.mxu0 0
      %897 = vmatpush1.bf16.msra.mxu0 0
      %898 = vmatprep.subr.bf16.mxu0 0
      %899 = vmatpush1.bf16.msra.mxu0 0
      %900 = vmatprep.subr.bf16.mxu0 0
      %901 = vmatpush1.bf16.msra.mxu0 %v873
      %902 = vmatprep.subr.bf16.mxu0 0
      %903 = vmatpush1.bf16.msra.mxu0 %v872
      %904 = vmatprep.subr.bf16.mxu0 0
      %905 = vmatpush2.bf16.msra.mxu0 0
      %906 = vmatprep.subr.bf16.mxu0 0
      %907 = vmatpush2.bf16.msra.mxu0 0
      %908 = vmatprep.subr.bf16.mxu0 0
      %909 = vmatpush2.bf16.msra.mxu0 0
      %910 = vmatprep.subr.bf16.mxu0 0
      %911 = vmatpush2.bf16.msra.mxu0 0
      %912 = vmatprep.subr.bf16.mxu0 0
      %913 = vmatpush2.bf16.msra.mxu0 0
      %914 = vmatprep.subr.bf16.mxu0 0
      %915 = vmatpush2.bf16.msra.mxu0 0
      %916 = vmatprep.subr.bf16.mxu0 0
      %917 = vmatpush2.bf16.msra.mxu0 0
      %918 = vmatprep.subr.bf16.mxu0 0
      %919 = vmatpush2.bf16.msra.mxu0 0
      %920 = vmatprep.mubr.bf16.mxu0 0
      %921 = vmatmul.mubr.bf16.gmra.mxu0 %v877
      %v922 = vpop.f32.mrf.mxu0
      %v923 = vadd.f32 0.0, %v922
      %v924 = vpop.f32.mrf.mxu0
      %v925 = vpop.f32.mrf.mxu0
      %v926 = vadd.f32 0.0, %v925
      %v927 = vpop.f32.mrf.mxu0
      %928 = vmatprep.mubr.bf16.mxu0 0
      %929 = vmatmul.mubr.bf16.gmra.mxu0 %v880
      %v930 = vpop.f32.mrf.mxu0
      %v931 = vadd.f32 0.0, %v930
      %v932 = vpop.f32.mrf.mxu0
      %v933 = vpop.f32.mrf.mxu0
      %v934 = vadd.f32 0.0, %v933
      %v935 = vpop.f32.mrf.mxu0
      %936 = vmatprep.mubr.bf16.mxu0 0
      %937 = vmatmul.mubr.bf16.gmra.mxu0 %v883
      %v938 = vpop.f32.mrf.mxu0
      %v939 = vadd.f32 0.0, %v938
      %v940 = vpop.f32.mrf.mxu0
      %v941 = vpop.f32.mrf.mxu0
      %v942 = vadd.f32 0.0, %v941
      %v943 = vpop.f32.mrf.mxu0
      %944 = vmatprep.mubr.bf16.mxu0 0
      %945 = vmatmul.mubr.bf16.gmra.mxu0 %v886
      %v946 = vpop.f32.mrf.mxu0
      %v947 = vadd.f32 0.0, %v946
      %v948 = vpop.f32.mrf.mxu0
      %v949 = vpop.f32.mrf.mxu0
      %v950 = vadd.f32 0.0, %v949
      %v951 = vpop.f32.mrf.mxu0
      %952 = vdwg.mxu0
      %v953 = vld [vmem:[%s9] sm:$0xf]
      %v954 = vld [vmem:[%s9 + $0x4] sm:$0xf]
      %v955 = vld [vmem:[%s9 + $0x8] sm:$0xf]
      %v956 = vld [vmem:[%s9 + $0xc] sm:$0xf]
      %v961 = vunpack.c.l.b16 %v953
      %v962 = vunpack.c.l.b16 %v954
      %v963 = vunpack.c.l.b16 %v955
      %v964 = vunpack.c.l.b16 %v956
      %v965 = vpack.c.b16 %v962, %v961
      %v966 = vpack.c.b16 %v964, %v963
      %969 = vmatprep.subr.bf16.mxu0 0
      %970 = vmatpush1.bf16.msra.mxu0 0
      %971 = vmatprep.subr.bf16.mxu0 0
      %972 = vmatpush1.bf16.msra.mxu0 0
      %973 = vmatprep.subr.bf16.mxu0 0
      %974 = vmatpush1.bf16.msra.mxu0 0
      %975 = vmatprep.subr.bf16.mxu0 0
      %976 = vmatpush1.bf16.msra.mxu0 0
      %977 = vmatprep.subr.bf16.mxu0 0
      %978 = vmatpush1.bf16.msra.mxu0 0
      %979 = vmatprep.subr.bf16.mxu0 0
      %980 = vmatpush1.bf16.msra.mxu0 0
      %981 = vmatprep.subr.bf16.mxu0 0
      %982 = vmatpush1.bf16.msra.mxu0 %v966
      %983 = vmatprep.subr.bf16.mxu0 0
      %984 = vmatpush1.bf16.msra.mxu0 %v965
      %985 = vmatprep.subr.bf16.mxu0 0
      %986 = vmatpush2.bf16.msra.mxu0 0
      %987 = vmatprep.subr.bf16.mxu0 0
      %988 = vmatpush2.bf16.msra.mxu0 0
      %989 = vmatprep.subr.bf16.mxu0 0
      %990 = vmatpush2.bf16.msra.mxu0 0
      %991 = vmatprep.subr.bf16.mxu0 0
      %992 = vmatpush2.bf16.msra.mxu0 0
      %993 = vmatprep.subr.bf16.mxu0 0
      %994 = vmatpush2.bf16.msra.mxu0 0
      %995 = vmatprep.subr.bf16.mxu0 0
      %996 = vmatpush2.bf16.msra.mxu0 0
      %997 = vmatprep.subr.bf16.mxu0 0
      %998 = vmatpush2.bf16.msra.mxu0 0
      %999 = vmatprep.subr.bf16.mxu0 0
      %1000 = vmatpush2.bf16.msra.mxu0 0
      %1001 = vmatprep.mubr.bf16.mxu0 0
      %1002 = vmatmul.mubr.bf16.gmra.mxu0 %v877
      %v1003 = vpop.f32.mrf.mxu0
      %v1004 = vadd.f32 0.0, %v1003
      %v1005 = vpop.f32.mrf.mxu0
      %v1006 = vpop.f32.mrf.mxu0
      %v1007 = vadd.f32 0.0, %v1006
      %v1008 = vpop.f32.mrf.mxu0
      %1009 = vmatprep.mubr.bf16.mxu0 0
      %1010 = vmatmul.mubr.bf16.gmra.mxu0 %v880
      %v1011 = vpop.f32.mrf.mxu0
      %v1012 = vadd.f32 0.0, %v1011
      %v1013 = vpop.f32.mrf.mxu0
      %v1014 = vpop.f32.mrf.mxu0
      %v1015 = vadd.f32 0.0, %v1014
      %v1016 = vpop.f32.mrf.mxu0
      %1017 = vmatprep.mubr.bf16.mxu0 0
      %1018 = vmatmul.mubr.bf16.gmra.mxu0 %v883
      %v1019 = vpop.f32.mrf.mxu0
      %v1020 = vadd.f32 0.0, %v1019
      %v1021 = vpop.f32.mrf.mxu0
      %v1022 = vpop.f32.mrf.mxu0
      %v1023 = vadd.f32 0.0, %v1022
      %v1024 = vpop.f32.mrf.mxu0
      %1025 = vmatprep.mubr.bf16.mxu0 0
      %1026 = vmatmul.mubr.bf16.gmra.mxu0 %v886
      %v1027 = vpop.f32.mrf.mxu0
      %v1028 = vadd.f32 0.0, %v1027
      %v1029 = vpop.f32.mrf.mxu0
      %v1030 = vpop.f32.mrf.mxu0
      %v1031 = vadd.f32 0.0, %v1030
      %v1032 = vpop.f32.mrf.mxu0
      %1033 = vdwg.mxu0
      %v1034 = vld [vmem:[%s10] sm:$0xf]
      %v1035 = vld [vmem:[%s10 + $0x4] sm:$0xf]
      %v1036 = vld [vmem:[%s10 + $0x8] sm:$0xf]
      %v1037 = vld [vmem:[%s10 + $0xc] sm:$0xf]
      %v1042 = vunpack.c.l.b16 %v1034
      %v1043 = vunpack.c.l.b16 %v1035
      %v1044 = vunpack.c.l.b16 %v1036
      %v1045 = vunpack.c.l.b16 %v1037
      %v1046 = vpack.c.b16 %v1043, %v1042
      %v1047 = vpack.c.b16 %v1045, %v1044
      %v1051 = vsel %vm716, %v856, 0
      %v1054 = vsel %vm716, %v857, 0
      %v1057 = vsel %vm716, %v858, 0
      %v1060 = vsel %vm716, %v859, 0
      %1062 = vmatprep.subr.bf16.mxu0 0
      %1063 = vmatpush1.bf16.msra.mxu0 0
      %1064 = vmatprep.subr.bf16.mxu0 0
      %1065 = vmatpush1.bf16.msra.mxu0 0
      %1066 = vmatprep.subr.bf16.mxu0 0
      %1067 = vmatpush1.bf16.msra.mxu0 0
      %1068 = vmatprep.subr.bf16.mxu0 0
      %1069 = vmatpush1.bf16.msra.mxu0 0
      %1070 = vmatprep.subr.bf16.mxu0 0
      %1071 = vmatpush1.bf16.msra.mxu0 0
      %1072 = vmatprep.subr.bf16.mxu0 0
      %1073 = vmatpush1.bf16.msra.mxu0 0
      %1074 = vmatprep.subr.bf16.mxu0 0
      %1075 = vmatpush1.bf16.msra.mxu0 %v1047
      %1076 = vmatprep.subr.bf16.mxu0 0
      %1077 = vmatpush1.bf16.msra.mxu0 %v1046
      %1078 = vmatprep.subr.bf16.mxu0 0
      %1079 = vmatpush2.bf16.msra.mxu0 0
      %1080 = vmatprep.subr.bf16.mxu0 0
      %1081 = vmatpush2.bf16.msra.mxu0 0
      %1082 = vmatprep.subr.bf16.mxu0 0
      %1083 = vmatpush2.bf16.msra.mxu0 0
      %1084 = vmatprep.subr.bf16.mxu0 0
      %1085 = vmatpush2.bf16.msra.mxu0 0
      %1086 = vmatprep.subr.bf16.mxu0 0
      %1087 = vmatpush2.bf16.msra.mxu0 0
      %1088 = vmatprep.subr.bf16.mxu0 0
      %1089 = vmatpush2.bf16.msra.mxu0 0
      %1090 = vmatprep.subr.bf16.mxu0 0
      %1091 = vmatpush2.bf16.msra.mxu0 0
      %1092 = vmatprep.subr.bf16.mxu0 0
      %1093 = vmatpush2.bf16.msra.mxu0 0
      %1094 = vmatprep.mubr.bf16.mxu0 0
      %1095 = vmatmul.mubr.bf16.gmra.mxu0 %v1051
      %v1096 = vpop.f32.mrf.mxu0
      %v1097 = vadd.f32 0.0, %v1096
      %v1098 = vpop.f32.mrf.mxu0
      %v1099 = vpop.f32.mrf.mxu0
      %v1100 = vadd.f32 0.0, %v1099
      %v1101 = vpop.f32.mrf.mxu0
      %1102 = vmatprep.mubr.bf16.mxu0 0
      %1103 = vmatmul.mubr.bf16.gmra.mxu0 %v1054
      %v1104 = vpop.f32.mrf.mxu0
      %v1105 = vadd.f32 0.0, %v1104
      %v1106 = vpop.f32.mrf.mxu0
      %v1107 = vpop.f32.mrf.mxu0
      %v1108 = vadd.f32 0.0, %v1107
      %v1109 = vpop.f32.mrf.mxu0
      %1110 = vmatprep.mubr.bf16.mxu0 0
      %1111 = vmatmul.mubr.bf16.gmra.mxu0 %v1057
      %v1112 = vpop.f32.mrf.mxu0
      %v1113 = vadd.f32 0.0, %v1112
      %v1114 = vpop.f32.mrf.mxu0
      %v1115 = vpop.f32.mrf.mxu0
      %v1116 = vadd.f32 0.0, %v1115
      %v1117 = vpop.f32.mrf.mxu0
      %1118 = vmatprep.mubr.bf16.mxu0 0
      %1119 = vmatmul.mubr.bf16.gmra.mxu0 %v1060
      %v1120 = vpop.f32.mrf.mxu0
      %v1121 = vadd.f32 0.0, %v1120
      %v1122 = vpop.f32.mrf.mxu0
      %v1123 = vpop.f32.mrf.mxu0
      %v1124 = vadd.f32 0.0, %v1123
      %v1125 = vpop.f32.mrf.mxu0
      %1126 = vdwg.mxu0
      %v1127 = vpack.c.bf16 %v926, %v923
      %v1128 = vpack.c.bf16 %v934, %v931
      %v1129 = vpack.c.bf16 %v942, %v939
      %v1130 = vpack.c.bf16 %v950, %v947
      %v1131 = vpack.c.bf16 %v1007, %v1004
      %v1132 = vpack.c.bf16 %v1015, %v1012
      %v1133 = vpack.c.bf16 %v1023, %v1020
      %v1134 = vpack.c.bf16 %v1031, %v1028
      %v1135 = vpack.c.bf16 %v1100, %v1097
      %v1136 = vpack.c.bf16 %v1108, %v1105
      %v1137 = vpack.c.bf16 %v1116, %v1113
      %v1138 = vpack.c.bf16 %v1124, %v1121
      %vm1139 = vcmask 64512
      %v1141 = vsel %vm1139, %v1127, 0
      %v1144 = vsel %vm1139, %v1131, 0
      %1146 = vmatprep.subr.bf16.mxu0 0
      %1147 = vmatpush1.bf16.xpose.msra.mxu0 0
      %1148 = vmatprep.subr.bf16.mxu0 0
      %1149 = vmatpush1.bf16.xpose.msra.mxu0 0
      %1150 = vmatprep.subr.bf16.mxu0 0
      %1151 = vmatpush1.bf16.xpose.msra.mxu0 0
      %1152 = vmatprep.subr.bf16.mxu0 0
      %1153 = vmatpush1.bf16.xpose.msra.mxu0 0
      %1154 = vmatprep.subr.bf16.mxu0 0
      %1155 = vmatpush1.bf16.xpose.msra.mxu0 0
      %1156 = vmatprep.subr.bf16.mxu0 0
      %1157 = vmatpush1.bf16.xpose.msra.mxu0 0
      %1158 = vmatprep.subr.bf16.mxu0 0
      %1159 = vmatpush1.bf16.xpose.msra.mxu0 0
      %1160 = vmatprep.subr.bf16.mxu0 0
      %1161 = vmatpush1.bf16.xpose.msra.mxu0 %v1144
      %1162 = vmatprep.subr.bf16.mxu0 0
      %1163 = vmatpush2.bf16.xpose.msra.mxu0 0
      %1164 = vmatprep.subr.bf16.mxu0 0
      %1165 = vmatpush2.bf16.xpose.msra.mxu0 0
      %1166 = vmatprep.subr.bf16.mxu0 0
      %1167 = vmatpush2.bf16.xpose.msra.mxu0 0
      %1168 = vmatprep.subr.bf16.mxu0 0
      %1169 = vmatpush2.bf16.xpose.msra.mxu0 0
      %1170 = vmatprep.subr.bf16.mxu0 0
      %1171 = vmatpush2.bf16.xpose.msra.mxu0 0
      %1172 = vmatprep.subr.bf16.mxu0 0
      %1173 = vmatpush2.bf16.xpose.msra.mxu0 0
      %1174 = vmatprep.subr.bf16.mxu0 0
      %1175 = vmatpush2.bf16.xpose.msra.mxu0 0
      %1176 = vmatprep.subr.bf16.mxu0 0
      %1177 = vmatpush2.bf16.xpose.msra.mxu0 0
      %1178 = vmatprep.mubr.bf16.mxu0 0
      %1179 = vmatmul.mubr.bf16.gmra.mxu0 %v1141
      %v1180 = vpop.f32.mrf.mxu0
      %v1181 = vadd.f32 %v603, %v1180
      %v1182 = vpop.f32.mrf.mxu0
      %v1183 = vpop.f32.mrf.mxu0
      %v1184 = vadd.f32 %v604, %v1183
      %v1185 = vpop.f32.mrf.mxu0
      %1186 = vdwg.mxu0
      %v1188 = vsel %vm1139, %v1128, 0
      %v1191 = vsel %vm1139, %v1132, 0
      %1193 = vmatprep.subr.bf16.mxu0 0
      %1194 = vmatpush1.bf16.xpose.msra.mxu0 0
      %1195 = vmatprep.subr.bf16.mxu0 0
      %1196 = vmatpush1.bf16.xpose.msra.mxu0 0
      %1197 = vmatprep.subr.bf16.mxu0 0
      %1198 = vmatpush1.bf16.xpose.msra.mxu0 0
      %1199 = vmatprep.subr.bf16.mxu0 0
      %1200 = vmatpush1.bf16.xpose.msra.mxu0 0
      %1201 = vmatprep.subr.bf16.mxu0 0
      %1202 = vmatpush1.bf16.xpose.msra.mxu0 0
      %1203 = vmatprep.subr.bf16.mxu0 0
      %1204 = vmatpush1.bf16.xpose.msra.mxu0 0
      %1205 = vmatprep.subr.bf16.mxu0 0
      %1206 = vmatpush1.bf16.xpose.msra.mxu0 0
      %1207 = vmatprep.subr.bf16.mxu0 0
      %1208 = vmatpush1.bf16.xpose.msra.mxu0 %v1191
      %1209 = vmatprep.subr.bf16.mxu0 0
      %1210 = vmatpush2.bf16.xpose.msra.mxu0 0
      %1211 = vmatprep.subr.bf16.mxu0 0
      %1212 = vmatpush2.bf16.xpose.msra.mxu0 0
      %1213 = vmatprep.subr.bf16.mxu0 0
      %1214 = vmatpush2.bf16.xpose.msra.mxu0 0
      %1215 = vmatprep.subr.bf16.mxu0 0
      %1216 = vmatpush2.bf16.xpose.msra.mxu0 0
      %1217 = vmatprep.subr.bf16.mxu0 0
      %1218 = vmatpush2.bf16.xpose.msra.mxu0 0
      %1219 = vmatprep.subr.bf16.mxu0 0
      %1220 = vmatpush2.bf16.xpose.msra.mxu0 0
      %1221 = vmatprep.subr.bf16.mxu0 0
      %1222 = vmatpush2.bf16.xpose.msra.mxu0 0
      %1223 = vmatprep.subr.bf16.mxu0 0
      %1224 = vmatpush2.bf16.xpose.msra.mxu0 0
      %1225 = vmatprep.mubr.bf16.mxu0 0
      %1226 = vmatmul.mubr.bf16.gmra.mxu0 %v1188
      %v1227 = vpop.f32.mrf.mxu0
      %v1228 = vadd.f32 %v603, %v1227
      %v1229 = vpop.f32.mrf.mxu0
      %v1230 = vpop.f32.mrf.mxu0
      %v1231 = vadd.f32 %v604, %v1230
      %v1232 = vpop.f32.mrf.mxu0
      %1233 = vdwg.mxu0
      %v1235 = vsel %vm1139, %v1129, 0
      %v1238 = vsel %vm1139, %v1133, 0
      %1240 = vmatprep.subr.bf16.mxu0 0
      %1241 = vmatpush1.bf16.xpose.msra.mxu0 0
      %1242 = vmatprep.subr.bf16.mxu0 0
      %1243 = vmatpush1.bf16.xpose.msra.mxu0 0
      %1244 = vmatprep.subr.bf16.mxu0 0
      %1245 = vmatpush1.bf16.xpose.msra.mxu0 0
      %1246 = vmatprep.subr.bf16.mxu0 0
      %1247 = vmatpush1.bf16.xpose.msra.mxu0 0
      %1248 = vmatprep.subr.bf16.mxu0 0
      %1249 = vmatpush1.bf16.xpose.msra.mxu0 0
      %1250 = vmatprep.subr.bf16.mxu0 0
      %1251 = vmatpush1.bf16.xpose.msra.mxu0 0
      %1252 = vmatprep.subr.bf16.mxu0 0
      %1253 = vmatpush1.bf16.xpose.msra.mxu0 0
      %1254 = vmatprep.subr.bf16.mxu0 0
      %1255 = vmatpush1.bf16.xpose.msra.mxu0 %v1238
      %1256 = vmatprep.subr.bf16.mxu0 0
      %1257 = vmatpush2.bf16.xpose.msra.mxu0 0
      %1258 = vmatprep.subr.bf16.mxu0 0
      %1259 = vmatpush2.bf16.xpose.msra.mxu0 0
      %1260 = vmatprep.subr.bf16.mxu0 0
      %1261 = vmatpush2.bf16.xpose.msra.mxu0 0
      %1262 = vmatprep.subr.bf16.mxu0 0
      %1263 = vmatpush2.bf16.xpose.msra.mxu0 0
      %1264 = vmatprep.subr.bf16.mxu0 0
      %1265 = vmatpush2.bf16.xpose.msra.mxu0 0
      %1266 = vmatprep.subr.bf16.mxu0 0
      %1267 = vmatpush2.bf16.xpose.msra.mxu0 0
      %1268 = vmatprep.subr.bf16.mxu0 0
      %1269 = vmatpush2.bf16.xpose.msra.mxu0 0
      %1270 = vmatprep.subr.bf16.mxu0 0
      %1271 = vmatpush2.bf16.xpose.msra.mxu0 0
      %1272 = vmatprep.mubr.bf16.mxu0 0
      %1273 = vmatmul.mubr.bf16.gmra.mxu0 %v1235
      %v1274 = vpop.f32.mrf.mxu0
      %v1275 = vadd.f32 %v603, %v1274
      %v1276 = vpop.f32.mrf.mxu0
      %v1277 = vpop.f32.mrf.mxu0
      %v1278 = vadd.f32 %v604, %v1277
      %v1279 = vpop.f32.mrf.mxu0
      %1280 = vdwg.mxu0
      %v1282 = vsel %vm1139, %v1130, 0
      %v1285 = vsel %vm1139, %v1134, 0
      %1287 = vmatprep.subr.bf16.mxu0 0
      %1288 = vmatpush1.bf16.xpose.msra.mxu0 0
      %1289 = vmatprep.subr.bf16.mxu0 0
      %1290 = vmatpush1.bf16.xpose.msra.mxu0 0
      %1291 = vmatprep.subr.bf16.mxu0 0
      %1292 = vmatpush1.bf16.xpose.msra.mxu0 0
      %1293 = vmatprep.subr.bf16.mxu0 0
      %1294 = vmatpush1.bf16.xpose.msra.mxu0 0
      %1295 = vmatprep.subr.bf16.mxu0 0
      %1296 = vmatpush1.bf16.xpose.msra.mxu0 0
      %1297 = vmatprep.subr.bf16.mxu0 0
      %1298 = vmatpush1.bf16.xpose.msra.mxu0 0
      %1299 = vmatprep.subr.bf16.mxu0 0
      %1300 = vmatpush1.bf16.xpose.msra.mxu0 0
      %1301 = vmatprep.subr.bf16.mxu0 0
      %1302 = vmatpush1.bf16.xpose.msra.mxu0 %v1285
      %1303 = vmatprep.subr.bf16.mxu0 0
      %1304 = vmatpush2.bf16.xpose.msra.mxu0 0
      %1305 = vmatprep.subr.bf16.mxu0 0
      %1306 = vmatpush2.bf16.xpose.msra.mxu0 0
      %1307 = vmatprep.subr.bf16.mxu0 0
      %1308 = vmatpush2.bf16.xpose.msra.mxu0 0
      %1309 = vmatprep.subr.bf16.mxu0 0
      %1310 = vmatpush2.bf16.xpose.msra.mxu0 0
      %1311 = vmatprep.subr.bf16.mxu0 0
      %1312 = vmatpush2.bf16.xpose.msra.mxu0 0
      %1313 = vmatprep.subr.bf16.mxu0 0
      %1314 = vmatpush2.bf16.xpose.msra.mxu0 0
      %1315 = vmatprep.subr.bf16.mxu0 0
      %1316 = vmatpush2.bf16.xpose.msra.mxu0 0
      %1317 = vmatprep.subr.bf16.mxu0 0
      %1318 = vmatpush2.bf16.xpose.msra.mxu0 0
      %1319 = vmatprep.mubr.bf16.mxu0 0
      %1320 = vmatmul.mubr.bf16.gmra.mxu0 %v1282
      %v1321 = vpop.f32.mrf.mxu0
      %v1322 = vadd.f32 %v603, %v1321
      %v1323 = vpop.f32.mrf.mxu0
      %v1324 = vpop.f32.mrf.mxu0
      %v1325 = vadd.f32 %v604, %v1324
      %v1326 = vpop.f32.mrf.mxu0
      %1327 = vdwg.mxu0
      %vm1328 = vcmask 130048
      %v1329 = vsel %vm1328, %v1181, -inf
      %1330 = vmax.xlane.f32.xlu0 %v1329
      %v1331 = vpop.xlane.xlu0 %1330
      %v1332 = vsel %vm1328, %v1184, -inf
      %1333 = vmax.xlane.f32.xlu0 %v1332
      %v1334 = vpop.xlane.xlu0 %1333
      %v1335 = vsel %vm1328, %v1228, -inf
      %1336 = vmax.xlane.f32.xlu0 %v1335
      %v1337 = vpop.xlane.xlu0 %1336
      %v1338 = vsel %vm1328, %v1231, -inf
      %1339 = vmax.xlane.f32.xlu0 %v1338
      %v1340 = vpop.xlane.xlu0 %1339
      %v1341 = vsel %vm1328, %v1275, -inf
      %1342 = vmax.xlane.f32.xlu0 %v1341
      %v1343 = vpop.xlane.xlu0 %1342
      %v1344 = vsel %vm1328, %v1278, -inf
      %1345 = vmax.xlane.f32.xlu0 %v1344
      %v1346 = vpop.xlane.xlu0 %1345
      %v1347 = vsel %vm1328, %v1322, -inf
      %1348 = vmax.xlane.f32.xlu0 %v1347
      %v1349 = vpop.xlane.xlu0 %1348
      %v1350 = vsel %vm1328, %v1325, -inf
      %1351 = vmax.xlane.f32.xlu0 %v1350
      %v1352 = vpop.xlane.xlu0 %1351
      %v1353 = vsub.f32 %v1181, %v1331
      %v1354 = vsub.f32 %v1184, %v1334
      %v1355 = vsub.f32 %v1228, %v1337
      %v1356 = vsub.f32 %v1231, %v1340
      %v1357 = vsub.f32 %v1275, %v1343
      %v1358 = vsub.f32 %v1278, %v1346
      %v1359 = vsub.f32 %v1322, %v1349
      %v1360 = vsub.f32 %v1325, %v1352
      %v1361 = vmul.f32 %v1353, 1.442695
      %v1362 = vpow.pop %v1361
      %v1363 = vmul.f32 %v1354, 1.442695
      %v1364 = vpow.pop %v1363
      %v1365 = vmul.f32 %v1355, 1.442695
      %v1366 = vpow.pop %v1365
      %v1367 = vmul.f32 %v1356, 1.442695
      %v1368 = vpow.pop %v1367
      %v1369 = vmul.f32 %v1357, 1.442695
      %v1370 = vpow.pop %v1369
      %v1371 = vmul.f32 %v1358, 1.442695
      %v1372 = vpow.pop %v1371
      %v1373 = vmul.f32 %v1359, 1.442695
      %v1374 = vpow.pop %v1373
      %v1375 = vmul.f32 %v1360, 1.442695
      %v1376 = vpow.pop %v1375
      %v1377 = vsel %vm1328, %v1362, 0.0
      %1378 = vadd.xlane.f32.xlu0 %v1377
      %v1379 = vpop.xlane.xlu0 %1378
      %v1380 = vsel %vm1328, %v1364, 0.0
      %1381 = vadd.xlane.f32.xlu0 %v1380
      %v1382 = vpop.xlane.xlu0 %1381
      %v1383 = vsel %vm1328, %v1366, 0.0
      %1384 = vadd.xlane.f32.xlu0 %v1383
      %v1385 = vpop.xlane.xlu0 %1384
      %v1386 = vsel %vm1328, %v1368, 0.0
      %1387 = vadd.xlane.f32.xlu0 %v1386
      %v1388 = vpop.xlane.xlu0 %1387
      %v1389 = vsel %vm1328, %v1370, 0.0
      %1390 = vadd.xlane.f32.xlu0 %v1389
      %v1391 = vpop.xlane.xlu0 %1390
      %v1392 = vsel %vm1328, %v1372, 0.0
      %1393 = vadd.xlane.f32.xlu0 %v1392
      %v1394 = vpop.xlane.xlu0 %1393
      %v1395 = vsel %vm1328, %v1374, 0.0
      %1396 = vadd.xlane.f32.xlu0 %v1395
      %v1397 = vpop.xlane.xlu0 %1396
      %v1398 = vsel %vm1328, %v1376, 0.0
      %1399 = vadd.xlane.f32.xlu0 %v1398
      %v1400 = vpop.xlane.xlu0 %1399
      %v1401 = vrcp.pop %v1379
      %v1402 = vrcp.pop %v1382
      %v1403 = vrcp.pop %v1385
      %v1404 = vrcp.pop %v1388
      %v1405 = vrcp.pop %v1391
      %v1406 = vrcp.pop %v1394
      %v1407 = vrcp.pop %v1397
      %v1408 = vrcp.pop %v1400
      %v1409 = vmul.f32 %v1362, %v1401
      %v1410 = vmul.f32 %v1364, %v1402
      %v1411 = vmul.f32 %v1366, %v1403
      %v1412 = vmul.f32 %v1368, %v1404
      %v1413 = vmul.f32 %v1370, %v1405
      %v1414 = vmul.f32 %v1372, %v1406
      %v1415 = vmul.f32 %v1374, %v1407
      %v1416 = vmul.f32 %v1376, %v1408
      %v1417 = vpack.c.bf16 %v1410, %v1409
      %v1418 = vpack.c.bf16 %v1412, %v1411
      %v1419 = vpack.c.bf16 %v1414, %v1413
      %v1420 = vpack.c.bf16 %v1416, %v1415
      %v1422 = vsel %vm1328, %v1417, 0
      %1424 = vmatprep.subr.bf16.mxu0 0
      %1425 = vmatpush1.bf16.msra.mxu0 0
      %1426 = vmatprep.subr.bf16.mxu0 0
      %1427 = vmatpush1.bf16.msra.mxu0 0
      %1428 = vmatprep.subr.bf16.mxu0 0
      %1429 = vmatpush1.bf16.msra.mxu0 0
      %1430 = vmatprep.subr.bf16.mxu0 0
      %1431 = vmatpush1.bf16.msra.mxu0 0
      %1432 = vmatprep.subr.bf16.mxu0 0
      %1433 = vmatpush1.bf16.msra.mxu0 0
      %1434 = vmatprep.subr.bf16.mxu0 0
      %1435 = vmatpush1.bf16.msra.mxu0 0
      %1436 = vmatprep.subr.bf16.mxu0 0
      %1437 = vmatpush1.bf16.msra.mxu0 0
      %1438 = vmatprep.subr.bf16.mxu0 0
      %1439 = vmatpush1.bf16.msra.mxu0 %v1135
      %1440 = vmatprep.subr.bf16.mxu0 0
      %1441 = vmatpush2.bf16.msra.mxu0 0
      %1442 = vmatprep.subr.bf16.mxu0 0
      %1443 = vmatpush2.bf16.msra.mxu0 0
      %1444 = vmatprep.subr.bf16.mxu0 0
      %1445 = vmatpush2.bf16.msra.mxu0 0
      %1446 = vmatprep.subr.bf16.mxu0 0
      %1447 = vmatpush2.bf16.msra.mxu0 0
      %1448 = vmatprep.subr.bf16.mxu0 0
      %1449 = vmatpush2.bf16.msra.mxu0 0
      %1450 = vmatprep.subr.bf16.mxu0 0
      %1451 = vmatpush2.bf16.msra.mxu0 0
      %1452 = vmatprep.subr.bf16.mxu0 0
      %1453 = vmatpush2.bf16.msra.mxu0 0
      %1454 = vmatprep.subr.bf16.mxu0 0
      %1455 = vmatpush2.bf16.msra.mxu0 0
      %1456 = vmatprep.mubr.bf16.mxu0 0
      %1457 = vmatmul.mubr.bf16.gmra.mxu0 %v1422
      %v1458 = vpop.f32.mrf.mxu0
      %v1459 = vadd.f32 0.0, %v1458
      %v1460 = vpop.f32.mrf.mxu0
      %v1461 = vpop.f32.mrf.mxu0
      %v1462 = vadd.f32 0.0, %v1461
      %v1463 = vpop.f32.mrf.mxu0
      %1464 = vdwg.mxu0
      %v1466 = vsel %vm1328, %v1418, 0
      %1468 = vmatprep.subr.bf16.mxu0 0
      %1469 = vmatpush1.bf16.msra.mxu0 0
      %1470 = vmatprep.subr.bf16.mxu0 0
      %1471 = vmatpush1.bf16.msra.mxu0 0
      %1472 = vmatprep.subr.bf16.mxu0 0
      %1473 = vmatpush1.bf16.msra.mxu0 0
      %1474 = vmatprep.subr.bf16.mxu0 0
      %1475 = vmatpush1.bf16.msra.mxu0 0
      %1476 = vmatprep.subr.bf16.mxu0 0
      %1477 = vmatpush1.bf16.msra.mxu0 0
      %1478 = vmatprep.subr.bf16.mxu0 0
      %1479 = vmatpush1.bf16.msra.mxu0 0
      %1480 = vmatprep.subr.bf16.mxu0 0
      %1481 = vmatpush1.bf16.msra.mxu0 0
      %1482 = vmatprep.subr.bf16.mxu0 0
      %1483 = vmatpush1.bf16.msra.mxu0 %v1136
      %1484 = vmatprep.subr.bf16.mxu0 0
      %1485 = vmatpush2.bf16.msra.mxu0 0
      %1486 = vmatprep.subr.bf16.mxu0 0
      %1487 = vmatpush2.bf16.msra.mxu0 0
      %1488 = vmatprep.subr.bf16.mxu0 0
      %1489 = vmatpush2.bf16.msra.mxu0 0
      %1490 = vmatprep.subr.bf16.mxu0 0
      %1491 = vmatpush2.bf16.msra.mxu0 0
      %1492 = vmatprep.subr.bf16.mxu0 0
      %1493 = vmatpush2.bf16.msra.mxu0 0
      %1494 = vmatprep.subr.bf16.mxu0 0
      %1495 = vmatpush2.bf16.msra.mxu0 0
      %1496 = vmatprep.subr.bf16.mxu0 0
      %1497 = vmatpush2.bf16.msra.mxu0 0
      %1498 = vmatprep.subr.bf16.mxu0 0
      %1499 = vmatpush2.bf16.msra.mxu0 0
      %1500 = vmatprep.mubr.bf16.mxu0 0
      %1501 = vmatmul.mubr.bf16.gmra.mxu0 %v1466
      %v1502 = vpop.f32.mrf.mxu0
      %v1503 = vadd.f32 0.0, %v1502
      %v1504 = vpop.f32.mrf.mxu0
      %v1505 = vpop.f32.mrf.mxu0
      %v1506 = vadd.f32 0.0, %v1505
      %v1507 = vpop.f32.mrf.mxu0
      %1508 = vdwg.mxu0
      %v1510 = vsel %vm1328, %v1419, 0
      %1512 = vmatprep.subr.bf16.mxu0 0
      %1513 = vmatpush1.bf16.msra.mxu0 0
      %1514 = vmatprep.subr.bf16.mxu0 0
      %1515 = vmatpush1.bf16.msra.mxu0 0
      %1516 = vmatprep.subr.bf16.mxu0 0
      %1517 = vmatpush1.bf16.msra.mxu0 0
      %1518 = vmatprep.subr.bf16.mxu0 0
      %1519 = vmatpush1.bf16.msra.mxu0 0
      %1520 = vmatprep.subr.bf16.mxu0 0
      %1521 = vmatpush1.bf16.msra.mxu0 0
      %1522 = vmatprep.subr.bf16.mxu0 0
      %1523 = vmatpush1.bf16.msra.mxu0 0
      %1524 = vmatprep.subr.bf16.mxu0 0
      %1525 = vmatpush1.bf16.msra.mxu0 0
      %1526 = vmatprep.subr.bf16.mxu0 0
      %1527 = vmatpush1.bf16.msra.mxu0 %v1137
      %1528 = vmatprep.subr.bf16.mxu0 0
      %1529 = vmatpush2.bf16.msra.mxu0 0
      %1530 = vmatprep.subr.bf16.mxu0 0
      %1531 = vmatpush2.bf16.msra.mxu0 0
      %1532 = vmatprep.subr.bf16.mxu0 0
      %1533 = vmatpush2.bf16.msra.mxu0 0
      %1534 = vmatprep.subr.bf16.mxu0 0
      %1535 = vmatpush2.bf16.msra.mxu0 0
      %1536 = vmatprep.subr.bf16.mxu0 0
      %1537 = vmatpush2.bf16.msra.mxu0 0
      %1538 = vmatprep.subr.bf16.mxu0 0
      %1539 = vmatpush2.bf16.msra.mxu0 0
      %1540 = vmatprep.subr.bf16.mxu0 0
      %1541 = vmatpush2.bf16.msra.mxu0 0
      %1542 = vmatprep.subr.bf16.mxu0 0
      %1543 = vmatpush2.bf16.msra.mxu0 0
      %1544 = vmatprep.mubr.bf16.mxu0 0
      %1545 = vmatmul.mubr.bf16.gmra.mxu0 %v1510
      %v1546 = vpop.f32.mrf.mxu0
      %v1547 = vadd.f32 0.0, %v1546
      %v1548 = vpop.f32.mrf.mxu0
      %v1549 = vpop.f32.mrf.mxu0
      %v1550 = vadd.f32 0.0, %v1549
      %v1551 = vpop.f32.mrf.mxu0
      %1552 = vdwg.mxu0
      %v1554 = vsel %vm1328, %v1420, 0
      %1556 = vmatprep.subr.bf16.mxu0 0
      %1557 = vmatpush1.bf16.msra.mxu0 0
      %1558 = vmatprep.subr.bf16.mxu0 0
      %1559 = vmatpush1.bf16.msra.mxu0 0
      %1560 = vmatprep.subr.bf16.mxu0 0
      %1561 = vmatpush1.bf16.msra.mxu0 0
      %1562 = vmatprep.subr.bf16.mxu0 0
      %1563 = vmatpush1.bf16.msra.mxu0 0
      %1564 = vmatprep.subr.bf16.mxu0 0
      %1565 = vmatpush1.bf16.msra.mxu0 0
      %1566 = vmatprep.subr.bf16.mxu0 0
      %1567 = vmatpush1.bf16.msra.mxu0 0
      %1568 = vmatprep.subr.bf16.mxu0 0
      %1569 = vmatpush1.bf16.msra.mxu0 0
      %1570 = vmatprep.subr.bf16.mxu0 0
      %1571 = vmatpush1.bf16.msra.mxu0 %v1138
      %1572 = vmatprep.subr.bf16.mxu0 0
      %1573 = vmatpush2.bf16.msra.mxu0 0
      %1574 = vmatprep.subr.bf16.mxu0 0
      %1575 = vmatpush2.bf16.msra.mxu0 0
      %1576 = vmatprep.subr.bf16.mxu0 0
      %1577 = vmatpush2.bf16.msra.mxu0 0
      %1578 = vmatprep.subr.bf16.mxu0 0
      %1579 = vmatpush2.bf16.msra.mxu0 0
      %1580 = vmatprep.subr.bf16.mxu0 0
      %1581 = vmatpush2.bf16.msra.mxu0 0
      %1582 = vmatprep.subr.bf16.mxu0 0
      %1583 = vmatpush2.bf16.msra.mxu0 0
      %1584 = vmatprep.subr.bf16.mxu0 0
      %1585 = vmatpush2.bf16.msra.mxu0 0
      %1586 = vmatprep.subr.bf16.mxu0 0
      %1587 = vmatpush2.bf16.msra.mxu0 0
      %1588 = vmatprep.mubr.bf16.mxu0 0
      %1589 = vmatmul.mubr.bf16.gmra.mxu0 %v1554
      %v1590 = vpop.f32.mrf.mxu0
      %v1591 = vadd.f32 0.0, %v1590
      %v1592 = vpop.f32.mrf.mxu0
      %v1593 = vpop.f32.mrf.mxu0
      %v1594 = vadd.f32 0.0, %v1593
      %v1595 = vpop.f32.mrf.mxu0
      %1596 = vdwg.mxu0
      %1597 = vst.msk [vmem:[#allocation2] sm:$0xff] %vm1139, %v1459
      %1598 = vst.msk [vmem:[#allocation2 + $0x8] sm:$0xff] %vm1139, %v1462
      %1599 = vst.msk [vmem:[#allocation2 + $0x10] sm:$0xff] %vm1139, %v1503
      %1600 = vst.msk [vmem:[#allocation2 + $0x18] sm:$0xff] %vm1139, %v1506
      %1601 = vst.msk [vmem:[#allocation2 + $0x20] sm:$0xff] %vm1139, %v1547
      %1602 = vst.msk [vmem:[#allocation2 + $0x28] sm:$0xff] %vm1139, %v1550
      %1603 = vst.msk [vmem:[#allocation2 + $0x30] sm:$0xff] %vm1139, %v1591
      %1604 = vst.msk [vmem:[#allocation2 + $0x38] sm:$0xff] %vm1139, %v1594
      %1606 = vrot.lane.b32.xlu0 %v1127, 120
      %v1607 = vpop.permute.xlu0 %1606
      %1609 = vrot.lane.b32.xlu0 %v1131, 120
      %v1610 = vpop.permute.xlu0 %1609
      %v1612 = vsel %vm1139, %v1607, 0
      %v1615 = vsel %vm1139, %v1610, 0
      %1617 = vmatprep.subr.bf16.mxu0 0
      %1618 = vmatpush1.bf16.xpose.msra.mxu0 0
      %1619 = vmatprep.subr.bf16.mxu0 0
      %1620 = vmatpush1.bf16.xpose.msra.mxu0 0
      %1621 = vmatprep.subr.bf16.mxu0 0
      %1622 = vmatpush1.bf16.xpose.msra.mxu0 0
      %1623 = vmatprep.subr.bf16.mxu0 0
      %1624 = vmatpush1.bf16.xpose.msra.mxu0 0
      %1625 = vmatprep.subr.bf16.mxu0 0
      %1626 = vmatpush1.bf16.xpose.msra.mxu0 0
      %1627 = vmatprep.subr.bf16.mxu0 0
      %1628 = vmatpush1.bf16.xpose.msra.mxu0 0
      %1629 = vmatprep.subr.bf16.mxu0 0
      %1630 = vmatpush1.bf16.xpose.msra.mxu0 0
      %1631 = vmatprep.subr.bf16.mxu0 0
      %1632 = vmatpush1.bf16.xpose.msra.mxu0 %v1615
      %1633 = vmatprep.subr.bf16.mxu0 0
      %1634 = vmatpush2.bf16.xpose.msra.mxu0 0
      %1635 = vmatprep.subr.bf16.mxu0 0
      %1636 = vmatpush2.bf16.xpose.msra.mxu0 0
      %1637 = vmatprep.subr.bf16.mxu0 0
      %1638 = vmatpush2.bf16.xpose.msra.mxu0 0
      %1639 = vmatprep.subr.bf16.mxu0 0
      %1640 = vmatpush2.bf16.xpose.msra.mxu0 0
      %1641 = vmatprep.subr.bf16.mxu0 0
      %1642 = vmatpush2.bf16.xpose.msra.mxu0 0
      %1643 = vmatprep.subr.bf16.mxu0 0
      %1644 = vmatpush2.bf16.xpose.msra.mxu0 0
      %1645 = vmatprep.subr.bf16.mxu0 0
      %1646 = vmatpush2.bf16.xpose.msra.mxu0 0
      %1647 = vmatprep.subr.bf16.mxu0 0
      %1648 = vmatpush2.bf16.xpose.msra.mxu0 0
      %1649 = vmatprep.mubr.bf16.mxu0 0
      %1650 = vmatmul.mubr.bf16.gmra.mxu0 %v1612
      %v1651 = vpop.f32.mrf.mxu0
      %v1652 = vadd.f32 %v603, %v1651
      %v1653 = vpop.f32.mrf.mxu0
      %v1654 = vpop.f32.mrf.mxu0
      %v1655 = vadd.f32 %v604, %v1654
      %v1656 = vpop.f32.mrf.mxu0
      %1657 = vdwg.mxu0
      %1659 = vrot.lane.b32.xlu0 %v1128, 120
      %v1660 = vpop.permute.xlu0 %1659
      %1662 = vrot.lane.b32.xlu0 %v1132, 120
      %v1663 = vpop.permute.xlu0 %1662
      %v1665 = vsel %vm1139, %v1660, 0
      %v1668 = vsel %vm1139, %v1663, 0
      %1670 = vmatprep.subr.bf16.mxu0 0
      %1671 = vmatpush1.bf16.xpose.msra.mxu0 0
      %1672 = vmatprep.subr.bf16.mxu0 0
      %1673 = vmatpush1.bf16.xpose.msra.mxu0 0
      %1674 = vmatprep.subr.bf16.mxu0 0
      %1675 = vmatpush1.bf16.xpose.msra.mxu0 0
      %1676 = vmatprep.subr.bf16.mxu0 0
      %1677 = vmatpush1.bf16.xpose.msra.mxu0 0
      %1678 = vmatprep.subr.bf16.mxu0 0
      %1679 = vmatpush1.bf16.xpose.msra.mxu0 0
      %1680 = vmatprep.subr.bf16.mxu0 0
      %1681 = vmatpush1.bf16.xpose.msra.mxu0 0
      %1682 = vmatprep.subr.bf16.mxu0 0
      %1683 = vmatpush1.bf16.xpose.msra.mxu0 0
      %1684 = vmatprep.subr.bf16.mxu0 0
      %1685 = vmatpush1.bf16.xpose.msra.mxu0 %v1668
      %1686 = vmatprep.subr.bf16.mxu0 0
      %1687 = vmatpush2.bf16.xpose.msra.mxu0 0
      %1688 = vmatprep.subr.bf16.mxu0 0
      %1689 = vmatpush2.bf16.xpose.msra.mxu0 0
      %1690 = vmatprep.subr.bf16.mxu0 0
      %1691 = vmatpush2.bf16.xpose.msra.mxu0 0
      %1692 = vmatprep.subr.bf16.mxu0 0
      %1693 = vmatpush2.bf16.xpose.msra.mxu0 0
      %1694 = vmatprep.subr.bf16.mxu0 0
      %1695 = vmatpush2.bf16.xpose.msra.mxu0 0
      %1696 = vmatprep.subr.bf16.mxu0 0
      %1697 = vmatpush2.bf16.xpose.msra.mxu0 0
      %1698 = vmatprep.subr.bf16.mxu0 0
      %1699 = vmatpush2.bf16.xpose.msra.mxu0 0
      %1700 = vmatprep.subr.bf16.mxu0 0
      %1701 = vmatpush2.bf16.xpose.msra.mxu0 0
      %1702 = vmatprep.mubr.bf16.mxu0 0
      %1703 = vmatmul.mubr.bf16.gmra.mxu0 %v1665
      %v1704 = vpop.f32.mrf.mxu0
      %v1705 = vadd.f32 %v603, %v1704
      %v1706 = vpop.f32.mrf.mxu0
      %v1707 = vpop.f32.mrf.mxu0
      %v1708 = vadd.f32 %v604, %v1707
      %v1709 = vpop.f32.mrf.mxu0
      %1710 = vdwg.mxu0
      %1712 = vrot.lane.b32.xlu0 %v1129, 120
      %v1713 = vpop.permute.xlu0 %1712
      %1715 = vrot.lane.b32.xlu0 %v1133, 120
      %v1716 = vpop.permute.xlu0 %1715
      %v1718 = vsel %vm1139, %v1713, 0
      %v1721 = vsel %vm1139, %v1716, 0
      %1723 = vmatprep.subr.bf16.mxu0 0
      %1724 = vmatpush1.bf16.xpose.msra.mxu0 0
      %1725 = vmatprep.subr.bf16.mxu0 0
      %1726 = vmatpush1.bf16.xpose.msra.mxu0 0
      %1727 = vmatprep.subr.bf16.mxu0 0
      %1728 = vmatpush1.bf16.xpose.msra.mxu0 0
      %1729 = vmatprep.subr.bf16.mxu0 0
      %1730 = vmatpush1.bf16.xpose.msra.mxu0 0
      %1731 = vmatprep.subr.bf16.mxu0 0
      %1732 = vmatpush1.bf16.xpose.msra.mxu0 0
      %1733 = vmatprep.subr.bf16.mxu0 0
      %1734 = vmatpush1.bf16.xpose.msra.mxu0 0
      %1735 = vmatprep.subr.bf16.mxu0 0
      %1736 = vmatpush1.bf16.xpose.msra.mxu0 0
      %1737 = vmatprep.subr.bf16.mxu0 0
      %1738 = vmatpush1.bf16.xpose.msra.mxu0 %v1721
      %1739 = vmatprep.subr.bf16.mxu0 0
      %1740 = vmatpush2.bf16.xpose.msra.mxu0 0
      %1741 = vmatprep.subr.bf16.mxu0 0
      %1742 = vmatpush2.bf16.xpose.msra.mxu0 0
      %1743 = vmatprep.subr.bf16.mxu0 0
      %1744 = vmatpush2.bf16.xpose.msra.mxu0 0
      %1745 = vmatprep.subr.bf16.mxu0 0
      %1746 = vmatpush2.bf16.xpose.msra.mxu0 0
      %1747 = vmatprep.subr.bf16.mxu0 0
      %1748 = vmatpush2.bf16.xpose.msra.mxu0 0
      %1749 = vmatprep.subr.bf16.mxu0 0
      %1750 = vmatpush2.bf16.xpose.msra.mxu0 0
      %1751 = vmatprep.subr.bf16.mxu0 0
      %1752 = vmatpush2.bf16.xpose.msra.mxu0 0
      %1753 = vmatprep.subr.bf16.mxu0 0
      %1754 = vmatpush2.bf16.xpose.msra.mxu0 0
      %1755 = vmatprep.mubr.bf16.mxu0 0
      %1756 = vmatmul.mubr.bf16.gmra.mxu0 %v1718
      %v1757 = vpop.f32.mrf.mxu0
      %v1758 = vadd.f32 %v603, %v1757
      %v1759 = vpop.f32.mrf.mxu0
      %v1760 = vpop.f32.mrf.mxu0
      %v1761 = vadd.f32 %v604, %v1760
      %v1762 = vpop.f32.mrf.mxu0
      %1763 = vdwg.mxu0
      %1765 = vrot.lane.b32.xlu0 %v1130, 120
      %v1766 = vpop.permute.xlu0 %1765
      %1768 = vrot.lane.b32.xlu0 %v1134, 120
      %v1769 = vpop.permute.xlu0 %1768
      %v1771 = vsel %vm1139, %v1766, 0
      %v1774 = vsel %vm1139, %v1769, 0
      %1776 = vmatprep.subr.bf16.mxu0 0
      %1777 = vmatpush1.bf16.xpose.msra.mxu0 0
      %1778 = vmatprep.subr.bf16.mxu0 0
      %1779 = vmatpush1.bf16.xpose.msra.mxu0 0
      %1780 = vmatprep.subr.bf16.mxu0 0
      %1781 = vmatpush1.bf16.xpose.msra.mxu0 0
      %1782 = vmatprep.subr.bf16.mxu0 0
      %1783 = vmatpush1.bf16.xpose.msra.mxu0 0
      %1784 = vmatprep.subr.bf16.mxu0 0
      %1785 = vmatpush1.bf16.xpose.msra.mxu0 0
      %1786 = vmatprep.subr.bf16.mxu0 0
      %1787 = vmatpush1.bf16.xpose.msra.mxu0 0
      %1788 = vmatprep.subr.bf16.mxu0 0
      %1789 = vmatpush1.bf16.xpose.msra.mxu0 0
      %1790 = vmatprep.subr.bf16.mxu0 0
      %1791 = vmatpush1.bf16.xpose.msra.mxu0 %v1774
      %1792 = vmatprep.subr.bf16.mxu0 0
      %1793 = vmatpush2.bf16.xpose.msra.mxu0 0
      %1794 = vmatprep.subr.bf16.mxu0 0
      %1795 = vmatpush2.bf16.xpose.msra.mxu0 0
      %1796 = vmatprep.subr.bf16.mxu0 0
      %1797 = vmatpush2.bf16.xpose.msra.mxu0 0
      %1798 = vmatprep.subr.bf16.mxu0 0
      %1799 = vmatpush2.bf16.xpose.msra.mxu0 0
      %1800 = vmatprep.subr.bf16.mxu0 0
      %1801 = vmatpush2.bf16.xpose.msra.mxu0 0
      %1802 = vmatprep.subr.bf16.mxu0 0
      %1803 = vmatpush2.bf16.xpose.msra.mxu0 0
      %1804 = vmatprep.subr.bf16.mxu0 0
      %1805 = vmatpush2.bf16.xpose.msra.mxu0 0
      %1806 = vmatprep.subr.bf16.mxu0 0
      %1807 = vmatpush2.bf16.xpose.msra.mxu0 0
      %1808 = vmatprep.mubr.bf16.mxu0 0
      %1809 = vmatmul.mubr.bf16.gmra.mxu0 %v1771
      %v1810 = vpop.f32.mrf.mxu0
      %v1811 = vadd.f32 %v603, %v1810
      %v1812 = vpop.f32.mrf.mxu0
      %v1813 = vpop.f32.mrf.mxu0
      %v1814 = vadd.f32 %v604, %v1813
      %v1815 = vpop.f32.mrf.mxu0
      %1816 = vdwg.mxu0
      %v1817 = vsel %vm1328, %v1652, -inf
      %1818 = vmax.xlane.f32.xlu0 %v1817
      %v1819 = vpop.xlane.xlu0 %1818
      %v1820 = vsel %vm1328, %v1655, -inf
      %1821 = vmax.xlane.f32.xlu0 %v1820
      %v1822 = vpop.xlane.xlu0 %1821
      %v1823 = vsel %vm1328, %v1705, -inf
      %1824 = vmax.xlane.f32.xlu0 %v1823
      %v1825 = vpop.xlane.xlu0 %1824
      %v1826 = vsel %vm1328, %v1708, -inf
      %1827 = vmax.xlane.f32.xlu0 %v1826
      %v1828 = vpop.xlane.xlu0 %1827
      %v1829 = vsel %vm1328, %v1758, -inf
      %1830 = vmax.xlane.f32.xlu0 %v1829
      %v1831 = vpop.xlane.xlu0 %1830
      %v1832 = vsel %vm1328, %v1761, -inf
      %1833 = vmax.xlane.f32.xlu0 %v1832
      %v1834 = vpop.xlane.xlu0 %1833
      %v1835 = vsel %vm1328, %v1811, -inf
      %1836 = vmax.xlane.f32.xlu0 %v1835
      %v1837 = vpop.xlane.xlu0 %1836
      %v1838 = vsel %vm1328, %v1814, -inf
      %1839 = vmax.xlane.f32.xlu0 %v1838
      %v1840 = vpop.xlane.xlu0 %1839
      %v1841 = vsub.f32 %v1652, %v1819
      %v1842 = vsub.f32 %v1655, %v1822
      %v1843 = vsub.f32 %v1705, %v1825
      %v1844 = vsub.f32 %v1708, %v1828
      %v1845 = vsub.f32 %v1758, %v1831
      %v1846 = vsub.f32 %v1761, %v1834
      %v1847 = vsub.f32 %v1811, %v1837
      %v1848 = vsub.f32 %v1814, %v1840
      %v1849 = vmul.f32 %v1841, 1.442695
      %v1850 = vpow.pop %v1849
      %v1851 = vmul.f32 %v1842, 1.442695
      %v1852 = vpow.pop %v1851
      %v1853 = vmul.f32 %v1843, 1.442695
      %v1854 = vpow.pop %v1853
      %v1855 = vmul.f32 %v1844, 1.442695
      %v1856 = vpow.pop %v1855
      %v1857 = vmul.f32 %v1845, 1.442695
      %v1858 = vpow.pop %v1857
      %v1859 = vmul.f32 %v1846, 1.442695
      %v1860 = vpow.pop %v1859
      %v1861 = vmul.f32 %v1847, 1.442695
      %v1862 = vpow.pop %v1861
      %v1863 = vmul.f32 %v1848, 1.442695
      %v1864 = vpow.pop %v1863
      %v1865 = vsel %vm1328, %v1850, 0.0
      %1866 = vadd.xlane.f32.xlu0 %v1865
      %v1867 = vpop.xlane.xlu0 %1866
      %v1868 = vsel %vm1328, %v1852, 0.0
      %1869 = vadd.xlane.f32.xlu0 %v1868
      %v1870 = vpop.xlane.xlu0 %1869
      %v1871 = vsel %vm1328, %v1854, 0.0
      %1872 = vadd.xlane.f32.xlu0 %v1871
      %v1873 = vpop.xlane.xlu0 %1872
      %v1874 = vsel %vm1328, %v1856, 0.0
      %1875 = vadd.xlane.f32.xlu0 %v1874
      %v1876 = vpop.xlane.xlu0 %1875
      %v1877 = vsel %vm1328, %v1858, 0.0
      %1878 = vadd.xlane.f32.xlu0 %v1877
      %v1879 = vpop.xlane.xlu0 %1878
      %v1880 = vsel %vm1328, %v1860, 0.0
      %1881 = vadd.xlane.f32.xlu0 %v1880
      %v1882 = vpop.xlane.xlu0 %1881
      %v1883 = vsel %vm1328, %v1862, 0.0
      %1884 = vadd.xlane.f32.xlu0 %v1883
      %v1885 = vpop.xlane.xlu0 %1884
      %v1886 = vsel %vm1328, %v1864, 0.0
      %1887 = vadd.xlane.f32.xlu0 %v1886
      %v1888 = vpop.xlane.xlu0 %1887
      %v1889 = vrcp.pop %v1867
      %v1890 = vrcp.pop %v1870
      %v1891 = vrcp.pop %v1873
      %v1892 = vrcp.pop %v1876
      %v1893 = vrcp.pop %v1879
      %v1894 = vrcp.pop %v1882
      %v1895 = vrcp.pop %v1885
      %v1896 = vrcp.pop %v1888
      %v1897 = vmul.f32 %v1850, %v1889
      %v1898 = vmul.f32 %v1852, %v1890
      %v1899 = vmul.f32 %v1854, %v1891
      %v1900 = vmul.f32 %v1856, %v1892
      %v1901 = vmul.f32 %v1858, %v1893
      %v1902 = vmul.f32 %v1860, %v1894
      %v1903 = vmul.f32 %v1862, %v1895
      %v1904 = vmul.f32 %v1864, %v1896
      %v1905 = vpack.c.bf16 %v1898, %v1897
      %v1906 = vpack.c.bf16 %v1900, %v1899
      %v1907 = vpack.c.bf16 %v1902, %v1901
      %v1908 = vpack.c.bf16 %v1904, %v1903
      %1910 = vrot.lane.b32.xlu0 %v1135, 120
      %v1911 = vpop.permute.xlu0 %1910
      %v1914 = vsel %vm1328, %v1905, 0
      %1916 = vmatprep.subr.bf16.mxu0 0
      %1917 = vmatpush1.bf16.msra.mxu0 0
      %1918 = vmatprep.subr.bf16.mxu0 0
      %1919 = vmatpush1.bf16.msra.mxu0 0
      %1920 = vmatprep.subr.bf16.mxu0 0
      %1921 = vmatpush1.bf16.msra.mxu0 0
      %1922 = vmatprep.subr.bf16.mxu0 0
      %1923 = vmatpush1.bf16.msra.mxu0 0
      %1924 = vmatprep.subr.bf16.mxu0 0
      %1925 = vmatpush1.bf16.msra.mxu0 0
      %1926 = vmatprep.subr.bf16.mxu0 0
      %1927 = vmatpush1.bf16.msra.mxu0 0
      %1928 = vmatprep.subr.bf16.mxu0 0
      %1929 = vmatpush1.bf16.msra.mxu0 0
      %1930 = vmatprep.subr.bf16.mxu0 0
      %1931 = vmatpush1.bf16.msra.mxu0 %v1911
      %1932 = vmatprep.subr.bf16.mxu0 0
      %1933 = vmatpush2.bf16.msra.mxu0 0
      %1934 = vmatprep.subr.bf16.mxu0 0
      %1935 = vmatpush2.bf16.msra.mxu0 0
      %1936 = vmatprep.subr.bf16.mxu0 0
      %1937 = vmatpush2.bf16.msra.mxu0 0
      %1938 = vmatprep.subr.bf16.mxu0 0
      %1939 = vmatpush2.bf16.msra.mxu0 0
      %1940 = vmatprep.subr.bf16.mxu0 0
      %1941 = vmatpush2.bf16.msra.mxu0 0
      %1942 = vmatprep.subr.bf16.mxu0 0
      %1943 = vmatpush2.bf16.msra.mxu0 0
      %1944 = vmatprep.subr.bf16.mxu0 0
      %1945 = vmatpush2.bf16.msra.mxu0 0
      %1946 = vmatprep.subr.bf16.mxu0 0
      %1947 = vmatpush2.bf16.msra.mxu0 0
      %1948 = vmatprep.mubr.bf16.mxu0 0
      %1949 = vmatmul.mubr.bf16.gmra.mxu0 %v1914
      %v1950 = vpop.f32.mrf.mxu0
      %v1951 = vadd.f32 0.0, %v1950
      %v1952 = vpop.f32.mrf.mxu0
      %v1953 = vpop.f32.mrf.mxu0
      %v1954 = vadd.f32 0.0, %v1953
      %v1955 = vpop.f32.mrf.mxu0
      %1956 = vdwg.mxu0
      %1958 = vrot.lane.b32.xlu0 %v1136, 120
      %v1959 = vpop.permute.xlu0 %1958
      %v1962 = vsel %vm1328, %v1906, 0
      %1964 = vmatprep.subr.bf16.mxu0 0
      %1965 = vmatpush1.bf16.msra.mxu0 0
      %1966 = vmatprep.subr.bf16.mxu0 0
      %1967 = vmatpush1.bf16.msra.mxu0 0
      %1968 = vmatprep.subr.bf16.mxu0 0
      %1969 = vmatpush1.bf16.msra.mxu0 0
      %1970 = vmatprep.subr.bf16.mxu0 0
      %1971 = vmatpush1.bf16.msra.mxu0 0
      %1972 = vmatprep.subr.bf16.mxu0 0
      %1973 = vmatpush1.bf16.msra.mxu0 0
      %1974 = vmatprep.subr.bf16.mxu0 0
      %1975 = vmatpush1.bf16.msra.mxu0 0
      %1976 = vmatprep.subr.bf16.mxu0 0
      %1977 = vmatpush1.bf16.msra.mxu0 0
      %1978 = vmatprep.subr.bf16.mxu0 0
      %1979 = vmatpush1.bf16.msra.mxu0 %v1959
      %1980 = vmatprep.subr.bf16.mxu0 0
      %1981 = vmatpush2.bf16.msra.mxu0 0
      %1982 = vmatprep.subr.bf16.mxu0 0
      %1983 = vmatpush2.bf16.msra.mxu0 0
      %1984 = vmatprep.subr.bf16.mxu0 0
      %1985 = vmatpush2.bf16.msra.mxu0 0
      %1986 = vmatprep.subr.bf16.mxu0 0
      %1987 = vmatpush2.bf16.msra.mxu0 0
      %1988 = vmatprep.subr.bf16.mxu0 0
      %1989 = vmatpush2.bf16.msra.mxu0 0
      %1990 = vmatprep.subr.bf16.mxu0 0
      %1991 = vmatpush2.bf16.msra.mxu0 0
      %1992 = vmatprep.subr.bf16.mxu0 0
      %1993 = vmatpush2.bf16.msra.mxu0 0
      %1994 = vmatprep.subr.bf16.mxu0 0
      %1995 = vmatpush2.bf16.msra.mxu0 0
      %1996 = vmatprep.mubr.bf16.mxu0 0
      %1997 = vmatmul.mubr.bf16.gmra.mxu0 %v1962
      %v1998 = vpop.f32.mrf.mxu0
      %v1999 = vadd.f32 0.0, %v1998
      %v2000 = vpop.f32.mrf.mxu0
      %v2001 = vpop.f32.mrf.mxu0
      %v2002 = vadd.f32 0.0, %v2001
      %v2003 = vpop.f32.mrf.mxu0
      %2004 = vdwg.mxu0
      %2006 = vrot.lane.b32.xlu0 %v1137, 120
      %v2007 = vpop.permute.xlu0 %2006
      %v2010 = vsel %vm1328, %v1907, 0
      %2012 = vmatprep.subr.bf16.mxu0 0
      %2013 = vmatpush1.bf16.msra.mxu0 0
      %2014 = vmatprep.subr.bf16.mxu0 0
      %2015 = vmatpush1.bf16.msra.mxu0 0
      %2016 = vmatprep.subr.bf16.mxu0 0
      %2017 = vmatpush1.bf16.msra.mxu0 0
      %2018 = vmatprep.subr.bf16.mxu0 0
      %2019 = vmatpush1.bf16.msra.mxu0 0
      %2020 = vmatprep.subr.bf16.mxu0 0
      %2021 = vmatpush1.bf16.msra.mxu0 0
      %2022 = vmatprep.subr.bf16.mxu0 0
      %2023 = vmatpush1.bf16.msra.mxu0 0
      %2024 = vmatprep.subr.bf16.mxu0 0
      %2025 = vmatpush1.bf16.msra.mxu0 0
      %2026 = vmatprep.subr.bf16.mxu0 0
      %2027 = vmatpush1.bf16.msra.mxu0 %v2007
      %2028 = vmatprep.subr.bf16.mxu0 0
      %2029 = vmatpush2.bf16.msra.mxu0 0
      %2030 = vmatprep.subr.bf16.mxu0 0
      %2031 = vmatpush2.bf16.msra.mxu0 0
      %2032 = vmatprep.subr.bf16.mxu0 0
      %2033 = vmatpush2.bf16.msra.mxu0 0
      %2034 = vmatprep.subr.bf16.mxu0 0
      %2035 = vmatpush2.bf16.msra.mxu0 0
      %2036 = vmatprep.subr.bf16.mxu0 0
      %2037 = vmatpush2.bf16.msra.mxu0 0
      %2038 = vmatprep.subr.bf16.mxu0 0
      %2039 = vmatpush2.bf16.msra.mxu0 0
      %2040 = vmatprep.subr.bf16.mxu0 0
      %2041 = vmatpush2.bf16.msra.mxu0 0
      %2042 = vmatprep.subr.bf16.mxu0 0
      %2043 = vmatpush2.bf16.msra.mxu0 0
      %2044 = vmatprep.mubr.bf16.mxu0 0
      %2045 = vmatmul.mubr.bf16.gmra.mxu0 %v2010
      %v2046 = vpop.f32.mrf.mxu0
      %v2047 = vadd.f32 0.0, %v2046
      %v2048 = vpop.f32.mrf.mxu0
      %v2049 = vpop.f32.mrf.mxu0
      %v2050 = vadd.f32 0.0, %v2049
      %v2051 = vpop.f32.mrf.mxu0
      %2052 = vdwg.mxu0
      %2054 = vrot.lane.b32.xlu0 %v1138, 120
      %v2055 = vpop.permute.xlu0 %2054
      %v2058 = vsel %vm1328, %v1908, 0
      %2060 = vmatprep.subr.bf16.mxu0 0
      %2061 = vmatpush1.bf16.msra.mxu0 0
      %2062 = vmatprep.subr.bf16.mxu0 0
      %2063 = vmatpush1.bf16.msra.mxu0 0
      %2064 = vmatprep.subr.bf16.mxu0 0
      %2065 = vmatpush1.bf16.msra.mxu0 0
      %2066 = vmatprep.subr.bf16.mxu0 0
      %2067 = vmatpush1.bf16.msra.mxu0 0
      %2068 = vmatprep.subr.bf16.mxu0 0
      %2069 = vmatpush1.bf16.msra.mxu0 0
      %2070 = vmatprep.subr.bf16.mxu0 0
      %2071 = vmatpush1.bf16.msra.mxu0 0
      %2072 = vmatprep.subr.bf16.mxu0 0
      %2073 = vmatpush1.bf16.msra.mxu0 0
      %2074 = vmatprep.subr.bf16.mxu0 0
      %2075 = vmatpush1.bf16.msra.mxu0 %v2055
      %2076 = vmatprep.subr.bf16.mxu0 0
      %2077 = vmatpush2.bf16.msra.mxu0 0
      %2078 = vmatprep.subr.bf16.mxu0 0
      %2079 = vmatpush2.bf16.msra.mxu0 0
      %2080 = vmatprep.subr.bf16.mxu0 0
      %2081 = vmatpush2.bf16.msra.mxu0 0
      %2082 = vmatprep.subr.bf16.mxu0 0
      %2083 = vmatpush2.bf16.msra.mxu0 0
      %2084 = vmatprep.subr.bf16.mxu0 0
      %2085 = vmatpush2.bf16.msra.mxu0 0
      %2086 = vmatprep.subr.bf16.mxu0 0
      %2087 = vmatpush2.bf16.msra.mxu0 0
      %2088 = vmatprep.subr.bf16.mxu0 0
      %2089 = vmatpush2.bf16.msra.mxu0 0
      %2090 = vmatprep.subr.bf16.mxu0 0
      %2091 = vmatpush2.bf16.msra.mxu0 0
      %2092 = vmatprep.mubr.bf16.mxu0 0
      %2093 = vmatmul.mubr.bf16.gmra.mxu0 %v2058
      %v2094 = vpop.f32.mrf.mxu0
      %v2095 = vadd.f32 0.0, %v2094
      %v2096 = vpop.f32.mrf.mxu0
      %v2097 = vpop.f32.mrf.mxu0
      %v2098 = vadd.f32 0.0, %v2097
      %v2099 = vpop.f32.mrf.mxu0
      %2100 = vdwg.mxu0
      %2109 = vrot.lane.b32.xlu0 %v1951, 8
      %v2110 = vpop.permute.xlu0 %2109
      %2111 = vrot.lane.b32.xlu0 %v1954, 8
      %v2112 = vpop.permute.xlu0 %2111
      %2113 = vrot.lane.b32.xlu0 %v1999, 8
      %v2114 = vpop.permute.xlu0 %2113
      %2115 = vrot.lane.b32.xlu0 %v2002, 8
      %v2116 = vpop.permute.xlu0 %2115
      %2117 = vrot.lane.b32.xlu0 %v2047, 8
      %v2118 = vpop.permute.xlu0 %2117
      %2119 = vrot.lane.b32.xlu0 %v2050, 8
      %v2120 = vpop.permute.xlu0 %2119
      %2121 = vrot.lane.b32.xlu0 %v2095, 8
      %v2122 = vpop.permute.xlu0 %2121
      %2123 = vrot.lane.b32.xlu0 %v2098, 8
      %v2124 = vpop.permute.xlu0 %2123
      %vm2133 = vcmask 130112
      %2134 = vst.msk [vmem:[#allocation2] sm:$0xff] %vm2133, %v2110
      %2135 = vst.msk [vmem:[#allocation2 + $0x8] sm:$0xff] %vm2133, %v2112
      %2136 = vst.msk [vmem:[#allocation2 + $0x10] sm:$0xff] %vm2133, %v2114
      %2137 = vst.msk [vmem:[#allocation2 + $0x18] sm:$0xff] %vm2133, %v2116
      %2138 = vst.msk [vmem:[#allocation2 + $0x20] sm:$0xff] %vm2133, %v2118
      %2139 = vst.msk [vmem:[#allocation2 + $0x28] sm:$0xff] %vm2133, %v2120
      %2140 = vst.msk [vmem:[#allocation2 + $0x30] sm:$0xff] %vm2133, %v2122
      %2141 = vst.msk [vmem:[#allocation2 + $0x38] sm:$0xff] %vm2133, %v2124
      %2142 = vrot.lane.b32.xlu0 %v1127, 112
      %v2143 = vpop.permute.xlu0 %2142
      %2144 = vrot.lane.b32.xlu0 %v1131, 112
      %v2145 = vpop.permute.xlu0 %2144
      %v2147 = vsel %vm1139, %v2143, 0
      %v2150 = vsel %vm1139, %v2145, 0
      %2152 = vmatprep.subr.bf16.mxu0 0
      %2153 = vmatpush1.bf16.xpose.msra.mxu0 0
      %2154 = vmatprep.subr.bf16.mxu0 0
      %2155 = vmatpush1.bf16.xpose.msra.mxu0 0
      %2156 = vmatprep.subr.bf16.mxu0 0
      %2157 = vmatpush1.bf16.xpose.msra.mxu0 0
      %2158 = vmatprep.subr.bf16.mxu0 0
      %2159 = vmatpush1.bf16.xpose.msra.mxu0 0
      %2160 = vmatprep.subr.bf16.mxu0 0
      %2161 = vmatpush1.bf16.xpose.msra.mxu0 0
      %2162 = vmatprep.subr.bf16.mxu0 0
      %2163 = vmatpush1.bf16.xpose.msra.mxu0 0
      %2164 = vmatprep.subr.bf16.mxu0 0
      %2165 = vmatpush1.bf16.xpose.msra.mxu0 0
      %2166 = vmatprep.subr.bf16.mxu0 0
      %2167 = vmatpush1.bf16.xpose.msra.mxu0 %v2150
      %2168 = vmatprep.subr.bf16.mxu0 0
      %2169 = vmatpush2.bf16.xpose.msra.mxu0 0
      %2170 = vmatprep.subr.bf16.mxu0 0
      %2171 = vmatpush2.bf16.xpose.msra.mxu0 0
      %2172 = vmatprep.subr.bf16.mxu0 0
      %2173 = vmatpush2.bf16.xpose.msra.mxu0 0
      %2174 = vmatprep.subr.bf16.mxu0 0
      %2175 = vmatpush2.bf16.xpose.msra.mxu0 0
      %2176 = vmatprep.subr.bf16.mxu0 0
      %2177 = vmatpush2.bf16.xpose.msra.mxu0 0
      %2178 = vmatprep.subr.bf16.mxu0 0
      %2179 = vmatpush2.bf16.xpose.msra.mxu0 0
      %2180 = vmatprep.subr.bf16.mxu0 0
      %2181 = vmatpush2.bf16.xpose.msra.mxu0 0
      %2182 = vmatprep.subr.bf16.mxu0 0
      %2183 = vmatpush2.bf16.xpose.msra.mxu0 0
      %2184 = vmatprep.mubr.bf16.mxu0 0
      %2185 = vmatmul.mubr.bf16.gmra.mxu0 %v2147
      %v2186 = vpop.f32.mrf.mxu0
      %v2187 = vadd.f32 %v603, %v2186
      %v2188 = vpop.f32.mrf.mxu0
      %v2189 = vpop.f32.mrf.mxu0
      %v2190 = vadd.f32 %v604, %v2189
      %v2191 = vpop.f32.mrf.mxu0
      %2192 = vdwg.mxu0
      %2193 = vrot.lane.b32.xlu0 %v1128, 112
      %v2194 = vpop.permute.xlu0 %2193
      %2195 = vrot.lane.b32.xlu0 %v1132, 112
      %v2196 = vpop.permute.xlu0 %2195
      %v2198 = vsel %vm1139, %v2194, 0
      %v2201 = vsel %vm1139, %v2196, 0
      %2203 = vmatprep.subr.bf16.mxu0 0
      %2204 = vmatpush1.bf16.xpose.msra.mxu0 0
      %2205 = vmatprep.subr.bf16.mxu0 0
      %2206 = vmatpush1.bf16.xpose.msra.mxu0 0
      %2207 = vmatprep.subr.bf16.mxu0 0
      %2208 = vmatpush1.bf16.xpose.msra.mxu0 0
      %2209 = vmatprep.subr.bf16.mxu0 0
      %2210 = vmatpush1.bf16.xpose.msra.mxu0 0
      %2211 = vmatprep.subr.bf16.mxu0 0
      %2212 = vmatpush1.bf16.xpose.msra.mxu0 0
      %2213 = vmatprep.subr.bf16.mxu0 0
      %2214 = vmatpush1.bf16.xpose.msra.mxu0 0
      %2215 = vmatprep.subr.bf16.mxu0 0
      %2216 = vmatpush1.bf16.xpose.msra.mxu0 0
      %2217 = vmatprep.subr.bf16.mxu0 0
      %2218 = vmatpush1.bf16.xpose.msra.mxu0 %v2201
      %2219 = vmatprep.subr.bf16.mxu0 0
      %2220 = vmatpush2.bf16.xpose.msra.mxu0 0
      %2221 = vmatprep.subr.bf16.mxu0 0
      %2222 = vmatpush2.bf16.xpose.msra.mxu0 0
      %2223 = vmatprep.subr.bf16.mxu0 0
      %2224 = vmatpush2.bf16.xpose.msra.mxu0 0
      %2225 = vmatprep.subr.bf16.mxu0 0
      %2226 = vmatpush2.bf16.xpose.msra.mxu0 0
      %2227 = vmatprep.subr.bf16.mxu0 0
      %2228 = vmatpush2.bf16.xpose.msra.mxu0 0
      %2229 = vmatprep.subr.bf16.mxu0 0
      %2230 = vmatpush2.bf16.xpose.msra.mxu0 0
      %2231 = vmatprep.subr.bf16.mxu0 0
      %2232 = vmatpush2.bf16.xpose.msra.mxu0 0
      %2233 = vmatprep.subr.bf16.mxu0 0
      %2234 = vmatpush2.bf16.xpose.msra.mxu0 0
      %2235 = vmatprep.mubr.bf16.mxu0 0
      %2236 = vmatmul.mubr.bf16.gmra.mxu0 %v2198
      %v2237 = vpop.f32.mrf.mxu0
      %v2238 = vadd.f32 %v603, %v2237
      %v2239 = vpop.f32.mrf.mxu0
      %v2240 = vpop.f32.mrf.mxu0
      %v2241 = vadd.f32 %v604, %v2240
      %v2242 = vpop.f32.mrf.mxu0
      %2243 = vdwg.mxu0
      %2244 = vrot.lane.b32.xlu0 %v1129, 112
      %v2245 = vpop.permute.xlu0 %2244
      %2246 = vrot.lane.b32.xlu0 %v1133, 112
      %v2247 = vpop.permute.xlu0 %2246
      %v2249 = vsel %vm1139, %v2245, 0
      %v2252 = vsel %vm1139, %v2247, 0
      %2254 = vmatprep.subr.bf16.mxu0 0
      %2255 = vmatpush1.bf16.xpose.msra.mxu0 0
      %2256 = vmatprep.subr.bf16.mxu0 0
      %2257 = vmatpush1.bf16.xpose.msra.mxu0 0
      %2258 = vmatprep.subr.bf16.mxu0 0
      %2259 = vmatpush1.bf16.xpose.msra.mxu0 0
      %2260 = vmatprep.subr.bf16.mxu0 0
      %2261 = vmatpush1.bf16.xpose.msra.mxu0 0
      %2262 = vmatprep.subr.bf16.mxu0 0
      %2263 = vmatpush1.bf16.xpose.msra.mxu0 0
      %2264 = vmatprep.subr.bf16.mxu0 0
      %2265 = vmatpush1.bf16.xpose.msra.mxu0 0
      %2266 = vmatprep.subr.bf16.mxu0 0
      %2267 = vmatpush1.bf16.xpose.msra.mxu0 0
      %2268 = vmatprep.subr.bf16.mxu0 0
      %2269 = vmatpush1.bf16.xpose.msra.mxu0 %v2252
      %2270 = vmatprep.subr.bf16.mxu0 0
      %2271 = vmatpush2.bf16.xpose.msra.mxu0 0
      %2272 = vmatprep.subr.bf16.mxu0 0
      %2273 = vmatpush2.bf16.xpose.msra.mxu0 0
      %2274 = vmatprep.subr.bf16.mxu0 0
      %2275 = vmatpush2.bf16.xpose.msra.mxu0 0
      %2276 = vmatprep.subr.bf16.mxu0 0
      %2277 = vmatpush2.bf16.xpose.msra.mxu0 0
      %2278 = vmatprep.subr.bf16.mxu0 0
      %2279 = vmatpush2.bf16.xpose.msra.mxu0 0
      %2280 = vmatprep.subr.bf16.mxu0 0
      %2281 = vmatpush2.bf16.xpose.msra.mxu0 0
      %2282 = vmatprep.subr.bf16.mxu0 0
      %2283 = vmatpush2.bf16.xpose.msra.mxu0 0
      %2284 = vmatprep.subr.bf16.mxu0 0
      %2285 = vmatpush2.bf16.xpose.msra.mxu0 0
      %2286 = vmatprep.mubr.bf16.mxu0 0
      %2287 = vmatmul.mubr.bf16.gmra.mxu0 %v2249
      %v2288 = vpop.f32.mrf.mxu0
      %v2289 = vadd.f32 %v603, %v2288
      %v2290 = vpop.f32.mrf.mxu0
      %v2291 = vpop.f32.mrf.mxu0
      %v2292 = vadd.f32 %v604, %v2291
      %v2293 = vpop.f32.mrf.mxu0
      %2294 = vdwg.mxu0
      %2295 = vrot.lane.b32.xlu0 %v1130, 112
      %v2296 = vpop.permute.xlu0 %2295
      %2297 = vrot.lane.b32.xlu0 %v1134, 112
      %v2298 = vpop.permute.xlu0 %2297
      %v2300 = vsel %vm1139, %v2296, 0
      %v2303 = vsel %vm1139, %v2298, 0
      %2305 = vmatprep.subr.bf16.mxu0 0
      %2306 = vmatpush1.bf16.xpose.msra.mxu0 0
      %2307 = vmatprep.subr.bf16.mxu0 0
      %2308 = vmatpush1.bf16.xpose.msra.mxu0 0
      %2309 = vmatprep.subr.bf16.mxu0 0
      %2310 = vmatpush1.bf16.xpose.msra.mxu0 0
      %2311 = vmatprep.subr.bf16.mxu0 0
      %2312 = vmatpush1.bf16.xpose.msra.mxu0 0
      %2313 = vmatprep.subr.bf16.mxu0 0
      %2314 = vmatpush1.bf16.xpose.msra.mxu0 0
      %2315 = vmatprep.subr.bf16.mxu0 0
      %2316 = vmatpush1.bf16.xpose.msra.mxu0 0
      %2317 = vmatprep.subr.bf16.mxu0 0
      %2318 = vmatpush1.bf16.xpose.msra.mxu0 0
      %2319 = vmatprep.subr.bf16.mxu0 0
      %2320 = vmatpush1.bf16.xpose.msra.mxu0 %v2303
      %2321 = vmatprep.subr.bf16.mxu0 0
      %2322 = vmatpush2.bf16.xpose.msra.mxu0 0
      %2323 = vmatprep.subr.bf16.mxu0 0
      %2324 = vmatpush2.bf16.xpose.msra.mxu0 0
      %2325 = vmatprep.subr.bf16.mxu0 0
      %2326 = vmatpush2.bf16.xpose.msra.mxu0 0
      %2327 = vmatprep.subr.bf16.mxu0 0
      %2328 = vmatpush2.bf16.xpose.msra.mxu0 0
      %2329 = vmatprep.subr.bf16.mxu0 0
      %2330 = vmatpush2.bf16.xpose.msra.mxu0 0
      %2331 = vmatprep.subr.bf16.mxu0 0
      %2332 = vmatpush2.bf16.xpose.msra.mxu0 0
      %2333 = vmatprep.subr.bf16.mxu0 0
      %2334 = vmatpush2.bf16.xpose.msra.mxu0 0
      %2335 = vmatprep.subr.bf16.mxu0 0
      %2336 = vmatpush2.bf16.xpose.msra.mxu0 0
      %2337 = vmatprep.mubr.bf16.mxu0 0
      %2338 = vmatmul.mubr.bf16.gmra.mxu0 %v2300
      %v2339 = vpop.f32.mrf.mxu0
      %v2340 = vadd.f32 %v603, %v2339
      %v2341 = vpop.f32.mrf.mxu0
      %v2342 = vpop.f32.mrf.mxu0
      %v2343 = vadd.f32 %v604, %v2342
      %v2344 = vpop.f32.mrf.mxu0
      %2345 = vdwg.mxu0
      %v2346 = vsel %vm1328, %v2187, -inf
      %2347 = vmax.xlane.f32.xlu0 %v2346
      %v2348 = vpop.xlane.xlu0 %2347
      %v2349 = vsel %vm1328, %v2190, -inf
      %2350 = vmax.xlane.f32.xlu0 %v2349
      %v2351 = vpop.xlane.xlu0 %2350
      %v2352 = vsel %vm1328, %v2238, -inf
      %2353 = vmax.xlane.f32.xlu0 %v2352
      %v2354 = vpop.xlane.xlu0 %2353
      %v2355 = vsel %vm1328, %v2241, -inf
      %2356 = vmax.xlane.f32.xlu0 %v2355
      %v2357 = vpop.xlane.xlu0 %2356
      %v2358 = vsel %vm1328, %v2289, -inf
      %2359 = vmax.xlane.f32.xlu0 %v2358
      %v2360 = vpop.xlane.xlu0 %2359
      %v2361 = vsel %vm1328, %v2292, -inf
      %2362 = vmax.xlane.f32.xlu0 %v2361
      %v2363 = vpop.xlane.xlu0 %2362
      %v2364 = vsel %vm1328, %v2340, -inf
      %2365 = vmax.xlane.f32.xlu0 %v2364
      %v2366 = vpop.xlane.xlu0 %2365
      %v2367 = vsel %vm1328, %v2343, -inf
      %2368 = vmax.xlane.f32.xlu0 %v2367
      %v2369 = vpop.xlane.xlu0 %2368
      %v2370 = vsub.f32 %v2187, %v2348
      %v2371 = vsub.f32 %v2190, %v2351
      %v2372 = vsub.f32 %v2238, %v2354
      %v2373 = vsub.f32 %v2241, %v2357
      %v2374 = vsub.f32 %v2289, %v2360
      %v2375 = vsub.f32 %v2292, %v2363
      %v2376 = vsub.f32 %v2340, %v2366
      %v2377 = vsub.f32 %v2343, %v2369
      %v2378 = vmul.f32 %v2370, 1.442695
      %v2379 = vpow.pop %v2378
      %v2380 = vmul.f32 %v2371, 1.442695
      %v2381 = vpow.pop %v2380
      %v2382 = vmul.f32 %v2372, 1.442695
      %v2383 = vpow.pop %v2382
      %v2384 = vmul.f32 %v2373, 1.442695
      %v2385 = vpow.pop %v2384
      %v2386 = vmul.f32 %v2374, 1.442695
      %v2387 = vpow.pop %v2386
      %v2388 = vmul.f32 %v2375, 1.442695
      %v2389 = vpow.pop %v2388
      %v2390 = vmul.f32 %v2376, 1.442695
      %v2391 = vpow.pop %v2390
      %v2392 = vmul.f32 %v2377, 1.442695
      %v2393 = vpow.pop %v2392
      %v2394 = vsel %vm1328, %v2379, 0.0
      %2395 = vadd.xlane.f32.xlu0 %v2394
      %v2396 = vpop.xlane.xlu0 %2395
      %v2397 = vsel %vm1328, %v2381, 0.0
      %2398 = vadd.xlane.f32.xlu0 %v2397
      %v2399 = vpop.xlane.xlu0 %2398
      %v2400 = vsel %vm1328, %v2383, 0.0
      %2401 = vadd.xlane.f32.xlu0 %v2400
      %v2402 = vpop.xlane.xlu0 %2401
      %v2403 = vsel %vm1328, %v2385, 0.0
      %2404 = vadd.xlane.f32.xlu0 %v2403
      %v2405 = vpop.xlane.xlu0 %2404
      %v2406 = vsel %vm1328, %v2387, 0.0
      %2407 = vadd.xlane.f32.xlu0 %v2406
      %v2408 = vpop.xlane.xlu0 %2407
      %v2409 = vsel %vm1328, %v2389, 0.0
      %2410 = vadd.xlane.f32.xlu0 %v2409
      %v2411 = vpop.xlane.xlu0 %2410
      %v2412 = vsel %vm1328, %v2391, 0.0
      %2413 = vadd.xlane.f32.xlu0 %v2412
      %v2414 = vpop.xlane.xlu0 %2413
      %v2415 = vsel %vm1328, %v2393, 0.0
      %2416 = vadd.xlane.f32.xlu0 %v2415
      %v2417 = vpop.xlane.xlu0 %2416
      %v2418 = vrcp.pop %v2396
      %v2419 = vrcp.pop %v2399
      %v2420 = vrcp.pop %v2402
      %v2421 = vrcp.pop %v2405
      %v2422 = vrcp.pop %v2408
      %v2423 = vrcp.pop %v2411
      %v2424 = vrcp.pop %v2414
      %v2425 = vrcp.pop %v2417
      %v2426 = vmul.f32 %v2379, %v2418
      %v2427 = vmul.f32 %v2381, %v2419
      %v2428 = vmul.f32 %v2383, %v2420
      %v2429 = vmul.f32 %v2385, %v2421
      %v2430 = vmul.f32 %v2387, %v2422
      %v2431 = vmul.f32 %v2389, %v2423
      %v2432 = vmul.f32 %v2391, %v2424
      %v2433 = vmul.f32 %v2393, %v2425
      %v2434 = vpack.c.bf16 %v2427, %v2426
      %v2435 = vpack.c.bf16 %v2429, %v2428
      %v2436 = vpack.c.bf16 %v2431, %v2430
      %v2437 = vpack.c.bf16 %v2433, %v2432
      %2438 = vrot.lane.b32.xlu0 %v1135, 112
      %v2439 = vpop.permute.xlu0 %2438
      %v2442 = vsel %vm1328, %v2434, 0
      %2444 = vmatprep.subr.bf16.mxu0 0
      %2445 = vmatpush1.bf16.msra.mxu0 0
      %2446 = vmatprep.subr.bf16.mxu0 0
      %2447 = vmatpush1.bf16.msra.mxu0 0
      %2448 = vmatprep.subr.bf16.mxu0 0
      %2449 = vmatpush1.bf16.msra.mxu0 0
      %2450 = vmatprep.subr.bf16.mxu0 0
      %2451 = vmatpush1.bf16.msra.mxu0 0
      %2452 = vmatprep.subr.bf16.mxu0 0
      %2453 = vmatpush1.bf16.msra.mxu0 0
      %2454 = vmatprep.subr.bf16.mxu0 0
      %2455 = vmatpush1.bf16.msra.mxu0 0
      %2456 = vmatprep.subr.bf16.mxu0 0
      %2457 = vmatpush1.bf16.msra.mxu0 0
      %2458 = vmatprep.subr.bf16.mxu0 0
      %2459 = vmatpush1.bf16.msra.mxu0 %v2439
      %2460 = vmatprep.subr.bf16.mxu0 0
      %2461 = vmatpush2.bf16.msra.mxu0 0
      %2462 = vmatprep.subr.bf16.mxu0 0
      %2463 = vmatpush2.bf16.msra.mxu0 0
      %2464 = vmatprep.subr.bf16.mxu0 0
      %2465 = vmatpush2.bf16.msra.mxu0 0
      %2466 = vmatprep.subr.bf16.mxu0 0
      %2467 = vmatpush2.bf16.msra.mxu0 0
      %2468 = vmatprep.subr.bf16.mxu0 0
      %2469 = vmatpush2.bf16.msra.mxu0 0
      %2470 = vmatprep.subr.bf16.mxu0 0
      %2471 = vmatpush2.bf16.msra.mxu0 0
      %2472 = vmatprep.subr.bf16.mxu0 0
      %2473 = vmatpush2.bf16.msra.mxu0 0
      %2474 = vmatprep.subr.bf16.mxu0 0
      %2475 = vmatpush2.bf16.msra.mxu0 0
      %2476 = vmatprep.mubr.bf16.mxu0 0
      %2477 = vmatmul.mubr.bf16.gmra.mxu0 %v2442
      %v2478 = vpop.f32.mrf.mxu0
      %v2479 = vadd.f32 0.0, %v2478
      %v2480 = vpop.f32.mrf.mxu0
      %v2481 = vpop.f32.mrf.mxu0
      %v2482 = vadd.f32 0.0, %v2481
      %v2483 = vpop.f32.mrf.mxu0
      %2484 = vdwg.mxu0
      %2485 = vrot.lane.b32.xlu0 %v1136, 112
      %v2486 = vpop.permute.xlu0 %2485
      %v2489 = vsel %vm1328, %v2435, 0
      %2491 = vmatprep.subr.bf16.mxu0 0
      %2492 = vmatpush1.bf16.msra.mxu0 0
      %2493 = vmatprep.subr.bf16.mxu0 0
      %2494 = vmatpush1.bf16.msra.mxu0 0
      %2495 = vmatprep.subr.bf16.mxu0 0
      %2496 = vmatpush1.bf16.msra.mxu0 0
      %2497 = vmatprep.subr.bf16.mxu0 0
      %2498 = vmatpush1.bf16.msra.mxu0 0
      %2499 = vmatprep.subr.bf16.mxu0 0
      %2500 = vmatpush1.bf16.msra.mxu0 0
      %2501 = vmatprep.subr.bf16.mxu0 0
      %2502 = vmatpush1.bf16.msra.mxu0 0
      %2503 = vmatprep.subr.bf16.mxu0 0
      %2504 = vmatpush1.bf16.msra.mxu0 0
      %2505 = vmatprep.subr.bf16.mxu0 0
      %2506 = vmatpush1.bf16.msra.mxu0 %v2486
      %2507 = vmatprep.subr.bf16.mxu0 0
      %2508 = vmatpush2.bf16.msra.mxu0 0
      %2509 = vmatprep.subr.bf16.mxu0 0
      %2510 = vmatpush2.bf16.msra.mxu0 0
      %2511 = vmatprep.subr.bf16.mxu0 0
      %2512 = vmatpush2.bf16.msra.mxu0 0
      %2513 = vmatprep.subr.bf16.mxu0 0
      %2514 = vmatpush2.bf16.msra.mxu0 0
      %2515 = vmatprep.subr.bf16.mxu0 0
      %2516 = vmatpush2.bf16.msra.mxu0 0
      %2517 = vmatprep.subr.bf16.mxu0 0
      %2518 = vmatpush2.bf16.msra.mxu0 0
      %2519 = vmatprep.subr.bf16.mxu0 0
      %2520 = vmatpush2.bf16.msra.mxu0 0
      %2521 = vmatprep.subr.bf16.mxu0 0
      %2522 = vmatpush2.bf16.msra.mxu0 0
      %2523 = vmatprep.mubr.bf16.mxu0 0
      %2524 = vmatmul.mubr.bf16.gmra.mxu0 %v2489
      %v2525 = vpop.f32.mrf.mxu0
      %v2526 = vadd.f32 0.0, %v2525
      %v2527 = vpop.f32.mrf.mxu0
      %v2528 = vpop.f32.mrf.mxu0
      %v2529 = vadd.f32 0.0, %v2528
      %v2530 = vpop.f32.mrf.mxu0
      %2531 = vdwg.mxu0
      %2532 = vrot.lane.b32.xlu0 %v1137, 112
      %v2533 = vpop.permute.xlu0 %2532
      %v2536 = vsel %vm1328, %v2436, 0
      %2538 = vmatprep.subr.bf16.mxu0 0
      %2539 = vmatpush1.bf16.msra.mxu0 0
      %2540 = vmatprep.subr.bf16.mxu0 0
      %2541 = vmatpush1.bf16.msra.mxu0 0
      %2542 = vmatprep.subr.bf16.mxu0 0
      %2543 = vmatpush1.bf16.msra.mxu0 0
      %2544 = vmatprep.subr.bf16.mxu0 0
      %2545 = vmatpush1.bf16.msra.mxu0 0
      %2546 = vmatprep.subr.bf16.mxu0 0
      %2547 = vmatpush1.bf16.msra.mxu0 0
      %2548 = vmatprep.subr.bf16.mxu0 0
      %2549 = vmatpush1.bf16.msra.mxu0 0
      %2550 = vmatprep.subr.bf16.mxu0 0
      %2551 = vmatpush1.bf16.msra.mxu0 0
      %2552 = vmatprep.subr.bf16.mxu0 0
      %2553 = vmatpush1.bf16.msra.mxu0 %v2533
      %2554 = vmatprep.subr.bf16.mxu0 0
      %2555 = vmatpush2.bf16.msra.mxu0 0
      %2556 = vmatprep.subr.bf16.mxu0 0
      %2557 = vmatpush2.bf16.msra.mxu0 0
      %2558 = vmatprep.subr.bf16.mxu0 0
      %2559 = vmatpush2.bf16.msra.mxu0 0
      %2560 = vmatprep.subr.bf16.mxu0 0
      %2561 = vmatpush2.bf16.msra.mxu0 0
      %2562 = vmatprep.subr.bf16.mxu0 0
      %2563 = vmatpush2.bf16.msra.mxu0 0
      %2564 = vmatprep.subr.bf16.mxu0 0
      %2565 = vmatpush2.bf16.msra.mxu0 0
      %2566 = vmatprep.subr.bf16.mxu0 0
      %2567 = vmatpush2.bf16.msra.mxu0 0
      %2568 = vmatprep.subr.bf16.mxu0 0
      %2569 = vmatpush2.bf16.msra.mxu0 0
      %2570 = vmatprep.mubr.bf16.mxu0 0
      %2571 = vmatmul.mubr.bf16.gmra.mxu0 %v2536
      %v2572 = vpop.f32.mrf.mxu0
      %v2573 = vadd.f32 0.0, %v2572
      %v2574 = vpop.f32.mrf.mxu0
      %v2575 = vpop.f32.mrf.mxu0
      %v2576 = vadd.f32 0.0, %v2575
      %v2577 = vpop.f32.mrf.mxu0
      %2578 = vdwg.mxu0
      %2579 = vrot.lane.b32.xlu0 %v1138, 112
      %v2580 = vpop.permute.xlu0 %2579
      %v2583 = vsel %vm1328, %v2437, 0
      %2585 = vmatprep.subr.bf16.mxu0 0
      %2586 = vmatpush1.bf16.msra.mxu0 0
      %2587 = vmatprep.subr.bf16.mxu0 0
      %2588 = vmatpush1.bf16.msra.mxu0 0
      %2589 = vmatprep.subr.bf16.mxu0 0
      %2590 = vmatpush1.bf16.msra.mxu0 0
      %2591 = vmatprep.subr.bf16.mxu0 0
      %2592 = vmatpush1.bf16.msra.mxu0 0
      %2593 = vmatprep.subr.bf16.mxu0 0
      %2594 = vmatpush1.bf16.msra.mxu0 0
      %2595 = vmatprep.subr.bf16.mxu0 0
      %2596 = vmatpush1.bf16.msra.mxu0 0
      %2597 = vmatprep.subr.bf16.mxu0 0
      %2598 = vmatpush1.bf16.msra.mxu0 0
      %2599 = vmatprep.subr.bf16.mxu0 0
      %2600 = vmatpush1.bf16.msra.mxu0 %v2580
      %2601 = vmatprep.subr.bf16.mxu0 0
      %2602 = vmatpush2.bf16.msra.mxu0 0
      %2603 = vmatprep.subr.bf16.mxu0 0
      %2604 = vmatpush2.bf16.msra.mxu0 0
      %2605 = vmatprep.subr.bf16.mxu0 0
      %2606 = vmatpush2.bf16.msra.mxu0 0
      %2607 = vmatprep.subr.bf16.mxu0 0
      %2608 = vmatpush2.bf16.msra.mxu0 0
      %2609 = vmatprep.subr.bf16.mxu0 0
      %2610 = vmatpush2.bf16.msra.mxu0 0
      %2611 = vmatprep.subr.bf16.mxu0 0
      %2612 = vmatpush2.bf16.msra.mxu0 0
      %2613 = vmatprep.subr.bf16.mxu0 0
      %2614 = vmatpush2.bf16.msra.mxu0 0
      %2615 = vmatprep.subr.bf16.mxu0 0
      %2616 = vmatpush2.bf16.msra.mxu0 0
      %2617 = vmatprep.mubr.bf16.mxu0 0
      %2618 = vmatmul.mubr.bf16.gmra.mxu0 %v2583
      %v2619 = vpop.f32.mrf.mxu0
      %v2620 = vadd.f32 0.0, %v2619
      %v2621 = vpop.f32.mrf.mxu0
      %v2622 = vpop.f32.mrf.mxu0
      %v2623 = vadd.f32 0.0, %v2622
      %v2624 = vpop.f32.mrf.mxu0
      %2625 = vdwg.mxu0
      %2634 = vrot.lane.b32.xlu0 %v2479, 16
      %v2635 = vpop.permute.xlu0 %2634
      %2636 = vrot.lane.b32.xlu0 %v2482, 16
      %v2637 = vpop.permute.xlu0 %2636
      %2638 = vrot.lane.b32.xlu0 %v2526, 16
      %v2639 = vpop.permute.xlu0 %2638
      %2640 = vrot.lane.b32.xlu0 %v2529, 16
      %v2641 = vpop.permute.xlu0 %2640
      %2642 = vrot.lane.b32.xlu0 %v2573, 16
      %v2643 = vpop.permute.xlu0 %2642
      %2644 = vrot.lane.b32.xlu0 %v2576, 16
      %v2645 = vpop.permute.xlu0 %2644
      %2646 = vrot.lane.b32.xlu0 %v2620, 16
      %v2647 = vpop.permute.xlu0 %2646
      %2648 = vrot.lane.b32.xlu0 %v2623, 16
      %v2649 = vpop.permute.xlu0 %2648
      %vm2658 = vcmask 195712
      %2659 = vst.msk [vmem:[#allocation2] sm:$0xff] %vm2658, %v2635
      %2660 = vst.msk [vmem:[#allocation2 + $0x8] sm:$0xff] %vm2658, %v2637
      %2661 = vst.msk [vmem:[#allocation2 + $0x10] sm:$0xff] %vm2658, %v2639
      %2662 = vst.msk [vmem:[#allocation2 + $0x18] sm:$0xff] %vm2658, %v2641
      %2663 = vst.msk [vmem:[#allocation2 + $0x20] sm:$0xff] %vm2658, %v2643
      %2664 = vst.msk [vmem:[#allocation2 + $0x28] sm:$0xff] %vm2658, %v2645
      %2665 = vst.msk [vmem:[#allocation2 + $0x30] sm:$0xff] %vm2658, %v2647
      %2666 = vst.msk [vmem:[#allocation2 + $0x38] sm:$0xff] %vm2658, %v2649
      %2667 = vrot.lane.b32.xlu0 %v1127, 104
      %v2668 = vpop.permute.xlu0 %2667
      %2669 = vrot.lane.b32.xlu0 %v1131, 104
      %v2670 = vpop.permute.xlu0 %2669
      %v2672 = vsel %vm1139, %v2668, 0
      %v2675 = vsel %vm1139, %v2670, 0
      %2677 = vmatprep.subr.bf16.mxu0 0
      %2678 = vmatpush1.bf16.xpose.msra.mxu0 0
      %2679 = vmatprep.subr.bf16.mxu0 0
      %2680 = vmatpush1.bf16.xpose.msra.mxu0 0
      %2681 = vmatprep.subr.bf16.mxu0 0
      %2682 = vmatpush1.bf16.xpose.msra.mxu0 0
      %2683 = vmatprep.subr.bf16.mxu0 0
      %2684 = vmatpush1.bf16.xpose.msra.mxu0 0
      %2685 = vmatprep.subr.bf16.mxu0 0
      %2686 = vmatpush1.bf16.xpose.msra.mxu0 0
      %2687 = vmatprep.subr.bf16.mxu0 0
      %2688 = vmatpush1.bf16.xpose.msra.mxu0 0
      %2689 = vmatprep.subr.bf16.mxu0 0
      %2690 = vmatpush1.bf16.xpose.msra.mxu0 0
      %2691 = vmatprep.subr.bf16.mxu0 0
      %2692 = vmatpush1.bf16.xpose.msra.mxu0 %v2675
      %2693 = vmatprep.subr.bf16.mxu0 0
      %2694 = vmatpush2.bf16.xpose.msra.mxu0 0
      %2695 = vmatprep.subr.bf16.mxu0 0
      %2696 = vmatpush2.bf16.xpose.msra.mxu0 0
      %2697 = vmatprep.subr.bf16.mxu0 0
      %2698 = vmatpush2.bf16.xpose.msra.mxu0 0
      %2699 = vmatprep.subr.bf16.mxu0 0
      %2700 = vmatpush2.bf16.xpose.msra.mxu0 0
      %2701 = vmatprep.subr.bf16.mxu0 0
      %2702 = vmatpush2.bf16.xpose.msra.mxu0 0
      %2703 = vmatprep.subr.bf16.mxu0 0
      %2704 = vmatpush2.bf16.xpose.msra.mxu0 0
      %2705 = vmatprep.subr.bf16.mxu0 0
      %2706 = vmatpush2.bf16.xpose.msra.mxu0 0
      %2707 = vmatprep.subr.bf16.mxu0 0
      %2708 = vmatpush2.bf16.xpose.msra.mxu0 0
      %2709 = vmatprep.mubr.bf16.mxu0 0
      %2710 = vmatmul.mubr.bf16.gmra.mxu0 %v2672
      %v2711 = vpop.f32.mrf.mxu0
      %v2712 = vadd.f32 %v603, %v2711
      %v2713 = vpop.f32.mrf.mxu0
      %v2714 = vpop.f32.mrf.mxu0
      %v2715 = vadd.f32 %v604, %v2714
      %v2716 = vpop.f32.mrf.mxu0
      %2717 = vdwg.mxu0
      %2718 = vrot.lane.b32.xlu0 %v1128, 104
      %v2719 = vpop.permute.xlu0 %2718
      %2720 = vrot.lane.b32.xlu0 %v1132, 104
      %v2721 = vpop.permute.xlu0 %2720
      %v2723 = vsel %vm1139, %v2719, 0
      %v2726 = vsel %vm1139, %v2721, 0
      %2728 = vmatprep.subr.bf16.mxu0 0
      %2729 = vmatpush1.bf16.xpose.msra.mxu0 0
      %2730 = vmatprep.subr.bf16.mxu0 0
      %2731 = vmatpush1.bf16.xpose.msra.mxu0 0
      %2732 = vmatprep.subr.bf16.mxu0 0
      %2733 = vmatpush1.bf16.xpose.msra.mxu0 0
      %2734 = vmatprep.subr.bf16.mxu0 0
      %2735 = vmatpush1.bf16.xpose.msra.mxu0 0
      %2736 = vmatprep.subr.bf16.mxu0 0
      %2737 = vmatpush1.bf16.xpose.msra.mxu0 0
      %2738 = vmatprep.subr.bf16.mxu0 0
      %2739 = vmatpush1.bf16.xpose.msra.mxu0 0
      %2740 = vmatprep.subr.bf16.mxu0 0
      %2741 = vmatpush1.bf16.xpose.msra.mxu0 0
      %2742 = vmatprep.subr.bf16.mxu0 0
      %2743 = vmatpush1.bf16.xpose.msra.mxu0 %v2726
      %2744 = vmatprep.subr.bf16.mxu0 0
      %2745 = vmatpush2.bf16.xpose.msra.mxu0 0
      %2746 = vmatprep.subr.bf16.mxu0 0
      %2747 = vmatpush2.bf16.xpose.msra.mxu0 0
      %2748 = vmatprep.subr.bf16.mxu0 0
      %2749 = vmatpush2.bf16.xpose.msra.mxu0 0
      %2750 = vmatprep.subr.bf16.mxu0 0
      %2751 = vmatpush2.bf16.xpose.msra.mxu0 0
      %2752 = vmatprep.subr.bf16.mxu0 0
      %2753 = vmatpush2.bf16.xpose.msra.mxu0 0
      %2754 = vmatprep.subr.bf16.mxu0 0
      %2755 = vmatpush2.bf16.xpose.msra.mxu0 0
      %2756 = vmatprep.subr.bf16.mxu0 0
      %2757 = vmatpush2.bf16.xpose.msra.mxu0 0
      %2758 = vmatprep.subr.bf16.mxu0 0
      %2759 = vmatpush2.bf16.xpose.msra.mxu0 0
      %2760 = vmatprep.mubr.bf16.mxu0 0
      %2761 = vmatmul.mubr.bf16.gmra.mxu0 %v2723
      %v2762 = vpop.f32.mrf.mxu0
      %v2763 = vadd.f32 %v603, %v2762
      %v2764 = vpop.f32.mrf.mxu0
      %v2765 = vpop.f32.mrf.mxu0
      %v2766 = vadd.f32 %v604, %v2765
      %v2767 = vpop.f32.mrf.mxu0
      %2768 = vdwg.mxu0
      %2769 = vrot.lane.b32.xlu0 %v1129, 104
      %v2770 = vpop.permute.xlu0 %2769
      %2771 = vrot.lane.b32.xlu0 %v1133, 104
      %v2772 = vpop.permute.xlu0 %2771
      %v2774 = vsel %vm1139, %v2770, 0
      %v2777 = vsel %vm1139, %v2772, 0
      %2779 = vmatprep.subr.bf16.mxu0 0
      %2780 = vmatpush1.bf16.xpose.msra.mxu0 0
      %2781 = vmatprep.subr.bf16.mxu0 0
      %2782 = vmatpush1.bf16.xpose.msra.mxu0 0
      %2783 = vmatprep.subr.bf16.mxu0 0
      %2784 = vmatpush1.bf16.xpose.msra.mxu0 0
      %2785 = vmatprep.subr.bf16.mxu0 0
      %2786 = vmatpush1.bf16.xpose.msra.mxu0 0
      %2787 = vmatprep.subr.bf16.mxu0 0
      %2788 = vmatpush1.bf16.xpose.msra.mxu0 0
      %2789 = vmatprep.subr.bf16.mxu0 0
      %2790 = vmatpush1.bf16.xpose.msra.mxu0 0
      %2791 = vmatprep.subr.bf16.mxu0 0
      %2792 = vmatpush1.bf16.xpose.msra.mxu0 0
      %2793 = vmatprep.subr.bf16.mxu0 0
      %2794 = vmatpush1.bf16.xpose.msra.mxu0 %v2777
      %2795 = vmatprep.subr.bf16.mxu0 0
      %2796 = vmatpush2.bf16.xpose.msra.mxu0 0
      %2797 = vmatprep.subr.bf16.mxu0 0
      %2798 = vmatpush2.bf16.xpose.msra.mxu0 0
      %2799 = vmatprep.subr.bf16.mxu0 0
      %2800 = vmatpush2.bf16.xpose.msra.mxu0 0
      %2801 = vmatprep.subr.bf16.mxu0 0
      %2802 = vmatpush2.bf16.xpose.msra.mxu0 0
      %2803 = vmatprep.subr.bf16.mxu0 0
      %2804 = vmatpush2.bf16.xpose.msra.mxu0 0
      %2805 = vmatprep.subr.bf16.mxu0 0
      %2806 = vmatpush2.bf16.xpose.msra.mxu0 0
      %2807 = vmatprep.subr.bf16.mxu0 0
      %2808 = vmatpush2.bf16.xpose.msra.mxu0 0
      %2809 = vmatprep.subr.bf16.mxu0 0
      %2810 = vmatpush2.bf16.xpose.msra.mxu0 0
      %2811 = vmatprep.mubr.bf16.mxu0 0
      %2812 = vmatmul.mubr.bf16.gmra.mxu0 %v2774
      %v2813 = vpop.f32.mrf.mxu0
      %v2814 = vadd.f32 %v603, %v2813
      %v2815 = vpop.f32.mrf.mxu0
      %v2816 = vpop.f32.mrf.mxu0
      %v2817 = vadd.f32 %v604, %v2816
      %v2818 = vpop.f32.mrf.mxu0
      %2819 = vdwg.mxu0
      %2820 = vrot.lane.b32.xlu0 %v1130, 104
      %v2821 = vpop.permute.xlu0 %2820
      %2822 = vrot.lane.b32.xlu0 %v1134, 104
      %v2823 = vpop.permute.xlu0 %2822
      %v2825 = vsel %vm1139, %v2821, 0
      %v2828 = vsel %vm1139, %v2823, 0
      %2830 = vmatprep.subr.bf16.mxu0 0
      %2831 = vmatpush1.bf16.xpose.msra.mxu0 0
      %2832 = vmatprep.subr.bf16.mxu0 0
      %2833 = vmatpush1.bf16.xpose.msra.mxu0 0
      %2834 = vmatprep.subr.bf16.mxu0 0
      %2835 = vmatpush1.bf16.xpose.msra.mxu0 0
      %2836 = vmatprep.subr.bf16.mxu0 0
      %2837 = vmatpush1.bf16.xpose.msra.mxu0 0
      %2838 = vmatprep.subr.bf16.mxu0 0
      %2839 = vmatpush1.bf16.xpose.msra.mxu0 0
      %2840 = vmatprep.subr.bf16.mxu0 0
      %2841 = vmatpush1.bf16.xpose.msra.mxu0 0
      %2842 = vmatprep.subr.bf16.mxu0 0
      %2843 = vmatpush1.bf16.xpose.msra.mxu0 0
      %2844 = vmatprep.subr.bf16.mxu0 0
      %2845 = vmatpush1.bf16.xpose.msra.mxu0 %v2828
      %2846 = vmatprep.subr.bf16.mxu0 0
      %2847 = vmatpush2.bf16.xpose.msra.mxu0 0
      %2848 = vmatprep.subr.bf16.mxu0 0
      %2849 = vmatpush2.bf16.xpose.msra.mxu0 0
      %2850 = vmatprep.subr.bf16.mxu0 0
      %2851 = vmatpush2.bf16.xpose.msra.mxu0 0
      %2852 = vmatprep.subr.bf16.mxu0 0
      %2853 = vmatpush2.bf16.xpose.msra.mxu0 0
      %2854 = vmatprep.subr.bf16.mxu0 0
      %2855 = vmatpush2.bf16.xpose.msra.mxu0 0
      %2856 = vmatprep.subr.bf16.mxu0 0
      %2857 = vmatpush2.bf16.xpose.msra.mxu0 0
      %2858 = vmatprep.subr.bf16.mxu0 0
      %2859 = vmatpush2.bf16.xpose.msra.mxu0 0
      %2860 = vmatprep.subr.bf16.mxu0 0
      %2861 = vmatpush2.bf16.xpose.msra.mxu0 0
      %2862 = vmatprep.mubr.bf16.mxu0 0
      %2863 = vmatmul.mubr.bf16.gmra.mxu0 %v2825
      %v2864 = vpop.f32.mrf.mxu0
      %v2865 = vadd.f32 %v603, %v2864
      %v2866 = vpop.f32.mrf.mxu0
      %v2867 = vpop.f32.mrf.mxu0
      %v2868 = vadd.f32 %v604, %v2867
      %v2869 = vpop.f32.mrf.mxu0
      %2870 = vdwg.mxu0
      %v2871 = vsel %vm1328, %v2712, -inf
      %2872 = vmax.xlane.f32.xlu0 %v2871
      %v2873 = vpop.xlane.xlu0 %2872
      %v2874 = vsel %vm1328, %v2715, -inf
      %2875 = vmax.xlane.f32.xlu0 %v2874
      %v2876 = vpop.xlane.xlu0 %2875
      %v2877 = vsel %vm1328, %v2763, -inf
      %2878 = vmax.xlane.f32.xlu0 %v2877
      %v2879 = vpop.xlane.xlu0 %2878
      %v2880 = vsel %vm1328, %v2766, -inf
      %2881 = vmax.xlane.f32.xlu0 %v2880
      %v2882 = vpop.xlane.xlu0 %2881
      %v2883 = vsel %vm1328, %v2814, -inf
      %2884 = vmax.xlane.f32.xlu0 %v2883
      %v2885 = vpop.xlane.xlu0 %2884
      %v2886 = vsel %vm1328, %v2817, -inf
      %2887 = vmax.xlane.f32.xlu0 %v2886
      %v2888 = vpop.xlane.xlu0 %2887
      %v2889 = vsel %vm1328, %v2865, -inf
      %2890 = vmax.xlane.f32.xlu0 %v2889
      %v2891 = vpop.xlane.xlu0 %2890
      %v2892 = vsel %vm1328, %v2868, -inf
      %2893 = vmax.xlane.f32.xlu0 %v2892
      %v2894 = vpop.xlane.xlu0 %2893
      %v2895 = vsub.f32 %v2712, %v2873
      %v2896 = vsub.f32 %v2715, %v2876
      %v2897 = vsub.f32 %v2763, %v2879
      %v2898 = vsub.f32 %v2766, %v2882
      %v2899 = vsub.f32 %v2814, %v2885
      %v2900 = vsub.f32 %v2817, %v2888
      %v2901 = vsub.f32 %v2865, %v2891
      %v2902 = vsub.f32 %v2868, %v2894
      %v2903 = vmul.f32 %v2895, 1.442695
      %v2904 = vpow.pop %v2903
      %v2905 = vmul.f32 %v2896, 1.442695
      %v2906 = vpow.pop %v2905
      %v2907 = vmul.f32 %v2897, 1.442695
      %v2908 = vpow.pop %v2907
      %v2909 = vmul.f32 %v2898, 1.442695
      %v2910 = vpow.pop %v2909
      %v2911 = vmul.f32 %v2899, 1.442695
      %v2912 = vpow.pop %v2911
      %v2913 = vmul.f32 %v2900, 1.442695
      %v2914 = vpow.pop %v2913
      %v2915 = vmul.f32 %v2901, 1.442695
      %v2916 = vpow.pop %v2915
      %v2917 = vmul.f32 %v2902, 1.442695
      %v2918 = vpow.pop %v2917
      %v2919 = vsel %vm1328, %v2904, 0.0
      %2920 = vadd.xlane.f32.xlu0 %v2919
      %v2921 = vpop.xlane.xlu0 %2920
      %v2922 = vsel %vm1328, %v2906, 0.0
      %2923 = vadd.xlane.f32.xlu0 %v2922
      %v2924 = vpop.xlane.xlu0 %2923
      %v2925 = vsel %vm1328, %v2908, 0.0
      %2926 = vadd.xlane.f32.xlu0 %v2925
      %v2927 = vpop.xlane.xlu0 %2926
      %v2928 = vsel %vm1328, %v2910, 0.0
      %2929 = vadd.xlane.f32.xlu0 %v2928
      %v2930 = vpop.xlane.xlu0 %2929
      %v2931 = vsel %vm1328, %v2912, 0.0
      %2932 = vadd.xlane.f32.xlu0 %v2931
      %v2933 = vpop.xlane.xlu0 %2932
      %v2934 = vsel %vm1328, %v2914, 0.0
      %2935 = vadd.xlane.f32.xlu0 %v2934
      %v2936 = vpop.xlane.xlu0 %2935
      %v2937 = vsel %vm1328, %v2916, 0.0
      %2938 = vadd.xlane.f32.xlu0 %v2937
      %v2939 = vpop.xlane.xlu0 %2938
      %v2940 = vsel %vm1328, %v2918, 0.0
      %2941 = vadd.xlane.f32.xlu0 %v2940
      %v2942 = vpop.xlane.xlu0 %2941
      %v2943 = vrcp.pop %v2921
      %v2944 = vrcp.pop %v2924
      %v2945 = vrcp.pop %v2927
      %v2946 = vrcp.pop %v2930
      %v2947 = vrcp.pop %v2933
      %v2948 = vrcp.pop %v2936
      %v2949 = vrcp.pop %v2939
      %v2950 = vrcp.pop %v2942
      %v2951 = vmul.f32 %v2904, %v2943
      %v2952 = vmul.f32 %v2906, %v2944
      %v2953 = vmul.f32 %v2908, %v2945
      %v2954 = vmul.f32 %v2910, %v2946
      %v2955 = vmul.f32 %v2912, %v2947
      %v2956 = vmul.f32 %v2914, %v2948
      %v2957 = vmul.f32 %v2916, %v2949
      %v2958 = vmul.f32 %v2918, %v2950
      %v2959 = vpack.c.bf16 %v2952, %v2951
      %v2960 = vpack.c.bf16 %v2954, %v2953
      %v2961 = vpack.c.bf16 %v2956, %v2955
      %v2962 = vpack.c.bf16 %v2958, %v2957
      %2963 = vrot.lane.b32.xlu0 %v1135, 104
      %v2964 = vpop.permute.xlu0 %2963
      %v2967 = vsel %vm1328, %v2959, 0
      %2969 = vmatprep.subr.bf16.mxu0 0
      %2970 = vmatpush1.bf16.msra.mxu0 0
      %2971 = vmatprep.subr.bf16.mxu0 0
      %2972 = vmatpush1.bf16.msra.mxu0 0
      %2973 = vmatprep.subr.bf16.mxu0 0
      %2974 = vmatpush1.bf16.msra.mxu0 0
      %2975 = vmatprep.subr.bf16.mxu0 0
      %2976 = vmatpush1.bf16.msra.mxu0 0
      %2977 = vmatprep.subr.bf16.mxu0 0
      %2978 = vmatpush1.bf16.msra.mxu0 0
      %2979 = vmatprep.subr.bf16.mxu0 0
      %2980 = vmatpush1.bf16.msra.mxu0 0
      %2981 = vmatprep.subr.bf16.mxu0 0
      %2982 = vmatpush1.bf16.msra.mxu0 0
      %2983 = vmatprep.subr.bf16.mxu0 0
      %2984 = vmatpush1.bf16.msra.mxu0 %v2964
      %2985 = vmatprep.subr.bf16.mxu0 0
      %2986 = vmatpush2.bf16.msra.mxu0 0
      %2987 = vmatprep.subr.bf16.mxu0 0
      %2988 = vmatpush2.bf16.msra.mxu0 0
      %2989 = vmatprep.subr.bf16.mxu0 0
      %2990 = vmatpush2.bf16.msra.mxu0 0
      %2991 = vmatprep.subr.bf16.mxu0 0
      %2992 = vmatpush2.bf16.msra.mxu0 0
      %2993 = vmatprep.subr.bf16.mxu0 0
      %2994 = vmatpush2.bf16.msra.mxu0 0
      %2995 = vmatprep.subr.bf16.mxu0 0
      %2996 = vmatpush2.bf16.msra.mxu0 0
      %2997 = vmatprep.subr.bf16.mxu0 0
      %2998 = vmatpush2.bf16.msra.mxu0 0
      %2999 = vmatprep.subr.bf16.mxu0 0
      %3000 = vmatpush2.bf16.msra.mxu0 0
      %3001 = vmatprep.mubr.bf16.mxu0 0
      %3002 = vmatmul.mubr.bf16.gmra.mxu0 %v2967
      %v3003 = vpop.f32.mrf.mxu0
      %v3004 = vadd.f32 0.0, %v3003
      %v3005 = vpop.f32.mrf.mxu0
      %v3006 = vpop.f32.mrf.mxu0
      %v3007 = vadd.f32 0.0, %v3006
      %v3008 = vpop.f32.mrf.mxu0
      %3009 = vdwg.mxu0
      %3010 = vrot.lane.b32.xlu0 %v1136, 104
      %v3011 = vpop.permute.xlu0 %3010
      %v3014 = vsel %vm1328, %v2960, 0
      %3016 = vmatprep.subr.bf16.mxu0 0
      %3017 = vmatpush1.bf16.msra.mxu0 0
      %3018 = vmatprep.subr.bf16.mxu0 0
      %3019 = vmatpush1.bf16.msra.mxu0 0
      %3020 = vmatprep.subr.bf16.mxu0 0
      %3021 = vmatpush1.bf16.msra.mxu0 0
      %3022 = vmatprep.subr.bf16.mxu0 0
      %3023 = vmatpush1.bf16.msra.mxu0 0
      %3024 = vmatprep.subr.bf16.mxu0 0
      %3025 = vmatpush1.bf16.msra.mxu0 0
      %3026 = vmatprep.subr.bf16.mxu0 0
      %3027 = vmatpush1.bf16.msra.mxu0 0
      %3028 = vmatprep.subr.bf16.mxu0 0
      %3029 = vmatpush1.bf16.msra.mxu0 0
      %3030 = vmatprep.subr.bf16.mxu0 0
      %3031 = vmatpush1.bf16.msra.mxu0 %v3011
      %3032 = vmatprep.subr.bf16.mxu0 0
      %3033 = vmatpush2.bf16.msra.mxu0 0
      %3034 = vmatprep.subr.bf16.mxu0 0
      %3035 = vmatpush2.bf16.msra.mxu0 0
      %3036 = vmatprep.subr.bf16.mxu0 0
      %3037 = vmatpush2.bf16.msra.mxu0 0
      %3038 = vmatprep.subr.bf16.mxu0 0
      %3039 = vmatpush2.bf16.msra.mxu0 0
      %3040 = vmatprep.subr.bf16.mxu0 0
      %3041 = vmatpush2.bf16.msra.mxu0 0
      %3042 = vmatprep.subr.bf16.mxu0 0
      %3043 = vmatpush2.bf16.msra.mxu0 0
      %3044 = vmatprep.subr.bf16.mxu0 0
      %3045 = vmatpush2.bf16.msra.mxu0 0
      %3046 = vmatprep.subr.bf16.mxu0 0
      %3047 = vmatpush2.bf16.msra.mxu0 0
      %3048 = vmatprep.mubr.bf16.mxu0 0
      %3049 = vmatmul.mubr.bf16.gmra.mxu0 %v3014
      %v3050 = vpop.f32.mrf.mxu0
      %v3051 = vadd.f32 0.0, %v3050
      %v3052 = vpop.f32.mrf.mxu0
      %v3053 = vpop.f32.mrf.mxu0
      %v3054 = vadd.f32 0.0, %v3053
      %v3055 = vpop.f32.mrf.mxu0
      %3056 = vdwg.mxu0
      %3057 = vrot.lane.b32.xlu0 %v1137, 104
      %v3058 = vpop.permute.xlu0 %3057
      %v3061 = vsel %vm1328, %v2961, 0
      %3063 = vmatprep.subr.bf16.mxu0 0
      %3064 = vmatpush1.bf16.msra.mxu0 0
      %3065 = vmatprep.subr.bf16.mxu0 0
      %3066 = vmatpush1.bf16.msra.mxu0 0
      %3067 = vmatprep.subr.bf16.mxu0 0
      %3068 = vmatpush1.bf16.msra.mxu0 0
      %3069 = vmatprep.subr.bf16.mxu0 0
      %3070 = vmatpush1.bf16.msra.mxu0 0
      %3071 = vmatprep.subr.bf16.mxu0 0
      %3072 = vmatpush1.bf16.msra.mxu0 0
      %3073 = vmatprep.subr.bf16.mxu0 0
      %3074 = vmatpush1.bf16.msra.mxu0 0
      %3075 = vmatprep.subr.bf16.mxu0 0
      %3076 = vmatpush1.bf16.msra.mxu0 0
      %3077 = vmatprep.subr.bf16.mxu0 0
      %3078 = vmatpush1.bf16.msra.mxu0 %v3058
      %3079 = vmatprep.subr.bf16.mxu0 0
      %3080 = vmatpush2.bf16.msra.mxu0 0
      %3081 = vmatprep.subr.bf16.mxu0 0
      %3082 = vmatpush2.bf16.msra.mxu0 0
      %3083 = vmatprep.subr.bf16.mxu0 0
      %3084 = vmatpush2.bf16.msra.mxu0 0
      %3085 = vmatprep.subr.bf16.mxu0 0
      %3086 = vmatpush2.bf16.msra.mxu0 0
      %3087 = vmatprep.subr.bf16.mxu0 0
      %3088 = vmatpush2.bf16.msra.mxu0 0
      %3089 = vmatprep.subr.bf16.mxu0 0
      %3090 = vmatpush2.bf16.msra.mxu0 0
      %3091 = vmatprep.subr.bf16.mxu0 0
      %3092 = vmatpush2.bf16.msra.mxu0 0
      %3093 = vmatprep.subr.bf16.mxu0 0
      %3094 = vmatpush2.bf16.msra.mxu0 0
      %3095 = vmatprep.mubr.bf16.mxu0 0
      %3096 = vmatmul.mubr.bf16.gmra.mxu0 %v3061
      %v3097 = vpop.f32.mrf.mxu0
      %v3098 = vadd.f32 0.0, %v3097
      %v3099 = vpop.f32.mrf.mxu0
      %v3100 = vpop.f32.mrf.mxu0
      %v3101 = vadd.f32 0.0, %v3100
      %v3102 = vpop.f32.mrf.mxu0
      %3103 = vdwg.mxu0
      %3104 = vrot.lane.b32.xlu0 %v1138, 104
      %v3105 = vpop.permute.xlu0 %3104
      %v3108 = vsel %vm1328, %v2962, 0
      %3110 = vmatprep.subr.bf16.mxu0 0
      %3111 = vmatpush1.bf16.msra.mxu0 0
      %3112 = vmatprep.subr.bf16.mxu0 0
      %3113 = vmatpush1.bf16.msra.mxu0 0
      %3114 = vmatprep.subr.bf16.mxu0 0
      %3115 = vmatpush1.bf16.msra.mxu0 0
      %3116 = vmatprep.subr.bf16.mxu0 0
      %3117 = vmatpush1.bf16.msra.mxu0 0
      %3118 = vmatprep.subr.bf16.mxu0 0
      %3119 = vmatpush1.bf16.msra.mxu0 0
      %3120 = vmatprep.subr.bf16.mxu0 0
      %3121 = vmatpush1.bf16.msra.mxu0 0
      %3122 = vmatprep.subr.bf16.mxu0 0
      %3123 = vmatpush1.bf16.msra.mxu0 0
      %3124 = vmatprep.subr.bf16.mxu0 0
      %3125 = vmatpush1.bf16.msra.mxu0 %v3105
      %3126 = vmatprep.subr.bf16.mxu0 0
      %3127 = vmatpush2.bf16.msra.mxu0 0
      %3128 = vmatprep.subr.bf16.mxu0 0
      %3129 = vmatpush2.bf16.msra.mxu0 0
      %3130 = vmatprep.subr.bf16.mxu0 0
      %3131 = vmatpush2.bf16.msra.mxu0 0
      %3132 = vmatprep.subr.bf16.mxu0 0
      %3133 = vmatpush2.bf16.msra.mxu0 0
      %3134 = vmatprep.subr.bf16.mxu0 0
      %3135 = vmatpush2.bf16.msra.mxu0 0
      %3136 = vmatprep.subr.bf16.mxu0 0
      %3137 = vmatpush2.bf16.msra.mxu0 0
      %3138 = vmatprep.subr.bf16.mxu0 0
      %3139 = vmatpush2.bf16.msra.mxu0 0
      %3140 = vmatprep.subr.bf16.mxu0 0
      %3141 = vmatpush2.bf16.msra.mxu0 0
      %3142 = vmatprep.mubr.bf16.mxu0 0
      %3143 = vmatmul.mubr.bf16.gmra.mxu0 %v3108
      %v3144 = vpop.f32.mrf.mxu0
      %v3145 = vadd.f32 0.0, %v3144
      %v3146 = vpop.f32.mrf.mxu0
      %v3147 = vpop.f32.mrf.mxu0
      %v3148 = vadd.f32 0.0, %v3147
      %v3149 = vpop.f32.mrf.mxu0
      %3150 = vdwg.mxu0
      %3159 = vrot.lane.b32.xlu0 %v3004, 24
      %v3160 = vpop.permute.xlu0 %3159
      %3161 = vrot.lane.b32.xlu0 %v3007, 24
      %v3162 = vpop.permute.xlu0 %3161
      %3163 = vrot.lane.b32.xlu0 %v3051, 24
      %v3164 = vpop.permute.xlu0 %3163
      %3165 = vrot.lane.b32.xlu0 %v3054, 24
      %v3166 = vpop.permute.xlu0 %3165
      %3167 = vrot.lane.b32.xlu0 %v3098, 24
      %v3168 = vpop.permute.xlu0 %3167
      %3169 = vrot.lane.b32.xlu0 %v3101, 24
      %v3170 = vpop.permute.xlu0 %3169
      %3171 = vrot.lane.b32.xlu0 %v3145, 24
      %v3172 = vpop.permute.xlu0 %3171
      %3173 = vrot.lane.b32.xlu0 %v3148, 24
      %v3174 = vpop.permute.xlu0 %3173
      %vm3183 = vcmask 261312
      %3184 = vst.msk [vmem:[#allocation2] sm:$0xff] %vm3183, %v3160
      %3185 = vst.msk [vmem:[#allocation2 + $0x8] sm:$0xff] %vm3183, %v3162
      %3186 = vst.msk [vmem:[#allocation2 + $0x10] sm:$0xff] %vm3183, %v3164
      %3187 = vst.msk [vmem:[#allocation2 + $0x18] sm:$0xff] %vm3183, %v3166
      %3188 = vst.msk [vmem:[#allocation2 + $0x20] sm:$0xff] %vm3183, %v3168
      %3189 = vst.msk [vmem:[#allocation2 + $0x28] sm:$0xff] %vm3183, %v3170
      %3190 = vst.msk [vmem:[#allocation2 + $0x30] sm:$0xff] %vm3183, %v3172
      %3191 = vst.msk [vmem:[#allocation2 + $0x38] sm:$0xff] %vm3183, %v3174
      %v3192 = vld [vmem:[#allocation2] sm:$0xff]
      %v3193 = vld [vmem:[#allocation2 + $0x8] sm:$0xff]
      %v3194 = vld [vmem:[#allocation2 + $0x10] sm:$0xff]
      %v3195 = vld [vmem:[#allocation2 + $0x18] sm:$0xff]
      %v3196 = vld [vmem:[#allocation2 + $0x20] sm:$0xff]
      %v3197 = vld [vmem:[#allocation2 + $0x28] sm:$0xff]
      %v3198 = vld [vmem:[#allocation2 + $0x30] sm:$0xff]
      %v3199 = vld [vmem:[#allocation2 + $0x38] sm:$0xff]
      %v3200 = vpack.c.bf16 %v3193, %v3192
      %v3201 = vpack.c.bf16 %v3195, %v3194
      %v3202 = vpack.c.bf16 %v3197, %v3196
      %v3203 = vpack.c.bf16 %v3199, %v3198
      %v3204 = vld [vmem:[%s11] sm:$0xf]
      %v3205 = vld [vmem:[%s11 + $0x4] sm:$0xf]
      %v3206 = vld [vmem:[%s11 + $0x8] sm:$0xf]
      %v3207 = vld [vmem:[%s11 + $0xc] sm:$0xf]
      %v3212 = vunpack.c.l.b16 %v3204
      %v3213 = vunpack.c.l.b16 %v3205
      %v3214 = vunpack.c.l.b16 %v3206
      %v3215 = vunpack.c.l.b16 %v3207
      %v3216 = vpack.c.b16 %v3213, %v3212
      %v3217 = vpack.c.b16 %v3215, %v3214
      %v3221 = vsel %vm716, %v3200, 0
      %v3224 = vsel %vm716, %v3201, 0
      %v3227 = vsel %vm716, %v3202, 0
      %v3230 = vsel %vm716, %v3203, 0
      %3232 = vmatprep.subr.bf16.mxu0 0
      %3233 = vmatpush1.bf16.msra.mxu0 0
      %3234 = vmatprep.subr.bf16.mxu0 0
      %3235 = vmatpush1.bf16.msra.mxu0 0
      %3236 = vmatprep.subr.bf16.mxu0 0
      %3237 = vmatpush1.bf16.msra.mxu0 0
      %3238 = vmatprep.subr.bf16.mxu0 0
      %3239 = vmatpush1.bf16.msra.mxu0 0
      %3240 = vmatprep.subr.bf16.mxu0 0
      %3241 = vmatpush1.bf16.msra.mxu0 0
      %3242 = vmatprep.subr.bf16.mxu0 0
      %3243 = vmatpush1.bf16.msra.mxu0 0
      %3244 = vmatprep.subr.bf16.mxu0 0
      %3245 = vmatpush1.bf16.msra.mxu0 %v3217
      %3246 = vmatprep.subr.bf16.mxu0 0
      %3247 = vmatpush1.bf16.msra.mxu0 %v3216
      %3248 = vmatprep.subr.bf16.mxu0 0
      %3249 = vmatpush2.bf16.msra.mxu0 0
      %3250 = vmatprep.subr.bf16.mxu0 0
      %3251 = vmatpush2.bf16.msra.mxu0 0
      %3252 = vmatprep.subr.bf16.mxu0 0
      %3253 = vmatpush2.bf16.msra.mxu0 0
      %3254 = vmatprep.subr.bf16.mxu0 0
      %3255 = vmatpush2.bf16.msra.mxu0 0
      %3256 = vmatprep.subr.bf16.mxu0 0
      %3257 = vmatpush2.bf16.msra.mxu0 0
      %3258 = vmatprep.subr.bf16.mxu0 0
      %3259 = vmatpush2.bf16.msra.mxu0 0
      %3260 = vmatprep.subr.bf16.mxu0 0
      %3261 = vmatpush2.bf16.msra.mxu0 0
      %3262 = vmatprep.subr.bf16.mxu0 0
      %3263 = vmatpush2.bf16.msra.mxu0 0
      %3264 = vmatprep.mubr.bf16.mxu0 0
      %3265 = vmatmul.mubr.bf16.gmra.mxu0 %v3221
      %v3266 = vpop.f32.mrf.mxu0
      %v3267 = vadd.f32 %v686, %v3266
      %v3268 = vpop.f32.mrf.mxu0
      %v3269 = vpop.f32.mrf.mxu0
      %v3270 = vadd.f32 %v689, %v3269
      %v3271 = vpop.f32.mrf.mxu0
      %3272 = vmatprep.mubr.bf16.mxu0 0
      %3273 = vmatmul.mubr.bf16.gmra.mxu0 %v3224
      %v3274 = vpop.f32.mrf.mxu0
      %v3275 = vadd.f32 %v694, %v3274
      %v3276 = vpop.f32.mrf.mxu0
      %v3277 = vpop.f32.mrf.mxu0
      %v3278 = vadd.f32 %v697, %v3277
      %v3279 = vpop.f32.mrf.mxu0
      %3280 = vmatprep.mubr.bf16.mxu0 0
      %3281 = vmatmul.mubr.bf16.gmra.mxu0 %v3227
      %v3282 = vpop.f32.mrf.mxu0
      %v3283 = vadd.f32 %v702, %v3282
      %v3284 = vpop.f32.mrf.mxu0
      %v3285 = vpop.f32.mrf.mxu0
      %v3286 = vadd.f32 %v705, %v3285
      %v3287 = vpop.f32.mrf.mxu0
      %3288 = vmatprep.mubr.bf16.mxu0 0
      %3289 = vmatmul.mubr.bf16.gmra.mxu0 %v3230
      %v3290 = vpop.f32.mrf.mxu0
      %v3291 = vadd.f32 %v710, %v3290
      %v3292 = vpop.f32.mrf.mxu0
      %v3293 = vpop.f32.mrf.mxu0
      %v3294 = vadd.f32 %v713, %v3293
      %v3295 = vpop.f32.mrf.mxu0
      %3296 = vdwg.mxu0
      %v3297 = vsel %vm716, %v3267, 0.0
      %3298 = vadd.xlane.f32.xlu0 %v3297
      %v3299 = vpop.xlane.xlu0 %3298
      %v3300 = vsel %vm716, %v3270, 0.0
      %3301 = vadd.xlane.f32.xlu0 %v3300
      %v3302 = vpop.xlane.xlu0 %3301
      %v3303 = vsel %vm716, %v3275, 0.0
      %3304 = vadd.xlane.f32.xlu0 %v3303
      %v3305 = vpop.xlane.xlu0 %3304
      %v3306 = vsel %vm716, %v3278, 0.0
      %3307 = vadd.xlane.f32.xlu0 %v3306
      %v3308 = vpop.xlane.xlu0 %3307
      %v3309 = vsel %vm716, %v3283, 0.0
      %3310 = vadd.xlane.f32.xlu0 %v3309
      %v3311 = vpop.xlane.xlu0 %3310
      %v3312 = vsel %vm716, %v3286, 0.0
      %3313 = vadd.xlane.f32.xlu0 %v3312
      %v3314 = vpop.xlane.xlu0 %3313
      %v3315 = vsel %vm716, %v3291, 0.0
      %3316 = vadd.xlane.f32.xlu0 %v3315
      %v3317 = vpop.xlane.xlu0 %3316
      %v3318 = vsel %vm716, %v3294, 0.0
      %3319 = vadd.xlane.f32.xlu0 %v3318
      %v3320 = vpop.xlane.xlu0 %3319
      %v3321 = vmul.f32 %v3299, %v741
      %v3322 = vmul.f32 %v3302, %v741
      %v3323 = vmul.f32 %v3305, %v741
      %v3324 = vmul.f32 %v3308, %v741
      %v3325 = vmul.f32 %v3311, %v741
      %v3326 = vmul.f32 %v3314, %v741
      %v3327 = vmul.f32 %v3317, %v741
      %v3328 = vmul.f32 %v3320, %v741
      %v3329 = vsub.f32 %v3267, %v3321
      %v3330 = vsub.f32 %v3270, %v3322
      %v3331 = vsub.f32 %v3275, %v3323
      %v3332 = vsub.f32 %v3278, %v3324
      %v3333 = vsub.f32 %v3283, %v3325
      %v3334 = vsub.f32 %v3286, %v3326
      %v3335 = vsub.f32 %v3291, %v3327
      %v3336 = vsub.f32 %v3294, %v3328
      %v3337 = vmul.f32 %v3329, %v3329
      %v3338 = vmul.f32 %v3330, %v3330
      %v3339 = vmul.f32 %v3331, %v3331
      %v3340 = vmul.f32 %v3332, %v3332
      %v3341 = vmul.f32 %v3333, %v3333
      %v3342 = vmul.f32 %v3334, %v3334
      %v3343 = vmul.f32 %v3335, %v3335
      %v3344 = vmul.f32 %v3336, %v3336
      %v3345 = vsel %vm716, %v3337, 0.0
      %3346 = vadd.xlane.f32.xlu0 %v3345
      %v3347 = vpop.xlane.xlu0 %3346
      %v3348 = vsel %vm716, %v3338, 0.0
      %3349 = vadd.xlane.f32.xlu0 %v3348
      %v3350 = vpop.xlane.xlu0 %3349
      %v3351 = vsel %vm716, %v3339, 0.0
      %3352 = vadd.xlane.f32.xlu0 %v3351
      %v3353 = vpop.xlane.xlu0 %3352
      %v3354 = vsel %vm716, %v3340, 0.0
      %3355 = vadd.xlane.f32.xlu0 %v3354
      %v3356 = vpop.xlane.xlu0 %3355
      %v3357 = vsel %vm716, %v3341, 0.0
      %3358 = vadd.xlane.f32.xlu0 %v3357
      %v3359 = vpop.xlane.xlu0 %3358
      %v3360 = vsel %vm716, %v3342, 0.0
      %3361 = vadd.xlane.f32.xlu0 %v3360
      %v3362 = vpop.xlane.xlu0 %3361
      %v3363 = vsel %vm716, %v3343, 0.0
      %3364 = vadd.xlane.f32.xlu0 %v3363
      %v3365 = vpop.xlane.xlu0 %3364
      %v3366 = vsel %vm716, %v3344, 0.0
      %3367 = vadd.xlane.f32.xlu0 %v3366
      %v3368 = vpop.xlane.xlu0 %3367
      %v3369 = vmul.f32 %v3347, %v741
      %v3370 = vmul.f32 %v3350, %v741
      %v3371 = vmul.f32 %v3353, %v741
      %v3372 = vmul.f32 %v3356, %v741
      %v3373 = vmul.f32 %v3359, %v741
      %v3374 = vmul.f32 %v3362, %v741
      %v3375 = vmul.f32 %v3365, %v741
      %v3376 = vmul.f32 %v3368, %v741
      %v3377 = vadd.f32 %v3369, 1e-05
      %v3378 = vadd.f32 %v3370, 1e-05
      %v3379 = vadd.f32 %v3371, 1e-05
      %v3380 = vadd.f32 %v3372, 1e-05
      %v3381 = vadd.f32 %v3373, 1e-05
      %v3382 = vadd.f32 %v3374, 1e-05
      %v3383 = vadd.f32 %v3375, 1e-05
      %v3384 = vadd.f32 %v3376, 1e-05
      %v3385 = vrsqrt.pop %v3377
      %v3386 = vrsqrt.pop %v3378
      %v3387 = vrsqrt.pop %v3379
      %v3388 = vrsqrt.pop %v3380
      %v3389 = vrsqrt.pop %v3381
      %v3390 = vrsqrt.pop %v3382
      %v3391 = vrsqrt.pop %v3383
      %v3392 = vrsqrt.pop %v3384
      %v3393 = vmul.f32 %v3329, %v3385
      %v3394 = vmul.f32 %v3330, %v3386
      %v3395 = vmul.f32 %v3331, %v3387
      %v3396 = vmul.f32 %v3332, %v3388
      %v3397 = vmul.f32 %v3333, %v3389
      %v3398 = vmul.f32 %v3334, %v3390
      %v3399 = vmul.f32 %v3335, %v3391
      %v3400 = vmul.f32 %v3336, %v3392
      %v3401 = vld [vmem:[%s12] sm:$0x1]
      %v3403 = vlaneseq
      %v3404 = vshrl.u32 %v3403, 7
      %v3405 = vsub.s32 0, %v3404
      %v3406 = vrot.slane %v3401, %v3405
      %v3408 = vmul.f32 %v3393, %v3406
      %v3409 = vmul.f32 %v3394, %v3406
      %v3410 = vmul.f32 %v3395, %v3406
      %v3411 = vmul.f32 %v3396, %v3406
      %v3412 = vmul.f32 %v3397, %v3406
      %v3413 = vmul.f32 %v3398, %v3406
      %v3414 = vmul.f32 %v3399, %v3406
      %v3415 = vmul.f32 %v3400, %v3406
      %v3416 = vld [vmem:[%s13] sm:$0x1]
      %v3418 = vlaneseq
      %v3419 = vshrl.u32 %v3418, 7
      %v3420 = vsub.s32 0, %v3419
      %v3421 = vrot.slane %v3416, %v3420
      %v3423 = vadd.f32 %v3408, %v3421
      %v3424 = vadd.f32 %v3409, %v3421
      %v3425 = vadd.f32 %v3410, %v3421
      %v3426 = vadd.f32 %v3411, %v3421
      %v3427 = vadd.f32 %v3412, %v3421
      %v3428 = vadd.f32 %v3413, %v3421
      %v3429 = vadd.f32 %v3414, %v3421
      %v3430 = vadd.f32 %v3415, %v3421
      %v3431 = vpack.c.bf16 %v3424, %v3423
      %v3432 = vpack.c.bf16 %v3426, %v3425
      %v3433 = vpack.c.bf16 %v3428, %v3427
      %v3434 = vpack.c.bf16 %v3430, %v3429
      %v3435 = vld [vmem:[%s14] sm:$0xf]
      %v3436 = vld [vmem:[%s14 + $0x4] sm:$0xf]
      %v3437 = vld [vmem:[%s14 + $0x8] sm:$0xf]
      %v3438 = vld [vmem:[%s14 + $0xc] sm:$0xf]
      %v3443 = vunpack.c.l.b16 %v3435
      %v3444 = vunpack.c.l.b16 %v3436
      %v3445 = vunpack.c.l.b16 %v3437
      %v3446 = vunpack.c.l.b16 %v3438
      %v3447 = vpack.c.b16 %v3444, %v3443
      %v3448 = vpack.c.b16 %v3446, %v3445
      %v3452 = vsel %vm716, %v3431, 0
      %v3455 = vsel %vm716, %v3432, 0
      %v3458 = vsel %vm716, %v3433, 0
      %v3461 = vsel %vm716, %v3434, 0
      %3463 = vmatprep.subr.bf16.mxu0 0
      %3464 = vmatpush1.bf16.msra.mxu0 0
      %3465 = vmatprep.subr.bf16.mxu0 0
      %3466 = vmatpush1.bf16.msra.mxu0 0
      %3467 = vmatprep.subr.bf16.mxu0 0
      %3468 = vmatpush1.bf16.msra.mxu0 0
      %3469 = vmatprep.subr.bf16.mxu0 0
      %3470 = vmatpush1.bf16.msra.mxu0 0
      %3471 = vmatprep.subr.bf16.mxu0 0
      %3472 = vmatpush1.bf16.msra.mxu0 0
      %3473 = vmatprep.subr.bf16.mxu0 0
      %3474 = vmatpush1.bf16.msra.mxu0 0
      %3475 = vmatprep.subr.bf16.mxu0 0
      %3476 = vmatpush1.bf16.msra.mxu0 %v3448
      %3477 = vmatprep.subr.bf16.mxu0 0
      %3478 = vmatpush1.bf16.msra.mxu0 %v3447
      %3479 = vmatprep.subr.bf16.mxu0 0
      %3480 = vmatpush2.bf16.msra.mxu0 0
      %3481 = vmatprep.subr.bf16.mxu0 0
      %3482 = vmatpush2.bf16.msra.mxu0 0
      %3483 = vmatprep.subr.bf16.mxu0 0
      %3484 = vmatpush2.bf16.msra.mxu0 0
      %3485 = vmatprep.subr.bf16.mxu0 0
      %3486 = vmatpush2.bf16.msra.mxu0 0
      %3487 = vmatprep.subr.bf16.mxu0 0
      %3488 = vmatpush2.bf16.msra.mxu0 0
      %3489 = vmatprep.subr.bf16.mxu0 0
      %3490 = vmatpush2.bf16.msra.mxu0 0
      %3491 = vmatprep.subr.bf16.mxu0 0
      %3492 = vmatpush2.bf16.msra.mxu0 0
      %3493 = vmatprep.subr.bf16.mxu0 0
      %3494 = vmatpush2.bf16.msra.mxu0 0
      %3495 = vmatprep.mubr.bf16.mxu0 0
      %3496 = vmatmul.mubr.bf16.gmra.mxu0 %v3452
      %v3497 = vpop.f32.mrf.mxu0
      %v3498 = vadd.f32 0.0, %v3497
      %v3499 = vpop.f32.mrf.mxu0
      %v3500 = vpop.f32.mrf.mxu0
      %v3501 = vadd.f32 0.0, %v3500
      %v3502 = vpop.f32.mrf.mxu0
      %3503 = vmatprep.mubr.bf16.mxu0 0
      %3504 = vmatmul.mubr.bf16.gmra.mxu0 %v3455
      %v3505 = vpop.f32.mrf.mxu0
      %v3506 = vadd.f32 0.0, %v3505
      %v3507 = vpop.f32.mrf.mxu0
      %v3508 = vpop.f32.mrf.mxu0
      %v3509 = vadd.f32 0.0, %v3508
      %v3510 = vpop.f32.mrf.mxu0
      %3511 = vmatprep.mubr.bf16.mxu0 0
      %3512 = vmatmul.mubr.bf16.gmra.mxu0 %v3458
      %v3513 = vpop.f32.mrf.mxu0
      %v3514 = vadd.f32 0.0, %v3513
      %v3515 = vpop.f32.mrf.mxu0
      %v3516 = vpop.f32.mrf.mxu0
      %v3517 = vadd.f32 0.0, %v3516
      %v3518 = vpop.f32.mrf.mxu0
      %3519 = vmatprep.mubr.bf16.mxu0 0
      %3520 = vmatmul.mubr.bf16.gmra.mxu0 %v3461
      %v3521 = vpop.f32.mrf.mxu0
      %v3522 = vadd.f32 0.0, %v3521
      %v3523 = vpop.f32.mrf.mxu0
      %v3524 = vpop.f32.mrf.mxu0
      %v3525 = vadd.f32 0.0, %v3524
      %v3526 = vpop.f32.mrf.mxu0
      %3527 = vdwg.mxu0
      %v3528 = vmax.f32 %v3498, 0.0
      %v3529 = vmax.f32 %v3501, 0.0
      %v3530 = vmax.f32 %v3506, 0.0
      %v3531 = vmax.f32 %v3509, 0.0
      %v3532 = vmax.f32 %v3514, 0.0
      %v3533 = vmax.f32 %v3517, 0.0
      %v3534 = vmax.f32 %v3522, 0.0
      %v3535 = vmax.f32 %v3525, 0.0
      %v3536 = vpack.c.bf16 %v3529, %v3528
      %v3537 = vpack.c.bf16 %v3531, %v3530
      %v3538 = vpack.c.bf16 %v3533, %v3532
      %v3539 = vpack.c.bf16 %v3535, %v3534
      %v3540 = vld [vmem:[%s15] sm:$0xf]
      %v3541 = vld [vmem:[%s15 + $0x4] sm:$0xf]
      %v3542 = vld [vmem:[%s15 + $0x8] sm:$0xf]
      %v3543 = vld [vmem:[%s15 + $0xc] sm:$0xf]
      %v3544 = vld [vmem:[%s15 + $0x10] sm:$0xf]
      %v3545 = vld [vmem:[%s15 + $0x14] sm:$0xf]
      %v3546 = vld [vmem:[%s15 + $0x18] sm:$0xf]
      %v3547 = vld [vmem:[%s15 + $0x1c] sm:$0xf]
      %v3556 = vunpack.c.l.b16 %v3540
      %v3557 = vunpack.c.l.b16 %v3541
      %v3558 = vunpack.c.l.b16 %v3542
      %v3559 = vunpack.c.l.b16 %v3543
      %v3560 = vunpack.c.l.b16 %v3544
      %v3561 = vunpack.c.l.b16 %v3545
      %v3562 = vunpack.c.l.b16 %v3546
      %v3563 = vunpack.c.l.b16 %v3547
      %v3564 = vpack.c.b16 %v3557, %v3556
      %v3565 = vpack.c.b16 %v3559, %v3558
      %v3566 = vpack.c.b16 %v3561, %v3560
      %v3567 = vpack.c.b16 %v3563, %v3562
      %vm3572 = vcmask 523264
      %v3574 = vsel %vm3572, %v3536, 0
      %v3577 = vsel %vm3572, %v3537, 0
      %v3580 = vsel %vm3572, %v3538, 0
      %v3583 = vsel %vm3572, %v3539, 0
      %3585 = vmatprep.subr.bf16.mxu0 0
      %3586 = vmatpush1.bf16.msra.mxu0 0
      %3587 = vmatprep.subr.bf16.mxu0 0
      %3588 = vmatpush1.bf16.msra.mxu0 0
      %3589 = vmatprep.subr.bf16.mxu0 0
      %3590 = vmatpush1.bf16.msra.mxu0 0
      %3591 = vmatprep.subr.bf16.mxu0 0
      %3592 = vmatpush1.bf16.msra.mxu0 0
      %3593 = vmatprep.subr.bf16.mxu0 0
      %3594 = vmatpush1.bf16.msra.mxu0 %v3567
      %3595 = vmatprep.subr.bf16.mxu0 0
      %3596 = vmatpush1.bf16.msra.mxu0 %v3566
      %3597 = vmatprep.subr.bf16.mxu0 0
      %3598 = vmatpush1.bf16.msra.mxu0 %v3565
      %3599 = vmatprep.subr.bf16.mxu0 0
      %3600 = vmatpush1.bf16.msra.mxu0 %v3564
      %3601 = vmatprep.subr.bf16.mxu0 0
      %3602 = vmatpush2.bf16.msra.mxu0 0
      %3603 = vmatprep.subr.bf16.mxu0 0
      %3604 = vmatpush2.bf16.msra.mxu0 0
      %3605 = vmatprep.subr.bf16.mxu0 0
      %3606 = vmatpush2.bf16.msra.mxu0 0
      %3607 = vmatprep.subr.bf16.mxu0 0
      %3608 = vmatpush2.bf16.msra.mxu0 0
      %3609 = vmatprep.subr.bf16.mxu0 0
      %3610 = vmatpush2.bf16.msra.mxu0 0
      %3611 = vmatprep.subr.bf16.mxu0 0
      %3612 = vmatpush2.bf16.msra.mxu0 0
      %3613 = vmatprep.subr.bf16.mxu0 0
      %3614 = vmatpush2.bf16.msra.mxu0 0
      %3615 = vmatprep.subr.bf16.mxu0 0
      %3616 = vmatpush2.bf16.msra.mxu0 0
      %3617 = vmatprep.mubr.bf16.mxu0 0
      %3618 = vmatmul.mubr.bf16.gmra.mxu0 %v3574
      %v3619 = vpop.f32.mrf.mxu0
      %v3620 = vadd.f32 %v3267, %v3619
      %v3621 = vpop.f32.mrf.mxu0
      %v3622 = vpop.f32.mrf.mxu0
      %v3623 = vadd.f32 %v3270, %v3622
      %v3624 = vpop.f32.mrf.mxu0
      %3625 = vmatprep.mubr.bf16.mxu0 0
      %3626 = vmatmul.mubr.bf16.gmra.mxu0 %v3577
      %v3627 = vpop.f32.mrf.mxu0
      %v3628 = vadd.f32 %v3275, %v3627
      %v3629 = vpop.f32.mrf.mxu0
      %v3630 = vpop.f32.mrf.mxu0
      %v3631 = vadd.f32 %v3278, %v3630
      %v3632 = vpop.f32.mrf.mxu0
      %3633 = vmatprep.mubr.bf16.mxu0 0
      %3634 = vmatmul.mubr.bf16.gmra.mxu0 %v3580
      %v3635 = vpop.f32.mrf.mxu0
      %v3636 = vadd.f32 %v3283, %v3635
      %v3637 = vpop.f32.mrf.mxu0
      %v3638 = vpop.f32.mrf.mxu0
      %v3639 = vadd.f32 %v3286, %v3638
      %v3640 = vpop.f32.mrf.mxu0
      %3641 = vmatprep.mubr.bf16.mxu0 0
      %3642 = vmatmul.mubr.bf16.gmra.mxu0 %v3583
      %v3643 = vpop.f32.mrf.mxu0
      %v3644 = vadd.f32 %v3291, %v3643
      %v3645 = vpop.f32.mrf.mxu0
      %v3646 = vpop.f32.mrf.mxu0
      %v3647 = vadd.f32 %v3294, %v3646
      %v3648 = vpop.f32.mrf.mxu0
      %3649 = vdwg.mxu0
      %v3650 = vpack.c.bf16 %v3623, %v3620
      %v3651 = vpack.c.bf16 %v3631, %v3628
      %v3652 = vpack.c.bf16 %v3639, %v3636
      %v3653 = vpack.c.bf16 %v3647, %v3644
      %v3654 = vld [vmem:[%s16] sm:$0xf]
      %v3655 = vld [vmem:[%s16 + $0x4] sm:$0xf]
      %v3656 = vld [vmem:[%s16 + $0x8] sm:$0xf]
      %v3657 = vld [vmem:[%s16 + $0xc] sm:$0xf]
      %v3662 = vunpack.c.l.b16 %v3654
      %v3663 = vunpack.c.l.b16 %v3655
      %v3664 = vunpack.c.l.b16 %v3656
      %v3665 = vunpack.c.l.b16 %v3657
      %v3666 = vpack.c.b16 %v3663, %v3662
      %v3667 = vpack.c.b16 %v3665, %v3664
      %v3671 = vsel %vm716, %v3650, 0
      %v3674 = vsel %vm716, %v3651, 0
      %v3677 = vsel %vm716, %v3652, 0
      %v3680 = vsel %vm716, %v3653, 0
      %3682 = vmatprep.subr.bf16.mxu0 0
      %3683 = vmatpush1.bf16.msra.mxu0 0
      %3684 = vmatprep.subr.bf16.mxu0 0
      %3685 = vmatpush1.bf16.msra.mxu0 0
      %3686 = vmatprep.subr.bf16.mxu0 0
      %3687 = vmatpush1.bf16.msra.mxu0 0
      %3688 = vmatprep.subr.bf16.mxu0 0
      %3689 = vmatpush1.bf16.msra.mxu0 0
      %3690 = vmatprep.subr.bf16.mxu0 0
      %3691 = vmatpush1.bf16.msra.mxu0 0
      %3692 = vmatprep.subr.bf16.mxu0 0
      %3693 = vmatpush1.bf16.msra.mxu0 0
      %3694 = vmatprep.subr.bf16.mxu0 0
      %3695 = vmatpush1.bf16.msra.mxu0 %v3667
      %3696 = vmatprep.subr.bf16.mxu0 0
      %3697 = vmatpush1.bf16.msra.mxu0 %v3666
      %3698 = vmatprep.subr.bf16.mxu0 0
      %3699 = vmatpush2.bf16.msra.mxu0 0
      %3700 = vmatprep.subr.bf16.mxu0 0
      %3701 = vmatpush2.bf16.msra.mxu0 0
      %3702 = vmatprep.subr.bf16.mxu0 0
      %3703 = vmatpush2.bf16.msra.mxu0 0
      %3704 = vmatprep.subr.bf16.mxu0 0
      %3705 = vmatpush2.bf16.msra.mxu0 0
      %3706 = vmatprep.subr.bf16.mxu0 0
      %3707 = vmatpush2.bf16.msra.mxu0 0
      %3708 = vmatprep.subr.bf16.mxu0 0
      %3709 = vmatpush2.bf16.msra.mxu0 0
      %3710 = vmatprep.subr.bf16.mxu0 0
      %3711 = vmatpush2.bf16.msra.mxu0 0
      %3712 = vmatprep.subr.bf16.mxu0 0
      %3713 = vmatpush2.bf16.msra.mxu0 0
      %3714 = vmatprep.mubr.bf16.mxu0 0
      %3715 = vmatmul.mubr.bf16.gmra.mxu0 %v3671
      %v3716 = vpop.f32.mrf.mxu0
      %v3717 = vadd.f32 0.0, %v3716
      %v3718 = vpop.f32.mrf.mxu0
      %v3719 = vpop.f32.mrf.mxu0
      %v3720 = vadd.f32 0.0, %v3719
      %v3721 = vpop.f32.mrf.mxu0
      %3722 = vmatprep.mubr.bf16.mxu0 0
      %3723 = vmatmul.mubr.bf16.gmra.mxu0 %v3674
      %v3724 = vpop.f32.mrf.mxu0
      %v3725 = vadd.f32 0.0, %v3724
      %v3726 = vpop.f32.mrf.mxu0
      %v3727 = vpop.f32.mrf.mxu0
      %v3728 = vadd.f32 0.0, %v3727
      %v3729 = vpop.f32.mrf.mxu0
      %3730 = vmatprep.mubr.bf16.mxu0 0
      %3731 = vmatmul.mubr.bf16.gmra.mxu0 %v3677
      %v3732 = vpop.f32.mrf.mxu0
      %v3733 = vadd.f32 0.0, %v3732
      %v3734 = vpop.f32.mrf.mxu0
      %v3735 = vpop.f32.mrf.mxu0
      %v3736 = vadd.f32 0.0, %v3735
      %v3737 = vpop.f32.mrf.mxu0
      %3738 = vmatprep.mubr.bf16.mxu0 0
      %3739 = vmatmul.mubr.bf16.gmra.mxu0 %v3680
      %v3740 = vpop.f32.mrf.mxu0
      %v3741 = vadd.f32 0.0, %v3740
      %v3742 = vpop.f32.mrf.mxu0
      %v3743 = vpop.f32.mrf.mxu0
      %v3744 = vadd.f32 0.0, %v3743
      %v3745 = vpop.f32.mrf.mxu0
      %3746 = vdwg.mxu0
      %3747 = vst.msk [vmem:[%s550] sm:$0xff] %vm634, %v3717
      %3748 = vst.msk [vmem:[%s550 + $0x8] sm:$0xff] %vm634, %v3720
      %3749 = vst.msk [vmem:[%s550 + $0x10] sm:$0xff] %vm634, %v3725
      %3750 = vst.msk [vmem:[%s550 + $0x18] sm:$0xff] %vm634, %v3728
      %3751 = vst.msk [vmem:[%s550 + $0x20] sm:$0xff] %vm634, %v3733
      %3752 = vst.msk [vmem:[%s550 + $0x28] sm:$0xff] %vm634, %v3736
      %3753 = vst.msk [vmem:[%s550 + $0x30] sm:$0xff] %vm634, %v3741
      %3754 = vst.msk [vmem:[%s550 + $0x38] sm:$0xff] %vm634, %v3744
      %s3755 = smul.u32 8, %s28
      %p3756 = scmp.lt.s32.totalorder %s3755, 15
      %s3757 = scalar_select %p3756, %s3755, 15
      %s3758 = smul.addr %s3757, 8
      %s3759 = scalar_lea.vmem %s17, %s3758
      // Predicated region
      $region89: #{tpu_custom_call.1} parent=87 // pred_check
        %p3760 = pneg %p408
      $region90: #{tpu_custom_call.1} parent=87 // pred_check_branch
        %3762 = sbr.rel (%p3760) target = $region92
      $region91: #{tpu_custom_call.1} parent=87 // pred_region
        %s3763 = smul.u32 8, %s28
      $region92: #{tpu_custom_call.1} parent=87 // pred_fallthru
        _
    $region88: #{tpu_custom_call.1} parent=5 // pred_fallthru
      _
    %p3764 = scmp.le.s32.totalorder 2, %s23
    // Predicated region
    $region93: #{tpu_custom_call.1} parent=5 // pred_check
      %p3765 = pneg %p3764
    $region94: #{tpu_custom_call.1} parent=5 // pred_check_branch
      %3767 = sbr.rel (%p3765) target = $region96
    $region95: #{tpu_custom_call.1} parent=5 // pred_region
      %s3768 = ssub.s32 %s23, 2
      // Predicated region
      $region97: #{tpu_custom_call.1} parent=95 // pred_check
        %p3769 = pneg %p414
      $region98: #{tpu_custom_call.1} parent=95 // pred_check_branch
        %3771 = sbr.rel (%p3769) target = $region100
      $region99: #{tpu_custom_call.1} parent=95 // pred_region
        %s3772 = smul.u32 8, %s29
        %p3773 = scmp.lt.s32.totalorder %s3772, 15
        %s3774 = scalar_select %p3773, %s3772, 15
        %s3775 = smul.addr %s3774, 8
        %s3776 = scalar_lea.vmem %s17, %s3775
      $region100: #{tpu_custom_call.1} parent=95 // pred_fallthru
        _
    $region96: #{tpu_custom_call.1} parent=5 // pred_fallthru
      _
  $region6: #{tpu_custom_call.1} parent=0 // loop_footer
    %s27 = sadd.s32 1, %s23
  $region7: #{tpu_custom_call.1} parent=0 // loop_footer_branch
    %22 = sbr.rel target = $region3
  $region8: #{tpu_custom_call.1} parent=0 // loop_exit
    _

</llo_original>
